<compile_context>
chip_gen: v6e
topology: v6e:2x2x1
jax: 0.10.0
libtpu: 0.0.40
codegen_flags: <defaults>
</compile_context>

<pallas_src>
import functools

import jax
import jax.numpy as jnp
from jax.experimental import pallas as pl
from jax.experimental.pallas import tpu as pltpu

EPS = 1e-3


def _dwconv_bn_kernel(x_ref, w_ref, gamma_ref, beta_ref, o_ref, *, rb, rb2):
    # x_ref:     (N, H+2, W+2, Cp)  spatially zero-padded, channel-padded input
    # w_ref:     (9, Cp)            depthwise taps, row k = dh*3 + dw
    # gamma_ref: (1, Cp)            BN scale (zero on padded channels)
    # beta_ref:  (1, Cp)            BN shift (zero on padded channels)
    # o_ref:     (N, H, W, Cp)      output (also reused as the conv buffer)
    N, Hp, Wp, C = x_ref.shape
    H, W = Hp - 2, Wp - 2
    n_blocks = H // rb

    # Hoist the 9 per-tap weight vectors once (loop-invariant, lane-resident).
    w = w_ref[...].astype(jnp.float32)                       # (9, C)
    taps = [w[k:k + 1, :].reshape(1, 1, 1, C) for k in range(9)]

    # BN statistics carried as values (2 vregs), not VMEM scratch.
    csum = jnp.zeros((1, C), jnp.float32)
    csq = jnp.zeros((1, C), jnp.float32)

    # ---- Pass 1: depthwise 3x3 conv, rb output rows per block, fully ------
    # ---- unrolled; fused per-channel sum / sum-of-squares accumulation. ---
    for i in range(n_blocks):                    # static -> fully unrolled
        h0 = i * rb
        acc = None
        for dw in range(3):
            # One misaligned W (sublane) slice per dw, straight from the ref.
            sh = x_ref[:, h0:h0 + rb + 2, dw:dw + W, :].astype(jnp.float32)
            for dh in range(3):
                # H slice is third-minor: free (no lane/sublane movement).
                term = sh[:, dh:dh + rb, :, :] * taps[dh * 3 + dw]
                acc = term if acc is None else acc + term
        # Lane-dense, unmasked full-width store.
        o_ref[:, h0:h0 + rb, :, :] = acc.astype(o_ref.dtype)
        flat = acc.reshape(N * rb * W, C)
        csum = csum + jnp.sum(flat, axis=0, keepdims=True)
        csq = csq + jnp.sum(flat * flat, axis=0, keepdims=True)

    # ---- BatchNorm2d training-mode statistics (biased variance), folded ---
    # ---- into a single per-channel scale / shift.                        ---
    inv_cnt = 1.0 / float(N * H * W)
    mean = csum * inv_cnt                                   # (1, C)
    var = jnp.maximum(csq * inv_cnt - mean * mean, 0.0)     # clamp cancellation
    inv = jax.lax.rsqrt(var + jnp.float32(EPS))
    g = gamma_ref[...].astype(jnp.float32)
    b = beta_ref[...].astype(jnp.float32)
    scale = (g * inv).reshape(1, 1, 1, C)
    shift = (b - mean * g * inv).reshape(1, 1, 1, C)

    # ---- Pass 2: normalize the stored conv result in place.  Elementwise, -
    # ---- so use a large row block (no halo needed) and full unroll.       -
    for i in range(H // rb2):
        h0 = i * rb2
        y = o_ref[:, h0:h0 + rb2, :, :].astype(jnp.float32)
        o_ref[:, h0:h0 + rb2, :, :] = (y * scale + shift).astype(o_ref.dtype)


@jax.jit
def depthwise_conv_bn(x_nchw, w_dw, gamma, beta):
    """x_nchw: (N, C, H, W); w_dw: (3, 3, C); gamma/beta: (C,)."""
    N, C, H, W = x_nchw.shape
    Cp = pl.cdiv(C, 128) * 128                  # lane-dense channel extent
    rb = 4 if H % 4 == 0 else (2 if H % 2 == 0 else 1)          # conv block
    rb2 = next(d for d in (14, 8, 7, 4, 2, 1) if H % d == 0)    # norm block

    # NCHW -> NHWC; one pad op covers both the SAME spatial padding and the
    # channel pad up to a multiple of 128 (padded channels are all-zero).
    # Under jit XLA fuses transpose+pad into a single copy fusion.
    x_nhwc = jnp.transpose(x_nchw, (0, 2, 3, 1))
    x_p = jnp.pad(x_nhwc, ((0, 0), (1, 1), (1, 1), (0, Cp - C)))
    w_p = jnp.pad(w_dw.reshape(9, C), ((0, 0), (0, Cp - C)))
    g_p = jnp.pad(gamma.reshape(1, C), ((0, 0), (0, Cp - C)))
    b_p = jnp.pad(beta.reshape(1, C), ((0, 0), (0, Cp - C)))

    kernel = functools.partial(_dwconv_bn_kernel, rb=rb, rb2=rb2)
    out_nhwc = pl.pallas_call(
        kernel,
        out_shape=jax.ShapeDtypeStruct((N, H, W, Cp), x_nchw.dtype),
        grid=(1,),
        in_specs=[
            pl.BlockSpec((N, H + 2, W + 2, Cp), lambda i: (0, 0, 0, 0)),
            pl.BlockSpec((9, Cp), lambda i: (0, 0)),
            pl.BlockSpec((1, Cp), lambda i: (0, 0)),
            pl.BlockSpec((1, Cp), lambda i: (0, 0)),
        ],
        out_specs=pl.BlockSpec((N, H, W, Cp), lambda i: (0, 0, 0, 0)),
        compiler_params=pltpu.CompilerParams(
            dimension_semantics=("arbitrary",)),
    )(x_p, w_p, g_p, b_p)

    # Drop the padded channels and return to NCHW (fused by XLA under jit).
    return jnp.transpose(out_nhwc[..., :C], (0, 3, 1, 2))


def _reference(x_nchw, w_dw, gamma, beta):
    """Pure-JAX reference: depthwise 3x3 conv + training-mode BatchNorm2d."""
    N, C, H, W = x_nchw.shape
    xp = jnp.pad(x_nchw, ((0, 0), (0, 0), (1, 1), (1, 1)))
    conv = jnp.zeros((N, C, H, W), jnp.float32)
    for dh in range(3):
        for dw in range(3):
            conv = conv + xp[:, :, dh:dh + H, dw:dw + W] * \
                w_dw[dh, dw, :].reshape(1, C, 1, 1)
    mean = jnp.mean(conv, axis=(0, 2, 3), keepdims=True)
    var = jnp.mean((conv - mean) ** 2, axis=(0, 2, 3), keepdims=True)
    return (conv - mean) * jax.lax.rsqrt(var + EPS) * \
        gamma.reshape(1, C, 1, 1) + beta.reshape(1, C, 1, 1)


if __name__ == "__main__":
    key = jax.random.PRNGKey(0)
    k_x, k_w = jax.random.split(key)

    # Shapes follow the module spec: x25 is (1, 88, 28, 28); channels fixed
    # at 88 by the depthwise conv.
    N, C, H, W = 1, 88, 28, 28
    x = jax.random.normal(k_x, (N, C, H, W), dtype=jnp.float32)

    # Depthwise weight (PyTorch shape (88,1,3,3)) stored as (3,3,88).
    bound = (1.0 / 9.0) ** 0.5
    w_dw = jax.random.uniform(k_w, (3, 3, C), dtype=jnp.float32,
                              minval=-bound, maxval=bound)
    gamma = jnp.ones((C,), jnp.float32)   # BatchNorm2d weight init
    beta = jnp.zeros((C,), jnp.float32)   # BatchNorm2d bias init

    out = depthwise_conv_bn(x, w_dw, gamma, beta)
    jax.block_until_ready(out)
    assert out.shape == (N, C, H, W)

    ref = _reference(x, w_dw, gamma, beta)
    err = float(jnp.max(jnp.abs(out - ref)))
    assert err < 1e-2, f"max abs err vs reference: {err}"
    print("KERNEL_OK")
</pallas_src>

<mosaic_0001>
module attributes {stable_mosaic.version = 11 : i64} {
  func.func @_dwconv_bn_kernel(%arg0: i32, %arg1: memref<1x30x30x128xf32, #tpu.memory_space<vmem>>, %arg2: memref<9x128xf32, #tpu.memory_space<vmem>>, %arg3: memref<1x128xf32, #tpu.memory_space<vmem>>, %arg4: memref<1x128xf32, #tpu.memory_space<vmem>>, %arg5: memref<1x28x28x128xf32, #tpu.memory_space<vmem>>) attributes {dimension_semantics = [#tpu.dimension_semantics<arbitrary>], iteration_bounds = array<i64: 1>, scalar_prefetch = 0 : i64, scratch_operands = 0 : i64, tpu.core_type = #tpu.core_type<tc>, window_params = [{pipeline_mode = #tpu.pipeline_mode<synchronous>, transform_indices = @transform_0, window_bounds = array<i64: 1, 30, 30, 128>}, {pipeline_mode = #tpu.pipeline_mode<synchronous>, transform_indices = @transform_1, window_bounds = array<i64: 9, 128>}, {pipeline_mode = #tpu.pipeline_mode<synchronous>, transform_indices = @transform_2, window_bounds = array<i64: 1, 128>}, {pipeline_mode = #tpu.pipeline_mode<synchronous>, transform_indices = @transform_3, window_bounds = array<i64: 1, 128>}, {pipeline_mode = #tpu.pipeline_mode<synchronous>, transform_indices = @transform_4, window_bounds = array<i64: 1, 28, 28, 128>}]} {
    %c0 = arith.constant 0 : index
    %c0_0 = arith.constant 0 : index
    %0 = vector.load %arg2[%c0, %c0_0] : memref<9x128xf32, #tpu.memory_space<vmem>>, vector<9x128xf32>
    %1 = vector.extract_strided_slice %0 {offsets = [0, 0], sizes = [1, 128], strides = [1, 1]} : vector<9x128xf32> to vector<1x128xf32>
    %2 = vector.shape_cast %1 : vector<1x128xf32> to vector<1x1x1x128xf32>
    %3 = vector.extract_strided_slice %0 {offsets = [1, 0], sizes = [1, 128], strides = [1, 1]} : vector<9x128xf32> to vector<1x128xf32>
    %4 = vector.shape_cast %3 : vector<1x128xf32> to vector<1x1x1x128xf32>
    %5 = vector.extract_strided_slice %0 {offsets = [2, 0], sizes = [1, 128], strides = [1, 1]} : vector<9x128xf32> to vector<1x128xf32>
    %6 = vector.shape_cast %5 : vector<1x128xf32> to vector<1x1x1x128xf32>
    %7 = vector.extract_strided_slice %0 {offsets = [3, 0], sizes = [1, 128], strides = [1, 1]} : vector<9x128xf32> to vector<1x128xf32>
    %8 = vector.shape_cast %7 : vector<1x128xf32> to vector<1x1x1x128xf32>
    %9 = vector.extract_strided_slice %0 {offsets = [4, 0], sizes = [1, 128], strides = [1, 1]} : vector<9x128xf32> to vector<1x128xf32>
    %10 = vector.shape_cast %9 : vector<1x128xf32> to vector<1x1x1x128xf32>
    %11 = vector.extract_strided_slice %0 {offsets = [5, 0], sizes = [1, 128], strides = [1, 1]} : vector<9x128xf32> to vector<1x128xf32>
    %12 = vector.shape_cast %11 : vector<1x128xf32> to vector<1x1x1x128xf32>
    %13 = vector.extract_strided_slice %0 {offsets = [6, 0], sizes = [1, 128], strides = [1, 1]} : vector<9x128xf32> to vector<1x128xf32>
    %14 = vector.shape_cast %13 : vector<1x128xf32> to vector<1x1x1x128xf32>
    %15 = vector.extract_strided_slice %0 {offsets = [7, 0], sizes = [1, 128], strides = [1, 1]} : vector<9x128xf32> to vector<1x128xf32>
    %16 = vector.shape_cast %15 : vector<1x128xf32> to vector<1x1x1x128xf32>
    %17 = vector.extract_strided_slice %0 {offsets = [8, 0], sizes = [1, 128], strides = [1, 1]} : vector<9x128xf32> to vector<1x128xf32>
    %18 = vector.shape_cast %17 : vector<1x128xf32> to vector<1x1x1x128xf32>
    %cst = arith.constant 0.000000e+00 : f32
    %19 = vector.broadcast %cst : f32 to vector<1x128xf32>
    %cst_1 = arith.constant 0.000000e+00 : f32
    %20 = vector.broadcast %cst_1 : f32 to vector<1x128xf32>
    %c0_2 = arith.constant 0 : index
    %c0_3 = arith.constant 0 : index
    %c0_4 = arith.constant 0 : index
    %c0_5 = arith.constant 0 : index
    %21 = vector.load %arg1[%c0_2, %c0_3, %c0_4, %c0_5] : memref<1x30x30x128xf32, #tpu.memory_space<vmem>>, vector<1x6x28x128xf32>
    %22 = vector.extract_strided_slice %21 {offsets = [0, 0, 0, 0], sizes = [1, 4, 28, 128], strides = [1, 1, 1, 1]} : vector<1x6x28x128xf32> to vector<1x4x28x128xf32>
    %23 = vector.broadcast %2 : vector<1x1x1x128xf32> to vector<1x4x28x128xf32>
    %24 = arith.mulf %22, %23 : vector<1x4x28x128xf32>
    %25 = vector.extract_strided_slice %21 {offsets = [0, 1, 0, 0], sizes = [1, 4, 28, 128], strides = [1, 1, 1, 1]} : vector<1x6x28x128xf32> to vector<1x4x28x128xf32>
    %26 = vector.broadcast %8 : vector<1x1x1x128xf32> to vector<1x4x28x128xf32>
    %27 = arith.mulf %25, %26 : vector<1x4x28x128xf32>
    %28 = arith.addf %24, %27 : vector<1x4x28x128xf32>
    %29 = vector.extract_strided_slice %21 {offsets = [0, 2, 0, 0], sizes = [1, 4, 28, 128], strides = [1, 1, 1, 1]} : vector<1x6x28x128xf32> to vector<1x4x28x128xf32>
    %30 = vector.broadcast %14 : vector<1x1x1x128xf32> to vector<1x4x28x128xf32>
    %31 = arith.mulf %29, %30 : vector<1x4x28x128xf32>
    %32 = arith.addf %28, %31 : vector<1x4x28x128xf32>
    %c0_6 = arith.constant 0 : index
    %c0_7 = arith.constant 0 : index
    %c1 = arith.constant 1 : index
    %c0_8 = arith.constant 0 : index
    %33 = vector.load %arg1[%c0_6, %c0_7, %c1, %c0_8] : memref<1x30x30x128xf32, #tpu.memory_space<vmem>>, vector<1x6x28x128xf32>
    %34 = vector.extract_strided_slice %33 {offsets = [0, 0, 0, 0], sizes = [1, 4, 28, 128], strides = [1, 1, 1, 1]} : vector<1x6x28x128xf32> to vector<1x4x28x128xf32>
    %35 = vector.broadcast %4 : vector<1x1x1x128xf32> to vector<1x4x28x128xf32>
    %36 = arith.mulf %34, %35 : vector<1x4x28x128xf32>
    %37 = arith.addf %32, %36 : vector<1x4x28x128xf32>
    %38 = vector.extract_strided_slice %33 {offsets = [0, 1, 0, 0], sizes = [1, 4, 28, 128], strides = [1, 1, 1, 1]} : vector<1x6x28x128xf32> to vector<1x4x28x128xf32>
    %39 = vector.broadcast %10 : vector<1x1x1x128xf32> to vector<1x4x28x128xf32>
    %40 = arith.mulf %38, %39 : vector<1x4x28x128xf32>
    %41 = arith.addf %37, %40 : vector<1x4x28x128xf32>
    %42 = vector.extract_strided_slice %33 {offsets = [0, 2, 0, 0], sizes = [1, 4, 28, 128], strides = [1, 1, 1, 1]} : vector<1x6x28x128xf32> to vector<1x4x28x128xf32>
    %43 = vector.broadcast %16 : vector<1x1x1x128xf32> to vector<1x4x28x128xf32>
    %44 = arith.mulf %42, %43 : vector<1x4x28x128xf32>
    %45 = arith.addf %41, %44 : vector<1x4x28x128xf32>
    %c0_9 = arith.constant 0 : index
    %c0_10 = arith.constant 0 : index
    %c2 = arith.constant 2 : index
    %c0_11 = arith.constant 0 : index
    %46 = vector.load %arg1[%c0_9, %c0_10, %c2, %c0_11] : memref<1x30x30x128xf32, #tpu.memory_space<vmem>>, vector<1x6x28x128xf32>
    %47 = vector.extract_strided_slice %46 {offsets = [0, 0, 0, 0], sizes = [1, 4, 28, 128], strides = [1, 1, 1, 1]} : vector<1x6x28x128xf32> to vector<1x4x28x128xf32>
    %48 = vector.broadcast %6 : vector<1x1x1x128xf32> to vector<1x4x28x128xf32>
    %49 = arith.mulf %47, %48 : vector<1x4x28x128xf32>
    %50 = arith.addf %45, %49 : vector<1x4x28x128xf32>
    %51 = vector.extract_strided_slice %46 {offsets = [0, 1, 0, 0], sizes = [1, 4, 28, 128], strides = [1, 1, 1, 1]} : vector<1x6x28x128xf32> to vector<1x4x28x128xf32>
    %52 = vector.broadcast %12 : vector<1x1x1x128xf32> to vector<1x4x28x128xf32>
    %53 = arith.mulf %51, %52 : vector<1x4x28x128xf32>
    %54 = arith.addf %50, %53 : vector<1x4x28x128xf32>
    %55 = vector.extract_strided_slice %46 {offsets = [0, 2, 0, 0], sizes = [1, 4, 28, 128], strides = [1, 1, 1, 1]} : vector<1x6x28x128xf32> to vector<1x4x28x128xf32>
    %56 = vector.broadcast %18 : vector<1x1x1x128xf32> to vector<1x4x28x128xf32>
    %57 = arith.mulf %55, %56 : vector<1x4x28x128xf32>
    %58 = arith.addf %54, %57 : vector<1x4x28x128xf32>
    %c0_12 = arith.constant 0 : index
    %c0_13 = arith.constant 0 : index
    %c0_14 = arith.constant 0 : index
    %c0_15 = arith.constant 0 : index
    %59 = vector.load %arg5[%c0_12, %c0_13, %c0_14, %c0_15] : memref<1x28x28x128xf32, #tpu.memory_space<vmem>>, vector<1x4x28x128xf32>
    tpu.vector_store %arg5[%c0_12, %c0_13, %c0_14, %c0_15], %58 {strides = array<i32>} : memref<1x28x28x128xf32, #tpu.memory_space<vmem>>, vector<1x4x28x128xf32>,
    %60 = vector.shape_cast %58 : vector<1x4x28x128xf32> to vector<112x128xf32>
    %cst_16 = arith.constant dense<0.000000e+00> : vector<128xf32>
    %61 = vector.multi_reduction <add>, %60, %cst_16 [0] : vector<112x128xf32> to vector<128xf32>
    %62 = vector.shape_cast %61 : vector<128xf32> to vector<1x128xf32>
    %63 = arith.addf %19, %62 : vector<1x128xf32>
    %64 = arith.mulf %60, %60 : vector<112x128xf32>
    %cst_17 = arith.constant dense<0.000000e+00> : vector<128xf32>
    %65 = vector.multi_reduction <add>, %64, %cst_17 [0] : vector<112x128xf32> to vector<128xf32>
    %66 = vector.shape_cast %65 : vector<128xf32> to vector<1x128xf32>
    %67 = arith.addf %20, %66 : vector<1x128xf32>
    %c0_18 = arith.constant 0 : index
    %c4 = arith.constant 4 : index
    %c0_19 = arith.constant 0 : index
    %c0_20 = arith.constant 0 : index
    %68 = vector.load %arg1[%c0_18, %c4, %c0_19, %c0_20] : memref<1x30x30x128xf32, #tpu.memory_space<vmem>>, vector<1x6x28x128xf32>
    %69 = vector.extract_strided_slice %68 {offsets = [0, 0, 0, 0], sizes = [1, 4, 28, 128], strides = [1, 1, 1, 1]} : vector<1x6x28x128xf32> to vector<1x4x28x128xf32>
    %70 = vector.broadcast %2 : vector<1x1x1x128xf32> to vector<1x4x28x128xf32>
    %71 = arith.mulf %69, %70 : vector<1x4x28x128xf32>
    %72 = vector.extract_strided_slice %68 {offsets = [0, 1, 0, 0], sizes = [1, 4, 28, 128], strides = [1, 1, 1, 1]} : vector<1x6x28x128xf32> to vector<1x4x28x128xf32>
    %73 = vector.broadcast %8 : vector<1x1x1x128xf32> to vector<1x4x28x128xf32>
    %74 = arith.mulf %72, %73 : vector<1x4x28x128xf32>
    %75 = arith.addf %71, %74 : vector<1x4x28x128xf32>
    %76 = vector.extract_strided_slice %68 {offsets = [0, 2, 0, 0], sizes = [1, 4, 28, 128], strides = [1, 1, 1, 1]} : vector<1x6x28x128xf32> to vector<1x4x28x128xf32>
    %77 = vector.broadcast %14 : vector<1x1x1x128xf32> to vector<1x4x28x128xf32>
    %78 = arith.mulf %76, %77 : vector<1x4x28x128xf32>
    %79 = arith.addf %75, %78 : vector<1x4x28x128xf32>
    %c0_21 = arith.constant 0 : index
    %c4_22 = arith.constant 4 : index
    %c1_23 = arith.constant 1 : index
    %c0_24 = arith.constant 0 : index
    %80 = vector.load %arg1[%c0_21, %c4_22, %c1_23, %c0_24] : memref<1x30x30x128xf32, #tpu.memory_space<vmem>>, vector<1x6x28x128xf32>
    %81 = vector.extract_strided_slice %80 {offsets = [0, 0, 0, 0], sizes = [1, 4, 28, 128], strides = [1, 1, 1, 1]} : vector<1x6x28x128xf32> to vector<1x4x28x128xf32>
    %82 = vector.broadcast %4 : vector<1x1x1x128xf32> to vector<1x4x28x128xf32>
    %83 = arith.mulf %81, %82 : vector<1x4x28x128xf32>
    %84 = arith.addf %79, %83 : vector<1x4x28x128xf32>
    %85 = vector.extract_strided_slice %80 {offsets = [0, 1, 0, 0], sizes = [1, 4, 28, 128], strides = [1, 1, 1, 1]} : vector<1x6x28x128xf32> to vector<1x4x28x128xf32>
    %86 = vector.broadcast %10 : vector<1x1x1x128xf32> to vector<1x4x28x128xf32>
    %87 = arith.mulf %85, %86 : vector<1x4x28x128xf32>
    %88 = arith.addf %84, %87 : vector<1x4x28x128xf32>
    %89 = vector.extract_strided_slice %80 {offsets = [0, 2, 0, 0], sizes = [1, 4, 28, 128], strides = [1, 1, 1, 1]} : vector<1x6x28x128xf32> to vector<1x4x28x128xf32>
    %90 = vector.broadcast %16 : vector<1x1x1x128xf32> to vector<1x4x28x128xf32>
    %91 = arith.mulf %89, %90 : vector<1x4x28x128xf32>
    %92 = arith.addf %88, %91 : vector<1x4x28x128xf32>
    %c0_25 = arith.constant 0 : index
    %c4_26 = arith.constant 4 : index
    %c2_27 = arith.constant 2 : index
    %c0_28 = arith.constant 0 : index
    %93 = vector.load %arg1[%c0_25, %c4_26, %c2_27, %c0_28] : memref<1x30x30x128xf32, #tpu.memory_space<vmem>>, vector<1x6x28x128xf32>
    %94 = vector.extract_strided_slice %93 {offsets = [0, 0, 0, 0], sizes = [1, 4, 28, 128], strides = [1, 1, 1, 1]} : vector<1x6x28x128xf32> to vector<1x4x28x128xf32>
    %95 = vector.broadcast %6 : vector<1x1x1x128xf32> to vector<1x4x28x128xf32>
    %96 = arith.mulf %94, %95 : vector<1x4x28x128xf32>
    %97 = arith.addf %92, %96 : vector<1x4x28x128xf32>
    %98 = vector.extract_strided_slice %93 {offsets = [0, 1, 0, 0], sizes = [1, 4, 28, 128], strides = [1, 1, 1, 1]} : vector<1x6x28x128xf32> to vector<1x4x28x128xf32>
    %99 = vector.broadcast %12 : vector<1x1x1x128xf32> to vector<1x4x28x128xf32>
    %100 = arith.mulf %98, %99 : vector<1x4x28x128xf32>
    %101 = arith.addf %97, %100 : vector<1x4x28x128xf32>
    %102 = vector.extract_strided_slice %93 {offsets = [0, 2, 0, 0], sizes = [1, 4, 28, 128], strides = [1, 1, 1, 1]} : vector<1x6x28x128xf32> to vector<1x4x28x128xf32>
    %103 = vector.broadcast %18 : vector<1x1x1x128xf32> to vector<1x4x28x128xf32>
    %104 = arith.mulf %102, %103 : vector<1x4x28x128xf32>
    %105 = arith.addf %101, %104 : vector<1x4x28x128xf32>
    %c0_29 = arith.constant 0 : index
    %c4_30 = arith.constant 4 : index
    %c0_31 = arith.constant 0 : index
    %c0_32 = arith.constant 0 : index
    %106 = vector.load %arg5[%c0_29, %c4_30, %c0_31, %c0_32] : memref<1x28x28x128xf32, #tpu.memory_space<vmem>>, vector<1x4x28x128xf32>
    tpu.vector_store %arg5[%c0_29, %c4_30, %c0_31, %c0_32], %105 {strides = array<i32>} : memref<1x28x28x128xf32, #tpu.memory_space<vmem>>, vector<1x4x28x128xf32>,
    %107 = vector.shape_cast %105 : vector<1x4x28x128xf32> to vector<112x128xf32>
    %cst_33 = arith.constant dense<0.000000e+00> : vector<128xf32>
    %108 = vector.multi_reduction <add>, %107, %cst_33 [0] : vector<112x128xf32> to vector<128xf32>
    %109 = vector.shape_cast %108 : vector<128xf32> to vector<1x128xf32>
    %110 = arith.addf %63, %109 : vector<1x128xf32>
    %111 = arith.mulf %107, %107 : vector<112x128xf32>
    %cst_34 = arith.constant dense<0.000000e+00> : vector<128xf32>
    %112 = vector.multi_reduction <add>, %111, %cst_34 [0] : vector<112x128xf32> to vector<128xf32>
    %113 = vector.shape_cast %112 : vector<128xf32> to vector<1x128xf32>
    %114 = arith.addf %67, %113 : vector<1x128xf32>
    %c0_35 = arith.constant 0 : index
    %c8 = arith.constant 8 : index
    %c0_36 = arith.constant 0 : index
    %c0_37 = arith.constant 0 : index
    %115 = vector.load %arg1[%c0_35, %c8, %c0_36, %c0_37] : memref<1x30x30x128xf32, #tpu.memory_space<vmem>>, vector<1x6x28x128xf32>
    %116 = vector.extract_strided_slice %115 {offsets = [0, 0, 0, 0], sizes = [1, 4, 28, 128], strides = [1, 1, 1, 1]} : vector<1x6x28x128xf32> to vector<1x4x28x128xf32>
    %117 = vector.broadcast %2 : vector<1x1x1x128xf32> to vector<1x4x28x128xf32>
    %118 = arith.mulf %116, %117 : vector<1x4x28x128xf32>
    %119 = vector.extract_strided_slice %115 {offsets = [0, 1, 0, 0], sizes = [1, 4, 28, 128], strides = [1, 1, 1, 1]} : vector<1x6x28x128xf32> to vector<1x4x28x128xf32>
    %120 = vector.broadcast %8 : vector<1x1x1x128xf32> to vector<1x4x28x128xf32>
    %121 = arith.mulf %119, %120 : vector<1x4x28x128xf32>
    %122 = arith.addf %118, %121 : vector<1x4x28x128xf32>
    %123 = vector.extract_strided_slice %115 {offsets = [0, 2, 0, 0], sizes = [1, 4, 28, 128], strides = [1, 1, 1, 1]} : vector<1x6x28x128xf32> to vector<1x4x28x128xf32>
    %124 = vector.broadcast %14 : vector<1x1x1x128xf32> to vector<1x4x28x128xf32>
    %125 = arith.mulf %123, %124 : vector<1x4x28x128xf32>
    %126 = arith.addf %122, %125 : vector<1x4x28x128xf32>
    %c0_38 = arith.constant 0 : index
    %c8_39 = arith.constant 8 : index
    %c1_40 = arith.constant 1 : index
    %c0_41 = arith.constant 0 : index
    %127 = vector.load %arg1[%c0_38, %c8_39, %c1_40, %c0_41] : memref<1x30x30x128xf32, #tpu.memory_space<vmem>>, vector<1x6x28x128xf32>
    %128 = vector.extract_strided_slice %127 {offsets = [0, 0, 0, 0], sizes = [1, 4, 28, 128], strides = [1, 1, 1, 1]} : vector<1x6x28x128xf32> to vector<1x4x28x128xf32>
    %129 = vector.broadcast %4 : vector<1x1x1x128xf32> to vector<1x4x28x128xf32>
    %130 = arith.mulf %128, %129 : vector<1x4x28x128xf32>
    %131 = arith.addf %126, %130 : vector<1x4x28x128xf32>
    %132 = vector.extract_strided_slice %127 {offsets = [0, 1, 0, 0], sizes = [1, 4, 28, 128], strides = [1, 1, 1, 1]} : vector<1x6x28x128xf32> to vector<1x4x28x128xf32>
    %133 = vector.broadcast %10 : vector<1x1x1x128xf32> to vector<1x4x28x128xf32>
    %134 = arith.mulf %132, %133 : vector<1x4x28x128xf32>
    %135 = arith.addf %131, %134 : vector<1x4x28x128xf32>
    %136 = vector.extract_strided_slice %127 {offsets = [0, 2, 0, 0], sizes = [1, 4, 28, 128], strides = [1, 1, 1, 1]} : vector<1x6x28x128xf32> to vector<1x4x28x128xf32>
    %137 = vector.broadcast %16 : vector<1x1x1x128xf32> to vector<1x4x28x128xf32>
    %138 = arith.mulf %136, %137 : vector<1x4x28x128xf32>
    %139 = arith.addf %135, %138 : vector<1x4x28x128xf32>
    %c0_42 = arith.constant 0 : index
    %c8_43 = arith.constant 8 : index
    %c2_44 = arith.constant 2 : index
    %c0_45 = arith.constant 0 : index
    %140 = vector.load %arg1[%c0_42, %c8_43, %c2_44, %c0_45] : memref<1x30x30x128xf32, #tpu.memory_space<vmem>>, vector<1x6x28x128xf32>
    %141 = vector.extract_strided_slice %140 {offsets = [0, 0, 0, 0], sizes = [1, 4, 28, 128], strides = [1, 1, 1, 1]} : vector<1x6x28x128xf32> to vector<1x4x28x128xf32>
    %142 = vector.broadcast %6 : vector<1x1x1x128xf32> to vector<1x4x28x128xf32>
    %143 = arith.mulf %141, %142 : vector<1x4x28x128xf32>
    %144 = arith.addf %139, %143 : vector<1x4x28x128xf32>
    %145 = vector.extract_strided_slice %140 {offsets = [0, 1, 0, 0], sizes = [1, 4, 28, 128], strides = [1, 1, 1, 1]} : vector<1x6x28x128xf32> to vector<1x4x28x128xf32>
    %146 = vector.broadcast %12 : vector<1x1x1x128xf32> to vector<1x4x28x128xf32>
    %147 = arith.mulf %145, %146 : vector<1x4x28x128xf32>
    %148 = arith.addf %144, %147 : vector<1x4x28x128xf32>
    %149 = vector.extract_strided_slice %140 {offsets = [0, 2, 0, 0], sizes = [1, 4, 28, 128], strides = [1, 1, 1, 1]} : vector<1x6x28x128xf32> to vector<1x4x28x128xf32>
    %150 = vector.broadcast %18 : vector<1x1x1x128xf32> to vector<1x4x28x128xf32>
    %151 = arith.mulf %149, %150 : vector<1x4x28x128xf32>
    %152 = arith.addf %148, %151 : vector<1x4x28x128xf32>
    %c0_46 = arith.constant 0 : index
    %c8_47 = arith.constant 8 : index
    %c0_48 = arith.constant 0 : index
    %c0_49 = arith.constant 0 : index
    %153 = vector.load %arg5[%c0_46, %c8_47, %c0_48, %c0_49] : memref<1x28x28x128xf32, #tpu.memory_space<vmem>>, vector<1x4x28x128xf32>
    tpu.vector_store %arg5[%c0_46, %c8_47, %c0_48, %c0_49], %152 {strides = array<i32>} : memref<1x28x28x128xf32, #tpu.memory_space<vmem>>, vector<1x4x28x128xf32>,
    %154 = vector.shape_cast %152 : vector<1x4x28x128xf32> to vector<112x128xf32>
    %cst_50 = arith.constant dense<0.000000e+00> : vector<128xf32>
    %155 = vector.multi_reduction <add>, %154, %cst_50 [0] : vector<112x128xf32> to vector<128xf32>
    %156 = vector.shape_cast %155 : vector<128xf32> to vector<1x128xf32>
    %157 = arith.addf %110, %156 : vector<1x128xf32>
    %158 = arith.mulf %154, %154 : vector<112x128xf32>
    %cst_51 = arith.constant dense<0.000000e+00> : vector<128xf32>
    %159 = vector.multi_reduction <add>, %158, %cst_51 [0] : vector<112x128xf32> to vector<128xf32>
    %160 = vector.shape_cast %159 : vector<128xf32> to vector<1x128xf32>
    %161 = arith.addf %114, %160 : vector<1x128xf32>
    %c0_52 = arith.constant 0 : index
    %c12 = arith.constant 12 : index
    %c0_53 = arith.constant 0 : index
    %c0_54 = arith.constant 0 : index
    %162 = vector.load %arg1[%c0_52, %c12, %c0_53, %c0_54] : memref<1x30x30x128xf32, #tpu.memory_space<vmem>>, vector<1x6x28x128xf32>
    %163 = vector.extract_strided_slice %162 {offsets = [0, 0, 0, 0], sizes = [1, 4, 28, 128], strides = [1, 1, 1, 1]} : vector<1x6x28x128xf32> to vector<1x4x28x128xf32>
    %164 = vector.broadcast %2 : vector<1x1x1x128xf32> to vector<1x4x28x128xf32>
    %165 = arith.mulf %163, %164 : vector<1x4x28x128xf32>
    %166 = vector.extract_strided_slice %162 {offsets = [0, 1, 0, 0], sizes = [1, 4, 28, 128], strides = [1, 1, 1, 1]} : vector<1x6x28x128xf32> to vector<1x4x28x128xf32>
    %167 = vector.broadcast %8 : vector<1x1x1x128xf32> to vector<1x4x28x128xf32>
    %168 = arith.mulf %166, %167 : vector<1x4x28x128xf32>
    %169 = arith.addf %165, %168 : vector<1x4x28x128xf32>
    %170 = vector.extract_strided_slice %162 {offsets = [0, 2, 0, 0], sizes = [1, 4, 28, 128], strides = [1, 1, 1, 1]} : vector<1x6x28x128xf32> to vector<1x4x28x128xf32>
    %171 = vector.broadcast %14 : vector<1x1x1x128xf32> to vector<1x4x28x128xf32>
    %172 = arith.mulf %170, %171 : vector<1x4x28x128xf32>
    %173 = arith.addf %169, %172 : vector<1x4x28x128xf32>
    %c0_55 = arith.constant 0 : index
    %c12_56 = arith.constant 12 : index
    %c1_57 = arith.constant 1 : index
    %c0_58 = arith.constant 0 : index
    %174 = vector.load %arg1[%c0_55, %c12_56, %c1_57, %c0_58] : memref<1x30x30x128xf32, #tpu.memory_space<vmem>>, vector<1x6x28x128xf32>
    %175 = vector.extract_strided_slice %174 {offsets = [0, 0, 0, 0], sizes = [1, 4, 28, 128], strides = [1, 1, 1, 1]} : vector<1x6x28x128xf32> to vector<1x4x28x128xf32>
    %176 = vector.broadcast %4 : vector<1x1x1x128xf32> to vector<1x4x28x128xf32>
    %177 = arith.mulf %175, %176 : vector<1x4x28x128xf32>
    %178 = arith.addf %173, %177 : vector<1x4x28x128xf32>
    %179 = vector.extract_strided_slice %174 {offsets = [0, 1, 0, 0], sizes = [1, 4, 28, 128], strides = [1, 1, 1, 1]} : vector<1x6x28x128xf32> to vector<1x4x28x128xf32>
    %180 = vector.broadcast %10 : vector<1x1x1x128xf32> to vector<1x4x28x128xf32>
    %181 = arith.mulf %179, %180 : vector<1x4x28x128xf32>
    %182 = arith.addf %178, %181 : vector<1x4x28x128xf32>
    %183 = vector.extract_strided_slice %174 {offsets = [0, 2, 0, 0], sizes = [1, 4, 28, 128], strides = [1, 1, 1, 1]} : vector<1x6x28x128xf32> to vector<1x4x28x128xf32>
    %184 = vector.broadcast %16 : vector<1x1x1x128xf32> to vector<1x4x28x128xf32>
    %185 = arith.mulf %183, %184 : vector<1x4x28x128xf32>
    %186 = arith.addf %182, %185 : vector<1x4x28x128xf32>
    %c0_59 = arith.constant 0 : index
    %c12_60 = arith.constant 12 : index
    %c2_61 = arith.constant 2 : index
    %c0_62 = arith.constant 0 : index
    %187 = vector.load %arg1[%c0_59, %c12_60, %c2_61, %c0_62] : memref<1x30x30x128xf32, #tpu.memory_space<vmem>>, vector<1x6x28x128xf32>
    %188 = vector.extract_strided_slice %187 {offsets = [0, 0, 0, 0], sizes = [1, 4, 28, 128], strides = [1, 1, 1, 1]} : vector<1x6x28x128xf32> to vector<1x4x28x128xf32>
    %189 = vector.broadcast %6 : vector<1x1x1x128xf32> to vector<1x4x28x128xf32>
    %190 = arith.mulf %188, %189 : vector<1x4x28x128xf32>
    %191 = arith.addf %186, %190 : vector<1x4x28x128xf32>
    %192 = vector.extract_strided_slice %187 {offsets = [0, 1, 0, 0], sizes = [1, 4, 28, 128], strides = [1, 1, 1, 1]} : vector<1x6x28x128xf32> to vector<1x4x28x128xf32>
    %193 = vector.broadcast %12 : vector<1x1x1x128xf32> to vector<1x4x28x128xf32>
    %194 = arith.mulf %192, %193 : vector<1x4x28x128xf32>
    %195 = arith.addf %191, %194 : vector<1x4x28x128xf32>
    %196 = vector.extract_strided_slice %187 {offsets = [0, 2, 0, 0], sizes = [1, 4, 28, 128], strides = [1, 1, 1, 1]} : vector<1x6x28x128xf32> to vector<1x4x28x128xf32>
    %197 = vector.broadcast %18 : vector<1x1x1x128xf32> to vector<1x4x28x128xf32>
    %198 = arith.mulf %196, %197 : vector<1x4x28x128xf32>
    %199 = arith.addf %195, %198 : vector<1x4x28x128xf32>
    %c0_63 = arith.constant 0 : index
    %c12_64 = arith.constant 12 : index
    %c0_65 = arith.constant 0 : index
    %c0_66 = arith.constant 0 : index
    %200 = vector.load %arg5[%c0_63, %c12_64, %c0_65, %c0_66] : memref<1x28x28x128xf32, #tpu.memory_space<vmem>>, vector<1x4x28x128xf32>
    tpu.vector_store %arg5[%c0_63, %c12_64, %c0_65, %c0_66], %199 {strides = array<i32>} : memref<1x28x28x128xf32, #tpu.memory_space<vmem>>, vector<1x4x28x128xf32>,
    %201 = vector.shape_cast %199 : vector<1x4x28x128xf32> to vector<112x128xf32>
    %cst_67 = arith.constant dense<0.000000e+00> : vector<128xf32>
    %202 = vector.multi_reduction <add>, %201, %cst_67 [0] : vector<112x128xf32> to vector<128xf32>
    %203 = vector.shape_cast %202 : vector<128xf32> to vector<1x128xf32>
    %204 = arith.addf %157, %203 : vector<1x128xf32>
    %205 = arith.mulf %201, %201 : vector<112x128xf32>
    %cst_68 = arith.constant dense<0.000000e+00> : vector<128xf32>
    %206 = vector.multi_reduction <add>, %205, %cst_68 [0] : vector<112x128xf32> to vector<128xf32>
    %207 = vector.shape_cast %206 : vector<128xf32> to vector<1x128xf32>
    %208 = arith.addf %161, %207 : vector<1x128xf32>
    %c0_69 = arith.constant 0 : index
    %c16 = arith.constant 16 : index
    %c0_70 = arith.constant 0 : index
    %c0_71 = arith.constant 0 : index
    %209 = vector.load %arg1[%c0_69, %c16, %c0_70, %c0_71] : memref<1x30x30x128xf32, #tpu.memory_space<vmem>>, vector<1x6x28x128xf32>
    %210 = vector.extract_strided_slice %209 {offsets = [0, 0, 0, 0], sizes = [1, 4, 28, 128], strides = [1, 1, 1, 1]} : vector<1x6x28x128xf32> to vector<1x4x28x128xf32>
    %211 = vector.broadcast %2 : vector<1x1x1x128xf32> to vector<1x4x28x128xf32>
    %212 = arith.mulf %210, %211 : vector<1x4x28x128xf32>
    %213 = vector.extract_strided_slice %209 {offsets = [0, 1, 0, 0], sizes = [1, 4, 28, 128], strides = [1, 1, 1, 1]} : vector<1x6x28x128xf32> to vector<1x4x28x128xf32>
    %214 = vector.broadcast %8 : vector<1x1x1x128xf32> to vector<1x4x28x128xf32>
    %215 = arith.mulf %213, %214 : vector<1x4x28x128xf32>
    %216 = arith.addf %212, %215 : vector<1x4x28x128xf32>
    %217 = vector.extract_strided_slice %209 {offsets = [0, 2, 0, 0], sizes = [1, 4, 28, 128], strides = [1, 1, 1, 1]} : vector<1x6x28x128xf32> to vector<1x4x28x128xf32>
    %218 = vector.broadcast %14 : vector<1x1x1x128xf32> to vector<1x4x28x128xf32>
    %219 = arith.mulf %217, %218 : vector<1x4x28x128xf32>
    %220 = arith.addf %216, %219 : vector<1x4x28x128xf32>
    %c0_72 = arith.constant 0 : index
    %c16_73 = arith.constant 16 : index
    %c1_74 = arith.constant 1 : index
    %c0_75 = arith.constant 0 : index
    %221 = vector.load %arg1[%c0_72, %c16_73, %c1_74, %c0_75] : memref<1x30x30x128xf32, #tpu.memory_space<vmem>>, vector<1x6x28x128xf32>
    %222 = vector.extract_strided_slice %221 {offsets = [0, 0, 0, 0], sizes = [1, 4, 28, 128], strides = [1, 1, 1, 1]} : vector<1x6x28x128xf32> to vector<1x4x28x128xf32>
    %223 = vector.broadcast %4 : vector<1x1x1x128xf32> to vector<1x4x28x128xf32>
    %224 = arith.mulf %222, %223 : vector<1x4x28x128xf32>
    %225 = arith.addf %220, %224 : vector<1x4x28x128xf32>
    %226 = vector.extract_strided_slice %221 {offsets = [0, 1, 0, 0], sizes = [1, 4, 28, 128], strides = [1, 1, 1, 1]} : vector<1x6x28x128xf32> to vector<1x4x28x128xf32>
    %227 = vector.broadcast %10 : vector<1x1x1x128xf32> to vector<1x4x28x128xf32>
    %228 = arith.mulf %226, %227 : vector<1x4x28x128xf32>
    %229 = arith.addf %225, %228 : vector<1x4x28x128xf32>
    %230 = vector.extract_strided_slice %221 {offsets = [0, 2, 0, 0], sizes = [1, 4, 28, 128], strides = [1, 1, 1, 1]} : vector<1x6x28x128xf32> to vector<1x4x28x128xf32>
    %231 = vector.broadcast %16 : vector<1x1x1x128xf32> to vector<1x4x28x128xf32>
    %232 = arith.mulf %230, %231 : vector<1x4x28x128xf32>
    %233 = arith.addf %229, %232 : vector<1x4x28x128xf32>
    %c0_76 = arith.constant 0 : index
    %c16_77 = arith.constant 16 : index
    %c2_78 = arith.constant 2 : index
    %c0_79 = arith.constant 0 : index
    %234 = vector.load %arg1[%c0_76, %c16_77, %c2_78, %c0_79] : memref<1x30x30x128xf32, #tpu.memory_space<vmem>>, vector<1x6x28x128xf32>
    %235 = vector.extract_strided_slice %234 {offsets = [0, 0, 0, 0], sizes = [1, 4, 28, 128], strides = [1, 1, 1, 1]} : vector<1x6x28x128xf32> to vector<1x4x28x128xf32>
    %236 = vector.broadcast %6 : vector<1x1x1x128xf32> to vector<1x4x28x128xf32>
    %237 = arith.mulf %235, %236 : vector<1x4x28x128xf32>
    %238 = arith.addf %233, %237 : vector<1x4x28x128xf32>
    %239 = vector.extract_strided_slice %234 {offsets = [0, 1, 0, 0], sizes = [1, 4, 28, 128], strides = [1, 1, 1, 1]} : vector<1x6x28x128xf32> to vector<1x4x28x128xf32>
    %240 = vector.broadcast %12 : vector<1x1x1x128xf32> to vector<1x4x28x128xf32>
    %241 = arith.mulf %239, %240 : vector<1x4x28x128xf32>
    %242 = arith.addf %238, %241 : vector<1x4x28x128xf32>
    %243 = vector.extract_strided_slice %234 {offsets = [0, 2, 0, 0], sizes = [1, 4, 28, 128], strides = [1, 1, 1, 1]} : vector<1x6x28x128xf32> to vector<1x4x28x128xf32>
    %244 = vector.broadcast %18 : vector<1x1x1x128xf32> to vector<1x4x28x128xf32>
    %245 = arith.mulf %243, %244 : vector<1x4x28x128xf32>
    %246 = arith.addf %242, %245 : vector<1x4x28x128xf32>
    %c0_80 = arith.constant 0 : index
    %c16_81 = arith.constant 16 : index
    %c0_82 = arith.constant 0 : index
    %c0_83 = arith.constant 0 : index
    %247 = vector.load %arg5[%c0_80, %c16_81, %c0_82, %c0_83] : memref<1x28x28x128xf32, #tpu.memory_space<vmem>>, vector<1x4x28x128xf32>
    tpu.vector_store %arg5[%c0_80, %c16_81, %c0_82, %c0_83], %246 {strides = array<i32>} : memref<1x28x28x128xf32, #tpu.memory_space<vmem>>, vector<1x4x28x128xf32>,
    %248 = vector.shape_cast %246 : vector<1x4x28x128xf32> to vector<112x128xf32>
    %cst_84 = arith.constant dense<0.000000e+00> : vector<128xf32>
    %249 = vector.multi_reduction <add>, %248, %cst_84 [0] : vector<112x128xf32> to vector<128xf32>
    %250 = vector.shape_cast %249 : vector<128xf32> to vector<1x128xf32>
    %251 = arith.addf %204, %250 : vector<1x128xf32>
    %252 = arith.mulf %248, %248 : vector<112x128xf32>
    %cst_85 = arith.constant dense<0.000000e+00> : vector<128xf32>
    %253 = vector.multi_reduction <add>, %252, %cst_85 [0] : vector<112x128xf32> to vector<128xf32>
    %254 = vector.shape_cast %253 : vector<128xf32> to vector<1x128xf32>
    %255 = arith.addf %208, %254 : vector<1x128xf32>
    %c0_86 = arith.constant 0 : index
    %c20 = arith.constant 20 : index
    %c0_87 = arith.constant 0 : index
    %c0_88 = arith.constant 0 : index
    %256 = vector.load %arg1[%c0_86, %c20, %c0_87, %c0_88] : memref<1x30x30x128xf32, #tpu.memory_space<vmem>>, vector<1x6x28x128xf32>
    %257 = vector.extract_strided_slice %256 {offsets = [0, 0, 0, 0], sizes = [1, 4, 28, 128], strides = [1, 1, 1, 1]} : vector<1x6x28x128xf32> to vector<1x4x28x128xf32>
    %258 = vector.broadcast %2 : vector<1x1x1x128xf32> to vector<1x4x28x128xf32>
    %259 = arith.mulf %257, %258 : vector<1x4x28x128xf32>
    %260 = vector.extract_strided_slice %256 {offsets = [0, 1, 0, 0], sizes = [1, 4, 28, 128], strides = [1, 1, 1, 1]} : vector<1x6x28x128xf32> to vector<1x4x28x128xf32>
    %261 = vector.broadcast %8 : vector<1x1x1x128xf32> to vector<1x4x28x128xf32>
    %262 = arith.mulf %260, %261 : vector<1x4x28x128xf32>
    %263 = arith.addf %259, %262 : vector<1x4x28x128xf32>
    %264 = vector.extract_strided_slice %256 {offsets = [0, 2, 0, 0], sizes = [1, 4, 28, 128], strides = [1, 1, 1, 1]} : vector<1x6x28x128xf32> to vector<1x4x28x128xf32>
    %265 = vector.broadcast %14 : vector<1x1x1x128xf32> to vector<1x4x28x128xf32>
    %266 = arith.mulf %264, %265 : vector<1x4x28x128xf32>
    %267 = arith.addf %263, %266 : vector<1x4x28x128xf32>
    %c0_89 = arith.constant 0 : index
    %c20_90 = arith.constant 20 : index
    %c1_91 = arith.constant 1 : index
    %c0_92 = arith.constant 0 : index
    %268 = vector.load %arg1[%c0_89, %c20_90, %c1_91, %c0_92] : memref<1x30x30x128xf32, #tpu.memory_space<vmem>>, vector<1x6x28x128xf32>
    %269 = vector.extract_strided_slice %268 {offsets = [0, 0, 0, 0], sizes = [1, 4, 28, 128], strides = [1, 1, 1, 1]} : vector<1x6x28x128xf32> to vector<1x4x28x128xf32>
    %270 = vector.broadcast %4 : vector<1x1x1x128xf32> to vector<1x4x28x128xf32>
    %271 = arith.mulf %269, %270 : vector<1x4x28x128xf32>
    %272 = arith.addf %267, %271 : vector<1x4x28x128xf32>
    %273 = vector.extract_strided_slice %268 {offsets = [0, 1, 0, 0], sizes = [1, 4, 28, 128], strides = [1, 1, 1, 1]} : vector<1x6x28x128xf32> to vector<1x4x28x128xf32>
    %274 = vector.broadcast %10 : vector<1x1x1x128xf32> to vector<1x4x28x128xf32>
    %275 = arith.mulf %273, %274 : vector<1x4x28x128xf32>
    %276 = arith.addf %272, %275 : vector<1x4x28x128xf32>
    %277 = vector.extract_strided_slice %268 {offsets = [0, 2, 0, 0], sizes = [1, 4, 28, 128], strides = [1, 1, 1, 1]} : vector<1x6x28x128xf32> to vector<1x4x28x128xf32>
    %278 = vector.broadcast %16 : vector<1x1x1x128xf32> to vector<1x4x28x128xf32>
    %279 = arith.mulf %277, %278 : vector<1x4x28x128xf32>
    %280 = arith.addf %276, %279 : vector<1x4x28x128xf32>
    %c0_93 = arith.constant 0 : index
    %c20_94 = arith.constant 20 : index
    %c2_95 = arith.constant 2 : index
    %c0_96 = arith.constant 0 : index
    %281 = vector.load %arg1[%c0_93, %c20_94, %c2_95, %c0_96] : memref<1x30x30x128xf32, #tpu.memory_space<vmem>>, vector<1x6x28x128xf32>
    %282 = vector.extract_strided_slice %281 {offsets = [0, 0, 0, 0], sizes = [1, 4, 28, 128], strides = [1, 1, 1, 1]} : vector<1x6x28x128xf32> to vector<1x4x28x128xf32>
    %283 = vector.broadcast %6 : vector<1x1x1x128xf32> to vector<1x4x28x128xf32>
    %284 = arith.mulf %282, %283 : vector<1x4x28x128xf32>
    %285 = arith.addf %280, %284 : vector<1x4x28x128xf32>
    %286 = vector.extract_strided_slice %281 {offsets = [0, 1, 0, 0], sizes = [1, 4, 28, 128], strides = [1, 1, 1, 1]} : vector<1x6x28x128xf32> to vector<1x4x28x128xf32>
    %287 = vector.broadcast %12 : vector<1x1x1x128xf32> to vector<1x4x28x128xf32>
    %288 = arith.mulf %286, %287 : vector<1x4x28x128xf32>
    %289 = arith.addf %285, %288 : vector<1x4x28x128xf32>
    %290 = vector.extract_strided_slice %281 {offsets = [0, 2, 0, 0], sizes = [1, 4, 28, 128], strides = [1, 1, 1, 1]} : vector<1x6x28x128xf32> to vector<1x4x28x128xf32>
    %291 = vector.broadcast %18 : vector<1x1x1x128xf32> to vector<1x4x28x128xf32>
    %292 = arith.mulf %290, %291 : vector<1x4x28x128xf32>
    %293 = arith.addf %289, %292 : vector<1x4x28x128xf32>
    %c0_97 = arith.constant 0 : index
    %c20_98 = arith.constant 20 : index
    %c0_99 = arith.constant 0 : index
    %c0_100 = arith.constant 0 : index
    %294 = vector.load %arg5[%c0_97, %c20_98, %c0_99, %c0_100] : memref<1x28x28x128xf32, #tpu.memory_space<vmem>>, vector<1x4x28x128xf32>
    tpu.vector_store %arg5[%c0_97, %c20_98, %c0_99, %c0_100], %293 {strides = array<i32>} : memref<1x28x28x128xf32, #tpu.memory_space<vmem>>, vector<1x4x28x128xf32>,
    %295 = vector.shape_cast %293 : vector<1x4x28x128xf32> to vector<112x128xf32>
    %cst_101 = arith.constant dense<0.000000e+00> : vector<128xf32>
    %296 = vector.multi_reduction <add>, %295, %cst_101 [0] : vector<112x128xf32> to vector<128xf32>
    %297 = vector.shape_cast %296 : vector<128xf32> to vector<1x128xf32>
    %298 = arith.addf %251, %297 : vector<1x128xf32>
    %299 = arith.mulf %295, %295 : vector<112x128xf32>
    %cst_102 = arith.constant dense<0.000000e+00> : vector<128xf32>
    %300 = vector.multi_reduction <add>, %299, %cst_102 [0] : vector<112x128xf32> to vector<128xf32>
    %301 = vector.shape_cast %300 : vector<128xf32> to vector<1x128xf32>
    %302 = arith.addf %255, %301 : vector<1x128xf32>
    %c0_103 = arith.constant 0 : index
    %c24 = arith.constant 24 : index
    %c0_104 = arith.constant 0 : index
    %c0_105 = arith.constant 0 : index
    %303 = vector.load %arg1[%c0_103, %c24, %c0_104, %c0_105] : memref<1x30x30x128xf32, #tpu.memory_space<vmem>>, vector<1x6x28x128xf32>
    %304 = vector.extract_strided_slice %303 {offsets = [0, 0, 0, 0], sizes = [1, 4, 28, 128], strides = [1, 1, 1, 1]} : vector<1x6x28x128xf32> to vector<1x4x28x128xf32>
    %305 = vector.broadcast %2 : vector<1x1x1x128xf32> to vector<1x4x28x128xf32>
    %306 = arith.mulf %304, %305 : vector<1x4x28x128xf32>
    %307 = vector.extract_strided_slice %303 {offsets = [0, 1, 0, 0], sizes = [1, 4, 28, 128], strides = [1, 1, 1, 1]} : vector<1x6x28x128xf32> to vector<1x4x28x128xf32>
    %308 = vector.broadcast %8 : vector<1x1x1x128xf32> to vector<1x4x28x128xf32>
    %309 = arith.mulf %307, %308 : vector<1x4x28x128xf32>
    %310 = arith.addf %306, %309 : vector<1x4x28x128xf32>
    %311 = vector.extract_strided_slice %303 {offsets = [0, 2, 0, 0], sizes = [1, 4, 28, 128], strides = [1, 1, 1, 1]} : vector<1x6x28x128xf32> to vector<1x4x28x128xf32>
    %312 = vector.broadcast %14 : vector<1x1x1x128xf32> to vector<1x4x28x128xf32>
    %313 = arith.mulf %311, %312 : vector<1x4x28x128xf32>
    %314 = arith.addf %310, %313 : vector<1x4x28x128xf32>
    %c0_106 = arith.constant 0 : index
    %c24_107 = arith.constant 24 : index
    %c1_108 = arith.constant 1 : index
    %c0_109 = arith.constant 0 : index
    %315 = vector.load %arg1[%c0_106, %c24_107, %c1_108, %c0_109] : memref<1x30x30x128xf32, #tpu.memory_space<vmem>>, vector<1x6x28x128xf32>
    %316 = vector.extract_strided_slice %315 {offsets = [0, 0, 0, 0], sizes = [1, 4, 28, 128], strides = [1, 1, 1, 1]} : vector<1x6x28x128xf32> to vector<1x4x28x128xf32>
    %317 = vector.broadcast %4 : vector<1x1x1x128xf32> to vector<1x4x28x128xf32>
    %318 = arith.mulf %316, %317 : vector<1x4x28x128xf32>
    %319 = arith.addf %314, %318 : vector<1x4x28x128xf32>
    %320 = vector.extract_strided_slice %315 {offsets = [0, 1, 0, 0], sizes = [1, 4, 28, 128], strides = [1, 1, 1, 1]} : vector<1x6x28x128xf32> to vector<1x4x28x128xf32>
    %321 = vector.broadcast %10 : vector<1x1x1x128xf32> to vector<1x4x28x128xf32>
    %322 = arith.mulf %320, %321 : vector<1x4x28x128xf32>
    %323 = arith.addf %319, %322 : vector<1x4x28x128xf32>
    %324 = vector.extract_strided_slice %315 {offsets = [0, 2, 0, 0], sizes = [1, 4, 28, 128], strides = [1, 1, 1, 1]} : vector<1x6x28x128xf32> to vector<1x4x28x128xf32>
    %325 = vector.broadcast %16 : vector<1x1x1x128xf32> to vector<1x4x28x128xf32>
    %326 = arith.mulf %324, %325 : vector<1x4x28x128xf32>
    %327 = arith.addf %323, %326 : vector<1x4x28x128xf32>
    %c0_110 = arith.constant 0 : index
    %c24_111 = arith.constant 24 : index
    %c2_112 = arith.constant 2 : index
    %c0_113 = arith.constant 0 : index
    %328 = vector.load %arg1[%c0_110, %c24_111, %c2_112, %c0_113] : memref<1x30x30x128xf32, #tpu.memory_space<vmem>>, vector<1x6x28x128xf32>
    %329 = vector.extract_strided_slice %328 {offsets = [0, 0, 0, 0], sizes = [1, 4, 28, 128], strides = [1, 1, 1, 1]} : vector<1x6x28x128xf32> to vector<1x4x28x128xf32>
    %330 = vector.broadcast %6 : vector<1x1x1x128xf32> to vector<1x4x28x128xf32>
    %331 = arith.mulf %329, %330 : vector<1x4x28x128xf32>
    %332 = arith.addf %327, %331 : vector<1x4x28x128xf32>
    %333 = vector.extract_strided_slice %328 {offsets = [0, 1, 0, 0], sizes = [1, 4, 28, 128], strides = [1, 1, 1, 1]} : vector<1x6x28x128xf32> to vector<1x4x28x128xf32>
    %334 = vector.broadcast %12 : vector<1x1x1x128xf32> to vector<1x4x28x128xf32>
    %335 = arith.mulf %333, %334 : vector<1x4x28x128xf32>
    %336 = arith.addf %332, %335 : vector<1x4x28x128xf32>
    %337 = vector.extract_strided_slice %328 {offsets = [0, 2, 0, 0], sizes = [1, 4, 28, 128], strides = [1, 1, 1, 1]} : vector<1x6x28x128xf32> to vector<1x4x28x128xf32>
    %338 = vector.broadcast %18 : vector<1x1x1x128xf32> to vector<1x4x28x128xf32>
    %339 = arith.mulf %337, %338 : vector<1x4x28x128xf32>
    %340 = arith.addf %336, %339 : vector<1x4x28x128xf32>
    %c0_114 = arith.constant 0 : index
    %c24_115 = arith.constant 24 : index
    %c0_116 = arith.constant 0 : index
    %c0_117 = arith.constant 0 : index
    %341 = vector.load %arg5[%c0_114, %c24_115, %c0_116, %c0_117] : memref<1x28x28x128xf32, #tpu.memory_space<vmem>>, vector<1x4x28x128xf32>
    tpu.vector_store %arg5[%c0_114, %c24_115, %c0_116, %c0_117], %340 {strides = array<i32>} : memref<1x28x28x128xf32, #tpu.memory_space<vmem>>, vector<1x4x28x128xf32>,
    %342 = vector.shape_cast %340 : vector<1x4x28x128xf32> to vector<112x128xf32>
    %cst_118 = arith.constant dense<0.000000e+00> : vector<128xf32>
    %343 = vector.multi_reduction <add>, %342, %cst_118 [0] : vector<112x128xf32> to vector<128xf32>
    %344 = vector.shape_cast %343 : vector<128xf32> to vector<1x128xf32>
    %345 = arith.addf %298, %344 : vector<1x128xf32>
    %346 = arith.mulf %342, %342 : vector<112x128xf32>
    %cst_119 = arith.constant dense<0.000000e+00> : vector<128xf32>
    %347 = vector.multi_reduction <add>, %346, %cst_119 [0] : vector<112x128xf32> to vector<128xf32>
    %348 = vector.shape_cast %347 : vector<128xf32> to vector<1x128xf32>
    %349 = arith.addf %302, %348 : vector<1x128xf32>
    %cst_120 = arith.constant 0.00127551018 : f32
    %350 = vector.broadcast %cst_120 : f32 to vector<1x128xf32>
    %351 = arith.mulf %345, %350 : vector<1x128xf32>
    %cst_121 = arith.constant 0.00127551018 : f32
    %352 = vector.broadcast %cst_121 : f32 to vector<1x128xf32>
    %353 = arith.mulf %349, %352 : vector<1x128xf32>
    %354 = arith.mulf %351, %351 : vector<1x128xf32>
    %355 = arith.subf %353, %354 : vector<1x128xf32>
    %cst_122 = arith.constant 0.000000e+00 : f32
    %356 = vector.broadcast %cst_122 : f32 to vector<1x128xf32>
    %357 = arith.maximumf %355, %356 : vector<1x128xf32>
    %cst_123 = arith.constant 1.000000e-03 : f32
    %358 = vector.broadcast %cst_123 : f32 to vector<1x128xf32>
    %359 = arith.addf %357, %358 : vector<1x128xf32>
    %360 = math.rsqrt %359 : vector<1x128xf32>
    %c0_124 = arith.constant 0 : index
    %c0_125 = arith.constant 0 : index
    %361 = vector.load %arg3[%c0_124, %c0_125] : memref<1x128xf32, #tpu.memory_space<vmem>>, vector<1x128xf32>
    %c0_126 = arith.constant 0 : index
    %c0_127 = arith.constant 0 : index
    %362 = vector.load %arg4[%c0_126, %c0_127] : memref<1x128xf32, #tpu.memory_space<vmem>>, vector<1x128xf32>
    %363 = arith.mulf %361, %360 : vector<1x128xf32>
    %364 = vector.shape_cast %363 : vector<1x128xf32> to vector<1x1x1x128xf32>
    %365 = arith.mulf %351, %361 : vector<1x128xf32>
    %366 = arith.mulf %365, %360 : vector<1x128xf32>
    %367 = arith.subf %362, %366 : vector<1x128xf32>
    %368 = vector.shape_cast %367 : vector<1x128xf32> to vector<1x1x1x128xf32>
    %c0_128 = arith.constant 0 : index
    %c0_129 = arith.constant 0 : index
    %c0_130 = arith.constant 0 : index
    %c0_131 = arith.constant 0 : index
    %369 = vector.load %arg5[%c0_128, %c0_129, %c0_130, %c0_131] : memref<1x28x28x128xf32, #tpu.memory_space<vmem>>, vector<1x14x28x128xf32>
    %370 = vector.broadcast %364 : vector<1x1x1x128xf32> to vector<1x14x28x128xf32>
    %371 = arith.mulf %369, %370 : vector<1x14x28x128xf32>
    %372 = vector.broadcast %368 : vector<1x1x1x128xf32> to vector<1x14x28x128xf32>
    %373 = arith.addf %371, %372 : vector<1x14x28x128xf32>
    %c0_132 = arith.constant 0 : index
    %c0_133 = arith.constant 0 : index
    %c0_134 = arith.constant 0 : index
    %c0_135 = arith.constant 0 : index
    %374 = vector.load %arg5[%c0_132, %c0_133, %c0_134, %c0_135] : memref<1x28x28x128xf32, #tpu.memory_space<vmem>>, vector<1x14x28x128xf32>
    tpu.vector_store %arg5[%c0_132, %c0_133, %c0_134, %c0_135], %373 {strides = array<i32>} : memref<1x28x28x128xf32, #tpu.memory_space<vmem>>, vector<1x14x28x128xf32>,
    %c0_136 = arith.constant 0 : index
    %c14 = arith.constant 14 : index
    %c0_137 = arith.constant 0 : index
    %c0_138 = arith.constant 0 : index
    %375 = vector.load %arg5[%c0_136, %c14, %c0_137, %c0_138] : memref<1x28x28x128xf32, #tpu.memory_space<vmem>>, vector<1x14x28x128xf32>
    %376 = vector.broadcast %364 : vector<1x1x1x128xf32> to vector<1x14x28x128xf32>
    %377 = arith.mulf %375, %376 : vector<1x14x28x128xf32>
    %378 = vector.broadcast %368 : vector<1x1x1x128xf32> to vector<1x14x28x128xf32>
    %379 = arith.addf %377, %378 : vector<1x14x28x128xf32>
    %c0_139 = arith.constant 0 : index
    %c14_140 = arith.constant 14 : index
    %c0_141 = arith.constant 0 : index
    %c0_142 = arith.constant 0 : index
    %380 = vector.load %arg5[%c0_139, %c14_140, %c0_141, %c0_142] : memref<1x28x28x128xf32, #tpu.memory_space<vmem>>, vector<1x14x28x128xf32>
    tpu.vector_store %arg5[%c0_139, %c14_140, %c0_141, %c0_142], %379 {strides = array<i32>} : memref<1x28x28x128xf32, #tpu.memory_space<vmem>>, vector<1x14x28x128xf32>,
    return
  }
  func.func @transform_0(%arg0: i32) -> (i32, i32, i32, i32) {
    %c0_i32 = arith.constant 0 : i32
    %c0_i32_0 = arith.constant 0 : i32
    %c0_i32_1 = arith.constant 0 : i32
    %c0_i32_2 = arith.constant 0 : i32
    %c0_i32_3 = arith.constant 0 : i32
    return %c0_i32, %c0_i32_0, %c0_i32_1, %c0_i32_2 : i32, i32, i32, i32
  }
  func.func @transform_1(%arg0: i32) -> (i32, i32) {
    %c0_i32 = arith.constant 0 : i32
    %c0_i32_0 = arith.constant 0 : i32
    %c0_i32_1 = arith.constant 0 : i32
    return %c0_i32, %c0_i32_0 : i32, i32
  }
  func.func @transform_2(%arg0: i32) -> (i32, i32) {
    %c0_i32 = arith.constant 0 : i32
    %c0_i32_0 = arith.constant 0 : i32
    %c0_i32_1 = arith.constant 0 : i32
    return %c0_i32, %c0_i32_0 : i32, i32
  }
  func.func @transform_3(%arg0: i32) -> (i32, i32) {
    %c0_i32 = arith.constant 0 : i32
    %c0_i32_0 = arith.constant 0 : i32
    %c0_i32_1 = arith.constant 0 : i32
    return %c0_i32, %c0_i32_0 : i32, i32
  }
  func.func @transform_4(%arg0: i32) -> (i32, i32, i32, i32) {
    %c0_i32 = arith.constant 0 : i32
    %c0_i32_0 = arith.constant 0 : i32
    %c0_i32_1 = arith.constant 0 : i32
    %c0_i32_2 = arith.constant 0 : i32
    %c0_i32_3 = arith.constant 0 : i32
    return %c0_i32, %c0_i32_0, %c0_i32_1, %c0_i32_2 : i32, i32, i32, i32
  }
}

</mosaic_0001>

<llo_original>
// kernel: depthwise_conv_bn.1
$region0: #{depthwise_conv_bn.1}
  #allocation0 [shape = 'u32[]', space=smem, size = 0x4, offset = 0x4, fixed_abs, tag = 'smem constant byte address 0x4 - core index']
  #allocation1 [shape = 'u32[144,128]{1,0:T(1,128)}', space=vmem, size = 0x12000, scoped, tag = 'internal scratch']
  %s0 = inlined_call_operand.vmem [shape: f32[1,30,30,128], index: 0, kind: input, shape index: {}]
  %s1 = inlined_call_operand.vmem [shape: f32[9,128], index: 1, kind: input, shape index: {}]
  %s2 = inlined_call_operand.vmem [shape: f32[1,128], index: 2, kind: input, shape index: {}]
  %s3 = inlined_call_operand.vmem [shape: f32[1,128], index: 3, kind: input, shape index: {}]
  %s4 = inlined_call_operand.vmem [shape: f32[1,28,28,128], index: 4, kind: output, shape index: {}]
  %s5 = sld [smem:[#allocation0]]
  $region26: #{depthwise_conv_bn.1} parent=0
    _
  %s7 = ssub.s32 1, %s5
  %s8 = scalar_select 0, %s7, %s5
  // Predicated region
  $region2: #{depthwise_conv_bn.1} parent=0 // pred_check
    _
  $region3: #{depthwise_conv_bn.1} parent=0 // pred_check_branch
    %10 = sbr.rel (0) target = $region5
  $region4: #{depthwise_conv_bn.1} parent=0 // pred_region
    _
  $region5: #{depthwise_conv_bn.1} parent=0 // pred_fallthru
    _
  // Predicated region
  $region6: #{depthwise_conv_bn.1} parent=0 // pred_check
    _
  $region7: #{depthwise_conv_bn.1} parent=0 // pred_check_branch
    %12 = sbr.rel (0) target = $region9
  $region8: #{depthwise_conv_bn.1} parent=0 // pred_region
    _
  $region9: #{depthwise_conv_bn.1} parent=0 // pred_fallthru
    _
  // Predicated region
  $region10: #{depthwise_conv_bn.1} parent=0 // pred_check
    _
  $region11: #{depthwise_conv_bn.1} parent=0 // pred_check_branch
    %14 = sbr.rel (0) target = $region13
  $region12: #{depthwise_conv_bn.1} parent=0 // pred_region
    _
  $region13: #{depthwise_conv_bn.1} parent=0 // pred_fallthru
    _
  // Predicated region
  $region14: #{depthwise_conv_bn.1} parent=0 // pred_check
    _
  $region15: #{depthwise_conv_bn.1} parent=0 // pred_check_branch
    %16 = sbr.rel (0) target = $region17
  $region16: #{depthwise_conv_bn.1} parent=0 // pred_region
    _
  $region17: #{depthwise_conv_bn.1} parent=0 // pred_fallthru
    _
  %v17 = vld [vmem:[%s1] sm:$0xff]
  %v18 = vld [vmem:[%s1 + $0x8] sm:$0x1]
  %v19 = vld [vmem:[%s0] sm:$0xff]
  %v20 = vld [vmem:[%s0 + $0x8] sm:$0xff]
  %v21 = vld [vmem:[%s0 + $0x10] sm:$0xff]
  %v22 = vld [vmem:[%s0 + $0x18] sm:$0xf]
  %v23 = vld [vmem:[%s0 + $0x20] sm:$0xff]
  %v24 = vld [vmem:[%s0 + $0x28] sm:$0xff]
  %v25 = vld [vmem:[%s0 + $0x30] sm:$0xff]
  %v26 = vld [vmem:[%s0 + $0x38] sm:$0xf]
  %v27 = vld [vmem:[%s0 + $0x40] sm:$0xff]
  %v28 = vld [vmem:[%s0 + $0x48] sm:$0xff]
  %v29 = vld [vmem:[%s0 + $0x50] sm:$0xff]
  %v30 = vld [vmem:[%s0 + $0x58] sm:$0xf]
  %v31 = vld [vmem:[%s0 + $0x60] sm:$0xff]
  %v32 = vld [vmem:[%s0 + $0x68] sm:$0xff]
  %v33 = vld [vmem:[%s0 + $0x70] sm:$0xff]
  %v34 = vld [vmem:[%s0 + $0x78] sm:$0xf]
  %v35 = vld [vmem:[%s0 + $0x80] sm:$0xff]
  %v36 = vld [vmem:[%s0 + $0x88] sm:$0xff]
  %v37 = vld [vmem:[%s0 + $0x90] sm:$0xff]
  %v38 = vld [vmem:[%s0 + $0x98] sm:$0xf]
  %v39 = vld [vmem:[%s0 + $0xa0] sm:$0xff]
  %v40 = vld [vmem:[%s0 + $0xa8] sm:$0xff]
  %v41 = vld [vmem:[%s0 + $0xb0] sm:$0xff]
  %v42 = vld [vmem:[%s0 + $0xb8] sm:$0xf]
  %v43 = vlaneseq
  %v44 = vshrl.u32 %v43, 7
  %v45 = vsub.s32 0, %v44
  %v46 = vrot.slane %v17, %v45
  %v47 = vmul.f32 %v19, %v46
  %v48 = vmul.f32 %v20, %v46
  %v49 = vmul.f32 %v21, %v46
  %v50 = vmul.f32 %v22, %v46
  %v51 = vmul.f32 %v23, %v46
  %v52 = vmul.f32 %v24, %v46
  %v53 = vmul.f32 %v25, %v46
  %v54 = vmul.f32 %v26, %v46
  %v55 = vmul.f32 %v27, %v46
  %v56 = vmul.f32 %v28, %v46
  %v57 = vmul.f32 %v29, %v46
  %v58 = vmul.f32 %v30, %v46
  %v59 = vmul.f32 %v31, %v46
  %v60 = vmul.f32 %v32, %v46
  %v61 = vmul.f32 %v33, %v46
  %v62 = vmul.f32 %v34, %v46
  %v63 = vlaneseq
  %v64 = vshrl.u32 %v63, 7
  %v65 = vsub.s32 3, %v64
  %v66 = vrot.slane %v17, %v65
  %v67 = vmul.f32 %v23, %v66
  %v68 = vmul.f32 %v24, %v66
  %v69 = vmul.f32 %v25, %v66
  %v70 = vmul.f32 %v26, %v66
  %v71 = vmul.f32 %v27, %v66
  %v72 = vmul.f32 %v28, %v66
  %v73 = vmul.f32 %v29, %v66
  %v74 = vmul.f32 %v30, %v66
  %v75 = vmul.f32 %v31, %v66
  %v76 = vmul.f32 %v32, %v66
  %v77 = vmul.f32 %v33, %v66
  %v78 = vmul.f32 %v34, %v66
  %v79 = vmul.f32 %v35, %v66
  %v80 = vmul.f32 %v36, %v66
  %v81 = vmul.f32 %v37, %v66
  %v82 = vmul.f32 %v38, %v66
  %v83 = vadd.f32 %v47, %v67
  %v84 = vadd.f32 %v48, %v68
  %v85 = vadd.f32 %v49, %v69
  %v86 = vadd.f32 %v50, %v70
  %v87 = vadd.f32 %v51, %v71
  %v88 = vadd.f32 %v52, %v72
  %v89 = vadd.f32 %v53, %v73
  %v90 = vadd.f32 %v54, %v74
  %v91 = vadd.f32 %v55, %v75
  %v92 = vadd.f32 %v56, %v76
  %v93 = vadd.f32 %v57, %v77
  %v94 = vadd.f32 %v58, %v78
  %v95 = vadd.f32 %v59, %v79
  %v96 = vadd.f32 %v60, %v80
  %v97 = vadd.f32 %v61, %v81
  %v98 = vadd.f32 %v62, %v82
  %v99 = vlaneseq
  %v100 = vshrl.u32 %v99, 7
  %v101 = vsub.s32 6, %v100
  %v102 = vrot.slane %v17, %v101
  %v103 = vmul.f32 %v27, %v102
  %v104 = vmul.f32 %v28, %v102
  %v105 = vmul.f32 %v29, %v102
  %v106 = vmul.f32 %v30, %v102
  %v107 = vmul.f32 %v31, %v102
  %v108 = vmul.f32 %v32, %v102
  %v109 = vmul.f32 %v33, %v102
  %v110 = vmul.f32 %v34, %v102
  %v111 = vmul.f32 %v35, %v102
  %v112 = vmul.f32 %v36, %v102
  %v113 = vmul.f32 %v37, %v102
  %v114 = vmul.f32 %v38, %v102
  %v115 = vmul.f32 %v39, %v102
  %v116 = vmul.f32 %v40, %v102
  %v117 = vmul.f32 %v41, %v102
  %v118 = vmul.f32 %v42, %v102
  %v119 = vadd.f32 %v83, %v103
  %v120 = vadd.f32 %v84, %v104
  %v121 = vadd.f32 %v85, %v105
  %v122 = vadd.f32 %v86, %v106
  %v123 = vadd.f32 %v87, %v107
  %v124 = vadd.f32 %v88, %v108
  %v125 = vadd.f32 %v89, %v109
  %v126 = vadd.f32 %v90, %v110
  %v127 = vadd.f32 %v91, %v111
  %v128 = vadd.f32 %v92, %v112
  %v129 = vadd.f32 %v93, %v113
  %v130 = vadd.f32 %v94, %v114
  %v131 = vadd.f32 %v95, %v115
  %v132 = vadd.f32 %v96, %v116
  %v133 = vadd.f32 %v97, %v117
  %v134 = vadd.f32 %v98, %v118
  %v135 = vld [vmem:[%s0 + $0x1] sm:$0xff]
  %v136 = vld [vmem:[%s0 + $0x9] sm:$0xff]
  %v137 = vld [vmem:[%s0 + $0x11] sm:$0xff]
  %v138 = vld [vmem:[%s0 + $0x19] sm:$0xf]
  %v139 = vld [vmem:[%s0 + $0x21] sm:$0xff]
  %v140 = vld [vmem:[%s0 + $0x29] sm:$0xff]
  %v141 = vld [vmem:[%s0 + $0x31] sm:$0xff]
  %v142 = vld [vmem:[%s0 + $0x39] sm:$0xf]
  %v143 = vld [vmem:[%s0 + $0x41] sm:$0xff]
  %v144 = vld [vmem:[%s0 + $0x49] sm:$0xff]
  %v145 = vld [vmem:[%s0 + $0x51] sm:$0xff]
  %v146 = vld [vmem:[%s0 + $0x59] sm:$0xf]
  %v147 = vld [vmem:[%s0 + $0x61] sm:$0xff]
  %v148 = vld [vmem:[%s0 + $0x69] sm:$0xff]
  %v149 = vld [vmem:[%s0 + $0x71] sm:$0xff]
  %v150 = vld [vmem:[%s0 + $0x79] sm:$0xf]
  %v151 = vld [vmem:[%s0 + $0x81] sm:$0xff]
  %v152 = vld [vmem:[%s0 + $0x89] sm:$0xff]
  %v153 = vld [vmem:[%s0 + $0x91] sm:$0xff]
  %v154 = vld [vmem:[%s0 + $0x99] sm:$0xf]
  %v155 = vld [vmem:[%s0 + $0xa1] sm:$0xff]
  %v156 = vld [vmem:[%s0 + $0xa9] sm:$0xff]
  %v157 = vld [vmem:[%s0 + $0xb1] sm:$0xff]
  %v158 = vld [vmem:[%s0 + $0xb9] sm:$0xf]
  %v159 = vlaneseq
  %v160 = vshrl.u32 %v159, 7
  %v161 = vsub.s32 1, %v160
  %v162 = vrot.slane %v17, %v161
  %v163 = vmul.f32 %v135, %v162
  %v164 = vmul.f32 %v136, %v162
  %v165 = vmul.f32 %v137, %v162
  %v166 = vmul.f32 %v138, %v162
  %v167 = vmul.f32 %v139, %v162
  %v168 = vmul.f32 %v140, %v162
  %v169 = vmul.f32 %v141, %v162
  %v170 = vmul.f32 %v142, %v162
  %v171 = vmul.f32 %v143, %v162
  %v172 = vmul.f32 %v144, %v162
  %v173 = vmul.f32 %v145, %v162
  %v174 = vmul.f32 %v146, %v162
  %v175 = vmul.f32 %v147, %v162
  %v176 = vmul.f32 %v148, %v162
  %v177 = vmul.f32 %v149, %v162
  %v178 = vmul.f32 %v150, %v162
  %v179 = vadd.f32 %v119, %v163
  %v180 = vadd.f32 %v120, %v164
  %v181 = vadd.f32 %v121, %v165
  %v182 = vadd.f32 %v122, %v166
  %v183 = vadd.f32 %v123, %v167
  %v184 = vadd.f32 %v124, %v168
  %v185 = vadd.f32 %v125, %v169
  %v186 = vadd.f32 %v126, %v170
  %v187 = vadd.f32 %v127, %v171
  %v188 = vadd.f32 %v128, %v172
  %v189 = vadd.f32 %v129, %v173
  %v190 = vadd.f32 %v130, %v174
  %v191 = vadd.f32 %v131, %v175
  %v192 = vadd.f32 %v132, %v176
  %v193 = vadd.f32 %v133, %v177
  %v194 = vadd.f32 %v134, %v178
  %v195 = vlaneseq
  %v196 = vshrl.u32 %v195, 7
  %v197 = vsub.s32 4, %v196
  %v198 = vrot.slane %v17, %v197
  %v199 = vmul.f32 %v139, %v198
  %v200 = vmul.f32 %v140, %v198
  %v201 = vmul.f32 %v141, %v198
  %v202 = vmul.f32 %v142, %v198
  %v203 = vmul.f32 %v143, %v198
  %v204 = vmul.f32 %v144, %v198
  %v205 = vmul.f32 %v145, %v198
  %v206 = vmul.f32 %v146, %v198
  %v207 = vmul.f32 %v147, %v198
  %v208 = vmul.f32 %v148, %v198
  %v209 = vmul.f32 %v149, %v198
  %v210 = vmul.f32 %v150, %v198
  %v211 = vmul.f32 %v151, %v198
  %v212 = vmul.f32 %v152, %v198
  %v213 = vmul.f32 %v153, %v198
  %v214 = vmul.f32 %v154, %v198
  %v215 = vadd.f32 %v179, %v199
  %v216 = vadd.f32 %v180, %v200
  %v217 = vadd.f32 %v181, %v201
  %v218 = vadd.f32 %v182, %v202
  %v219 = vadd.f32 %v183, %v203
  %v220 = vadd.f32 %v184, %v204
  %v221 = vadd.f32 %v185, %v205
  %v222 = vadd.f32 %v186, %v206
  %v223 = vadd.f32 %v187, %v207
  %v224 = vadd.f32 %v188, %v208
  %v225 = vadd.f32 %v189, %v209
  %v226 = vadd.f32 %v190, %v210
  %v227 = vadd.f32 %v191, %v211
  %v228 = vadd.f32 %v192, %v212
  %v229 = vadd.f32 %v193, %v213
  %v230 = vadd.f32 %v194, %v214
  %v231 = vlaneseq
  %v232 = vshrl.u32 %v231, 7
  %v233 = vsub.s32 7, %v232
  %v234 = vrot.slane %v17, %v233
  %v235 = vmul.f32 %v143, %v234
  %v236 = vmul.f32 %v144, %v234
  %v237 = vmul.f32 %v145, %v234
  %v238 = vmul.f32 %v146, %v234
  %v239 = vmul.f32 %v147, %v234
  %v240 = vmul.f32 %v148, %v234
  %v241 = vmul.f32 %v149, %v234
  %v242 = vmul.f32 %v150, %v234
  %v243 = vmul.f32 %v151, %v234
  %v244 = vmul.f32 %v152, %v234
  %v245 = vmul.f32 %v153, %v234
  %v246 = vmul.f32 %v154, %v234
  %v247 = vmul.f32 %v155, %v234
  %v248 = vmul.f32 %v156, %v234
  %v249 = vmul.f32 %v157, %v234
  %v250 = vmul.f32 %v158, %v234
  %v251 = vadd.f32 %v215, %v235
  %v252 = vadd.f32 %v216, %v236
  %v253 = vadd.f32 %v217, %v237
  %v254 = vadd.f32 %v218, %v238
  %v255 = vadd.f32 %v219, %v239
  %v256 = vadd.f32 %v220, %v240
  %v257 = vadd.f32 %v221, %v241
  %v258 = vadd.f32 %v222, %v242
  %v259 = vadd.f32 %v223, %v243
  %v260 = vadd.f32 %v224, %v244
  %v261 = vadd.f32 %v225, %v245
  %v262 = vadd.f32 %v226, %v246
  %v263 = vadd.f32 %v227, %v247
  %v264 = vadd.f32 %v228, %v248
  %v265 = vadd.f32 %v229, %v249
  %v266 = vadd.f32 %v230, %v250
  %v267 = vld [vmem:[%s0 + $0x2] sm:$0xff]
  %v268 = vld [vmem:[%s0 + $0xa] sm:$0xff]
  %v269 = vld [vmem:[%s0 + $0x12] sm:$0xff]
  %v270 = vld [vmem:[%s0 + $0x1a] sm:$0xf]
  %v271 = vld [vmem:[%s0 + $0x22] sm:$0xff]
  %v272 = vld [vmem:[%s0 + $0x2a] sm:$0xff]
  %v273 = vld [vmem:[%s0 + $0x32] sm:$0xff]
  %v274 = vld [vmem:[%s0 + $0x3a] sm:$0xf]
  %v275 = vld [vmem:[%s0 + $0x42] sm:$0xff]
  %v276 = vld [vmem:[%s0 + $0x4a] sm:$0xff]
  %v277 = vld [vmem:[%s0 + $0x52] sm:$0xff]
  %v278 = vld [vmem:[%s0 + $0x5a] sm:$0xf]
  %v279 = vld [vmem:[%s0 + $0x62] sm:$0xff]
  %v280 = vld [vmem:[%s0 + $0x6a] sm:$0xff]
  %v281 = vld [vmem:[%s0 + $0x72] sm:$0xff]
  %v282 = vld [vmem:[%s0 + $0x7a] sm:$0xf]
  %v283 = vld [vmem:[%s0 + $0x82] sm:$0xff]
  %v284 = vld [vmem:[%s0 + $0x8a] sm:$0xff]
  %v285 = vld [vmem:[%s0 + $0x92] sm:$0xff]
  %v286 = vld [vmem:[%s0 + $0x9a] sm:$0xf]
  %v287 = vld [vmem:[%s0 + $0xa2] sm:$0xff]
  %v288 = vld [vmem:[%s0 + $0xaa] sm:$0xff]
  %v289 = vld [vmem:[%s0 + $0xb2] sm:$0xff]
  %v290 = vld [vmem:[%s0 + $0xba] sm:$0xf]
  %v291 = vlaneseq
  %v292 = vshrl.u32 %v291, 7
  %v293 = vsub.s32 2, %v292
  %v294 = vrot.slane %v17, %v293
  %v295 = vmul.f32 %v267, %v294
  %v296 = vmul.f32 %v268, %v294
  %v297 = vmul.f32 %v269, %v294
  %v298 = vmul.f32 %v270, %v294
  %v299 = vmul.f32 %v271, %v294
  %v300 = vmul.f32 %v272, %v294
  %v301 = vmul.f32 %v273, %v294
  %v302 = vmul.f32 %v274, %v294
  %v303 = vmul.f32 %v275, %v294
  %v304 = vmul.f32 %v276, %v294
  %v305 = vmul.f32 %v277, %v294
  %v306 = vmul.f32 %v278, %v294
  %v307 = vmul.f32 %v279, %v294
  %v308 = vmul.f32 %v280, %v294
  %v309 = vmul.f32 %v281, %v294
  %v310 = vmul.f32 %v282, %v294
  %v311 = vadd.f32 %v251, %v295
  %v312 = vadd.f32 %v252, %v296
  %v313 = vadd.f32 %v253, %v297
  %v314 = vadd.f32 %v254, %v298
  %v315 = vadd.f32 %v255, %v299
  %v316 = vadd.f32 %v256, %v300
  %v317 = vadd.f32 %v257, %v301
  %v318 = vadd.f32 %v258, %v302
  %v319 = vadd.f32 %v259, %v303
  %v320 = vadd.f32 %v260, %v304
  %v321 = vadd.f32 %v261, %v305
  %v322 = vadd.f32 %v262, %v306
  %v323 = vadd.f32 %v263, %v307
  %v324 = vadd.f32 %v264, %v308
  %v325 = vadd.f32 %v265, %v309
  %v326 = vadd.f32 %v266, %v310
  %v327 = vlaneseq
  %v328 = vshrl.u32 %v327, 7
  %v329 = vsub.s32 5, %v328
  %v330 = vrot.slane %v17, %v329
  %v331 = vmul.f32 %v271, %v330
  %v332 = vmul.f32 %v272, %v330
  %v333 = vmul.f32 %v273, %v330
  %v334 = vmul.f32 %v274, %v330
  %v335 = vmul.f32 %v275, %v330
  %v336 = vmul.f32 %v276, %v330
  %v337 = vmul.f32 %v277, %v330
  %v338 = vmul.f32 %v278, %v330
  %v339 = vmul.f32 %v279, %v330
  %v340 = vmul.f32 %v280, %v330
  %v341 = vmul.f32 %v281, %v330
  %v342 = vmul.f32 %v282, %v330
  %v343 = vmul.f32 %v283, %v330
  %v344 = vmul.f32 %v284, %v330
  %v345 = vmul.f32 %v285, %v330
  %v346 = vmul.f32 %v286, %v330
  %v347 = vadd.f32 %v311, %v331
  %v348 = vadd.f32 %v312, %v332
  %v349 = vadd.f32 %v313, %v333
  %v350 = vadd.f32 %v314, %v334
  %v351 = vadd.f32 %v315, %v335
  %v352 = vadd.f32 %v316, %v336
  %v353 = vadd.f32 %v317, %v337
  %v354 = vadd.f32 %v318, %v338
  %v355 = vadd.f32 %v319, %v339
  %v356 = vadd.f32 %v320, %v340
  %v357 = vadd.f32 %v321, %v341
  %v358 = vadd.f32 %v322, %v342
  %v359 = vadd.f32 %v323, %v343
  %v360 = vadd.f32 %v324, %v344
  %v361 = vadd.f32 %v325, %v345
  %v362 = vadd.f32 %v326, %v346
  %v363 = vlaneseq
  %v364 = vshrl.u32 %v363, 7
  %v365 = vsub.s32 0, %v364
  %v366 = vrot.slane %v18, %v365
  %v367 = vmul.f32 %v275, %v366
  %v368 = vmul.f32 %v276, %v366
  %v369 = vmul.f32 %v277, %v366
  %v370 = vmul.f32 %v278, %v366
  %v371 = vmul.f32 %v279, %v366
  %v372 = vmul.f32 %v280, %v366
  %v373 = vmul.f32 %v281, %v366
  %v374 = vmul.f32 %v282, %v366
  %v375 = vmul.f32 %v283, %v366
  %v376 = vmul.f32 %v284, %v366
  %v377 = vmul.f32 %v285, %v366
  %v378 = vmul.f32 %v286, %v366
  %v379 = vmul.f32 %v287, %v366
  %v380 = vmul.f32 %v288, %v366
  %v381 = vmul.f32 %v289, %v366
  %v382 = vmul.f32 %v290, %v366
  %v383 = vadd.f32 %v347, %v367
  %v384 = vadd.f32 %v348, %v368
  %v385 = vadd.f32 %v349, %v369
  %v386 = vadd.f32 %v350, %v370
  %v387 = vadd.f32 %v351, %v371
  %v388 = vadd.f32 %v352, %v372
  %v389 = vadd.f32 %v353, %v373
  %v390 = vadd.f32 %v354, %v374
  %v391 = vadd.f32 %v355, %v375
  %v392 = vadd.f32 %v356, %v376
  %v393 = vadd.f32 %v357, %v377
  %v394 = vadd.f32 %v358, %v378
  %v395 = vadd.f32 %v359, %v379
  %v396 = vadd.f32 %v360, %v380
  %v397 = vadd.f32 %v361, %v381
  %v398 = vadd.f32 %v362, %v382
  %399 = vst [vmem:[%s4] sm:$0xff] %v383
  %400 = vst [vmem:[%s4 + $0x8] sm:$0xff] %v384
  %401 = vst [vmem:[%s4 + $0x10] sm:$0xff] %v385
  %402 = vst [vmem:[%s4 + $0x18] sm:$0xf] %v386
  %403 = vst [vmem:[%s4 + $0x20] sm:$0xff] %v387
  %404 = vst [vmem:[%s4 + $0x28] sm:$0xff] %v388
  %405 = vst [vmem:[%s4 + $0x30] sm:$0xff] %v389
  %406 = vst [vmem:[%s4 + $0x38] sm:$0xf] %v390
  %407 = vst [vmem:[%s4 + $0x40] sm:$0xff] %v391
  %408 = vst [vmem:[%s4 + $0x48] sm:$0xff] %v392
  %409 = vst [vmem:[%s4 + $0x50] sm:$0xff] %v393
  %410 = vst [vmem:[%s4 + $0x58] sm:$0xf] %v394
  %411 = vst [vmem:[%s4 + $0x60] sm:$0xff] %v395
  %412 = vst [vmem:[%s4 + $0x68] sm:$0xff] %v396
  %413 = vst [vmem:[%s4 + $0x70] sm:$0xff] %v397
  %414 = vst [vmem:[%s4 + $0x78] sm:$0xf] %v398
  %v431 = vcombine.high %v383, %v383
  %v432 = vcombine.high %v384, %v384
  %v433 = vcombine.high %v385, %v385
  %v434 = vcombine.high %v387, %v387
  %v435 = vcombine.high %v388, %v388
  %v436 = vcombine.high %v389, %v389
  %v437 = vcombine.high %v391, %v391
  %v438 = vcombine.high %v392, %v392
  %v439 = vcombine.high %v393, %v393
  %v440 = vcombine.high %v395, %v395
  %v441 = vcombine.high %v396, %v396
  %v442 = vcombine.high %v397, %v397
  %v455 = vcombine.low %v383, %v431
  %v456 = vcombine.low %v384, %v432
  %v457 = vcombine.low %v385, %v433
  %v458 = vcombine.low %v386, %v387
  %v459 = vcombine.low %v434, %v388
  %v460 = vcombine.low %v435, %v389
  %v461 = vcombine.low %v436, %v390
  %v462 = vcombine.low %v391, %v437
  %v463 = vcombine.low %v392, %v438
  %v464 = vcombine.low %v393, %v439
  %v465 = vcombine.low %v394, %v395
  %v466 = vcombine.low %v440, %v396
  %v467 = vcombine.low %v441, %v397
  %v468 = vcombine.low %v442, %v398
  %v483 = vadd.f32 %v455, %v456
  %v484 = vadd.f32 %v483, %v457
  %v485 = vadd.f32 %v484, %v458
  %v486 = vadd.f32 %v485, %v459
  %v487 = vadd.f32 %v486, %v460
  %v488 = vadd.f32 %v487, %v461
  %v489 = vadd.f32 %v488, %v462
  %v490 = vadd.f32 %v489, %v463
  %v491 = vadd.f32 %v490, %v464
  %v492 = vadd.f32 %v491, %v465
  %v493 = vadd.f32 %v492, %v466
  %v494 = vadd.f32 %v493, %v467
  %v495 = vadd.f32 %v494, %v468
  %v496 = vrot.slane %v495, 4
  %v497 = vadd.f32 %v495, %v496
  %v498 = vrot.slane %v497, 2
  %v499 = vadd.f32 %v497, %v498
  %v500 = vrot.slane %v499, 1
  %v501 = vadd.f32 %v499, %v500
  %v502 = vadd.f32 %v501, 0.0
  %v503 = vmul.f32 %v383, %v383
  %v504 = vmul.f32 %v431, %v431
  %v505 = vmul.f32 %v384, %v384
  %v506 = vmul.f32 %v432, %v432
  %v507 = vmul.f32 %v385, %v385
  %v508 = vmul.f32 %v433, %v433
  %v509 = vmul.f32 %v386, %v386
  %v510 = vmul.f32 %v387, %v387
  %v511 = vmul.f32 %v434, %v434
  %v512 = vmul.f32 %v388, %v388
  %v513 = vmul.f32 %v435, %v435
  %v514 = vmul.f32 %v389, %v389
  %v515 = vmul.f32 %v436, %v436
  %v516 = vmul.f32 %v390, %v390
  %v517 = vmul.f32 %v391, %v391
  %v518 = vmul.f32 %v437, %v437
  %v519 = vmul.f32 %v392, %v392
  %v520 = vmul.f32 %v438, %v438
  %v521 = vmul.f32 %v393, %v393
  %v522 = vmul.f32 %v439, %v439
  %v523 = vmul.f32 %v394, %v394
  %v524 = vmul.f32 %v395, %v395
  %v525 = vmul.f32 %v440, %v440
  %v526 = vmul.f32 %v396, %v396
  %v527 = vmul.f32 %v441, %v441
  %v528 = vmul.f32 %v397, %v397
  %v529 = vmul.f32 %v442, %v442
  %v530 = vmul.f32 %v398, %v398
  %v559 = vcombine.low %v503, %v504
  %v560 = vcombine.low %v505, %v506
  %v561 = vcombine.low %v507, %v508
  %v562 = vcombine.low %v509, %v510
  %v563 = vcombine.low %v511, %v512
  %v564 = vcombine.low %v513, %v514
  %v565 = vcombine.low %v515, %v516
  %v566 = vcombine.low %v517, %v518
  %v567 = vcombine.low %v519, %v520
  %v568 = vcombine.low %v521, %v522
  %v569 = vcombine.low %v523, %v524
  %v570 = vcombine.low %v525, %v526
  %v571 = vcombine.low %v527, %v528
  %v572 = vcombine.low %v529, %v530
  %v587 = vadd.f32 %v559, %v560
  %v588 = vadd.f32 %v587, %v561
  %v589 = vadd.f32 %v588, %v562
  %v590 = vadd.f32 %v589, %v563
  %v591 = vadd.f32 %v590, %v564
  %v592 = vadd.f32 %v591, %v565
  %v593 = vadd.f32 %v592, %v566
  %v594 = vadd.f32 %v593, %v567
  %v595 = vadd.f32 %v594, %v568
  %v596 = vadd.f32 %v595, %v569
  %v597 = vadd.f32 %v596, %v570
  %v598 = vadd.f32 %v597, %v571
  %v599 = vadd.f32 %v598, %v572
  %v600 = vrot.slane %v599, 4
  %v601 = vadd.f32 %v599, %v600
  %v602 = vrot.slane %v601, 2
  %v603 = vadd.f32 %v601, %v602
  %v604 = vrot.slane %v603, 1
  %v605 = vadd.f32 %v603, %v604
  %v606 = vadd.f32 %v605, 0.0
  %s607 = scalar_lea.vmem %s0, 128
  %v608 = vld [vmem:[%s607] sm:$0xff]
  %v609 = vld [vmem:[%s607 + $0x8] sm:$0xff]
  %v610 = vld [vmem:[%s607 + $0x10] sm:$0xff]
  %v611 = vld [vmem:[%s607 + $0x18] sm:$0xf]
  %v612 = vld [vmem:[%s607 + $0x20] sm:$0xff]
  %v613 = vld [vmem:[%s607 + $0x28] sm:$0xff]
  %v614 = vld [vmem:[%s607 + $0x30] sm:$0xff]
  %v615 = vld [vmem:[%s607 + $0x38] sm:$0xf]
  %v616 = vld [vmem:[%s607 + $0x40] sm:$0xff]
  %v617 = vld [vmem:[%s607 + $0x48] sm:$0xff]
  %v618 = vld [vmem:[%s607 + $0x50] sm:$0xff]
  %v619 = vld [vmem:[%s607 + $0x58] sm:$0xf]
  %v620 = vld [vmem:[%s607 + $0x60] sm:$0xff]
  %v621 = vld [vmem:[%s607 + $0x68] sm:$0xff]
  %v622 = vld [vmem:[%s607 + $0x70] sm:$0xff]
  %v623 = vld [vmem:[%s607 + $0x78] sm:$0xf]
  %v624 = vld [vmem:[%s607 + $0x80] sm:$0xff]
  %v625 = vld [vmem:[%s607 + $0x88] sm:$0xff]
  %v626 = vld [vmem:[%s607 + $0x90] sm:$0xff]
  %v627 = vld [vmem:[%s607 + $0x98] sm:$0xf]
  %v628 = vld [vmem:[%s607 + $0xa0] sm:$0xff]
  %v629 = vld [vmem:[%s607 + $0xa8] sm:$0xff]
  %v630 = vld [vmem:[%s607 + $0xb0] sm:$0xff]
  %v631 = vld [vmem:[%s607 + $0xb8] sm:$0xf]
  %v632 = vmul.f32 %v608, %v46
  %v633 = vmul.f32 %v609, %v46
  %v634 = vmul.f32 %v610, %v46
  %v635 = vmul.f32 %v611, %v46
  %v636 = vmul.f32 %v612, %v46
  %v637 = vmul.f32 %v613, %v46
  %v638 = vmul.f32 %v614, %v46
  %v639 = vmul.f32 %v615, %v46
  %v640 = vmul.f32 %v616, %v46
  %v641 = vmul.f32 %v617, %v46
  %v642 = vmul.f32 %v618, %v46
  %v643 = vmul.f32 %v619, %v46
  %v644 = vmul.f32 %v620, %v46
  %v645 = vmul.f32 %v621, %v46
  %v646 = vmul.f32 %v622, %v46
  %v647 = vmul.f32 %v623, %v46
  %v648 = vmul.f32 %v612, %v66
  %v649 = vmul.f32 %v613, %v66
  %v650 = vmul.f32 %v614, %v66
  %v651 = vmul.f32 %v615, %v66
  %v652 = vmul.f32 %v616, %v66
  %v653 = vmul.f32 %v617, %v66
  %v654 = vmul.f32 %v618, %v66
  %v655 = vmul.f32 %v619, %v66
  %v656 = vmul.f32 %v620, %v66
  %v657 = vmul.f32 %v621, %v66
  %v658 = vmul.f32 %v622, %v66
  %v659 = vmul.f32 %v623, %v66
  %v660 = vmul.f32 %v624, %v66
  %v661 = vmul.f32 %v625, %v66
  %v662 = vmul.f32 %v626, %v66
  %v663 = vmul.f32 %v627, %v66
  %v664 = vadd.f32 %v632, %v648
  %v665 = vadd.f32 %v633, %v649
  %v666 = vadd.f32 %v634, %v650
  %v667 = vadd.f32 %v635, %v651
  %v668 = vadd.f32 %v636, %v652
  %v669 = vadd.f32 %v637, %v653
  %v670 = vadd.f32 %v638, %v654
  %v671 = vadd.f32 %v639, %v655
  %v672 = vadd.f32 %v640, %v656
  %v673 = vadd.f32 %v641, %v657
  %v674 = vadd.f32 %v642, %v658
  %v675 = vadd.f32 %v643, %v659
  %v676 = vadd.f32 %v644, %v660
  %v677 = vadd.f32 %v645, %v661
  %v678 = vadd.f32 %v646, %v662
  %v679 = vadd.f32 %v647, %v663
  %v680 = vmul.f32 %v616, %v102
  %v681 = vmul.f32 %v617, %v102
  %v682 = vmul.f32 %v618, %v102
  %v683 = vmul.f32 %v619, %v102
  %v684 = vmul.f32 %v620, %v102
  %v685 = vmul.f32 %v621, %v102
  %v686 = vmul.f32 %v622, %v102
  %v687 = vmul.f32 %v623, %v102
  %v688 = vmul.f32 %v624, %v102
  %v689 = vmul.f32 %v625, %v102
  %v690 = vmul.f32 %v626, %v102
  %v691 = vmul.f32 %v627, %v102
  %v692 = vmul.f32 %v628, %v102
  %v693 = vmul.f32 %v629, %v102
  %v694 = vmul.f32 %v630, %v102
  %v695 = vmul.f32 %v631, %v102
  %v696 = vadd.f32 %v664, %v680
  %v697 = vadd.f32 %v665, %v681
  %v698 = vadd.f32 %v666, %v682
  %v699 = vadd.f32 %v667, %v683
  %v700 = vadd.f32 %v668, %v684
  %v701 = vadd.f32 %v669, %v685
  %v702 = vadd.f32 %v670, %v686
  %v703 = vadd.f32 %v671, %v687
  %v704 = vadd.f32 %v672, %v688
  %v705 = vadd.f32 %v673, %v689
  %v706 = vadd.f32 %v674, %v690
  %v707 = vadd.f32 %v675, %v691
  %v708 = vadd.f32 %v676, %v692
  %v709 = vadd.f32 %v677, %v693
  %v710 = vadd.f32 %v678, %v694
  %v711 = vadd.f32 %v679, %v695
  %v712 = vld [vmem:[%s607 + $0x1] sm:$0xff]
  %v713 = vld [vmem:[%s607 + $0x9] sm:$0xff]
  %v714 = vld [vmem:[%s607 + $0x11] sm:$0xff]
  %v715 = vld [vmem:[%s607 + $0x19] sm:$0xf]
  %v716 = vld [vmem:[%s607 + $0x21] sm:$0xff]
  %v717 = vld [vmem:[%s607 + $0x29] sm:$0xff]
  %v718 = vld [vmem:[%s607 + $0x31] sm:$0xff]
  %v719 = vld [vmem:[%s607 + $0x39] sm:$0xf]
  %v720 = vld [vmem:[%s607 + $0x41] sm:$0xff]
  %v721 = vld [vmem:[%s607 + $0x49] sm:$0xff]
  %v722 = vld [vmem:[%s607 + $0x51] sm:$0xff]
  %v723 = vld [vmem:[%s607 + $0x59] sm:$0xf]
  %v724 = vld [vmem:[%s607 + $0x61] sm:$0xff]
  %v725 = vld [vmem:[%s607 + $0x69] sm:$0xff]
  %v726 = vld [vmem:[%s607 + $0x71] sm:$0xff]
  %v727 = vld [vmem:[%s607 + $0x79] sm:$0xf]
  %v728 = vld [vmem:[%s607 + $0x81] sm:$0xff]
  %v729 = vld [vmem:[%s607 + $0x89] sm:$0xff]
  %v730 = vld [vmem:[%s607 + $0x91] sm:$0xff]
  %v731 = vld [vmem:[%s607 + $0x99] sm:$0xf]
  %v732 = vld [vmem:[%s607 + $0xa1] sm:$0xff]
  %v733 = vld [vmem:[%s607 + $0xa9] sm:$0xff]
  %v734 = vld [vmem:[%s607 + $0xb1] sm:$0xff]
  %v735 = vld [vmem:[%s607 + $0xb9] sm:$0xf]
  %v736 = vmul.f32 %v712, %v162
  %v737 = vmul.f32 %v713, %v162
  %v738 = vmul.f32 %v714, %v162
  %v739 = vmul.f32 %v715, %v162
  %v740 = vmul.f32 %v716, %v162
  %v741 = vmul.f32 %v717, %v162
  %v742 = vmul.f32 %v718, %v162
  %v743 = vmul.f32 %v719, %v162
  %v744 = vmul.f32 %v720, %v162
  %v745 = vmul.f32 %v721, %v162
  %v746 = vmul.f32 %v722, %v162
  %v747 = vmul.f32 %v723, %v162
  %v748 = vmul.f32 %v724, %v162
  %v749 = vmul.f32 %v725, %v162
  %v750 = vmul.f32 %v726, %v162
  %v751 = vmul.f32 %v727, %v162
  %v752 = vadd.f32 %v696, %v736
  %v753 = vadd.f32 %v697, %v737
  %v754 = vadd.f32 %v698, %v738
  %v755 = vadd.f32 %v699, %v739
  %v756 = vadd.f32 %v700, %v740
  %v757 = vadd.f32 %v701, %v741
  %v758 = vadd.f32 %v702, %v742
  %v759 = vadd.f32 %v703, %v743
  %v760 = vadd.f32 %v704, %v744
  %v761 = vadd.f32 %v705, %v745
  %v762 = vadd.f32 %v706, %v746
  %v763 = vadd.f32 %v707, %v747
  %v764 = vadd.f32 %v708, %v748
  %v765 = vadd.f32 %v709, %v749
  %v766 = vadd.f32 %v710, %v750
  %v767 = vadd.f32 %v711, %v751
  %v768 = vmul.f32 %v716, %v198
  %v769 = vmul.f32 %v717, %v198
  %v770 = vmul.f32 %v718, %v198
  %v771 = vmul.f32 %v719, %v198
  %v772 = vmul.f32 %v720, %v198
  %v773 = vmul.f32 %v721, %v198
  %v774 = vmul.f32 %v722, %v198
  %v775 = vmul.f32 %v723, %v198
  %v776 = vmul.f32 %v724, %v198
  %v777 = vmul.f32 %v725, %v198
  %v778 = vmul.f32 %v726, %v198
  %v779 = vmul.f32 %v727, %v198
  %v780 = vmul.f32 %v728, %v198
  %v781 = vmul.f32 %v729, %v198
  %v782 = vmul.f32 %v730, %v198
  %v783 = vmul.f32 %v731, %v198
  %v784 = vadd.f32 %v752, %v768
  %v785 = vadd.f32 %v753, %v769
  %v786 = vadd.f32 %v754, %v770
  %v787 = vadd.f32 %v755, %v771
  %v788 = vadd.f32 %v756, %v772
  %v789 = vadd.f32 %v757, %v773
  %v790 = vadd.f32 %v758, %v774
  %v791 = vadd.f32 %v759, %v775
  %v792 = vadd.f32 %v760, %v776
  %v793 = vadd.f32 %v761, %v777
  %v794 = vadd.f32 %v762, %v778
  %v795 = vadd.f32 %v763, %v779
  %v796 = vadd.f32 %v764, %v780
  %v797 = vadd.f32 %v765, %v781
  %v798 = vadd.f32 %v766, %v782
  %v799 = vadd.f32 %v767, %v783
  %v800 = vmul.f32 %v720, %v234
  %v801 = vmul.f32 %v721, %v234
  %v802 = vmul.f32 %v722, %v234
  %v803 = vmul.f32 %v723, %v234
  %v804 = vmul.f32 %v724, %v234
  %v805 = vmul.f32 %v725, %v234
  %v806 = vmul.f32 %v726, %v234
  %v807 = vmul.f32 %v727, %v234
  %v808 = vmul.f32 %v728, %v234
  %v809 = vmul.f32 %v729, %v234
  %v810 = vmul.f32 %v730, %v234
  %v811 = vmul.f32 %v731, %v234
  %v812 = vmul.f32 %v732, %v234
  %v813 = vmul.f32 %v733, %v234
  %v814 = vmul.f32 %v734, %v234
  %v815 = vmul.f32 %v735, %v234
  %v816 = vadd.f32 %v784, %v800
  %v817 = vadd.f32 %v785, %v801
  %v818 = vadd.f32 %v786, %v802
  %v819 = vadd.f32 %v787, %v803
  %v820 = vadd.f32 %v788, %v804
  %v821 = vadd.f32 %v789, %v805
  %v822 = vadd.f32 %v790, %v806
  %v823 = vadd.f32 %v791, %v807
  %v824 = vadd.f32 %v792, %v808
  %v825 = vadd.f32 %v793, %v809
  %v826 = vadd.f32 %v794, %v810
  %v827 = vadd.f32 %v795, %v811
  %v828 = vadd.f32 %v796, %v812
  %v829 = vadd.f32 %v797, %v813
  %v830 = vadd.f32 %v798, %v814
  %v831 = vadd.f32 %v799, %v815
  %v832 = vld [vmem:[%s607 + $0x2] sm:$0xff]
  %v833 = vld [vmem:[%s607 + $0xa] sm:$0xff]
  %v834 = vld [vmem:[%s607 + $0x12] sm:$0xff]
  %v835 = vld [vmem:[%s607 + $0x1a] sm:$0xf]
  %v836 = vld [vmem:[%s607 + $0x22] sm:$0xff]
  %v837 = vld [vmem:[%s607 + $0x2a] sm:$0xff]
  %v838 = vld [vmem:[%s607 + $0x32] sm:$0xff]
  %v839 = vld [vmem:[%s607 + $0x3a] sm:$0xf]
  %v840 = vld [vmem:[%s607 + $0x42] sm:$0xff]
  %v841 = vld [vmem:[%s607 + $0x4a] sm:$0xff]
  %v842 = vld [vmem:[%s607 + $0x52] sm:$0xff]
  %v843 = vld [vmem:[%s607 + $0x5a] sm:$0xf]
  %v844 = vld [vmem:[%s607 + $0x62] sm:$0xff]
  %v845 = vld [vmem:[%s607 + $0x6a] sm:$0xff]
  %v846 = vld [vmem:[%s607 + $0x72] sm:$0xff]
  %v847 = vld [vmem:[%s607 + $0x7a] sm:$0xf]
  %v848 = vld [vmem:[%s607 + $0x82] sm:$0xff]
  %v849 = vld [vmem:[%s607 + $0x8a] sm:$0xff]
  %v850 = vld [vmem:[%s607 + $0x92] sm:$0xff]
  %v851 = vld [vmem:[%s607 + $0x9a] sm:$0xf]
  %v852 = vld [vmem:[%s607 + $0xa2] sm:$0xff]
  %v853 = vld [vmem:[%s607 + $0xaa] sm:$0xff]
  %v854 = vld [vmem:[%s607 + $0xb2] sm:$0xff]
  %v855 = vld [vmem:[%s607 + $0xba] sm:$0xf]
  %v856 = vmul.f32 %v832, %v294
  %v857 = vmul.f32 %v833, %v294
  %v858 = vmul.f32 %v834, %v294
  %v859 = vmul.f32 %v835, %v294
  %v860 = vmul.f32 %v836, %v294
  %v861 = vmul.f32 %v837, %v294
  %v862 = vmul.f32 %v838, %v294
  %v863 = vmul.f32 %v839, %v294
  %v864 = vmul.f32 %v840, %v294
  %v865 = vmul.f32 %v841, %v294
  %v866 = vmul.f32 %v842, %v294
  %v867 = vmul.f32 %v843, %v294
  %v868 = vmul.f32 %v844, %v294
  %v869 = vmul.f32 %v845, %v294
  %v870 = vmul.f32 %v846, %v294
  %v871 = vmul.f32 %v847, %v294
  %v872 = vadd.f32 %v816, %v856
  %v873 = vadd.f32 %v817, %v857
  %v874 = vadd.f32 %v818, %v858
  %v875 = vadd.f32 %v819, %v859
  %v876 = vadd.f32 %v820, %v860
  %v877 = vadd.f32 %v821, %v861
  %v878 = vadd.f32 %v822, %v862
  %v879 = vadd.f32 %v823, %v863
  %v880 = vadd.f32 %v824, %v864
  %v881 = vadd.f32 %v825, %v865
  %v882 = vadd.f32 %v826, %v866
  %v883 = vadd.f32 %v827, %v867
  %v884 = vadd.f32 %v828, %v868
  %v885 = vadd.f32 %v829, %v869
  %v886 = vadd.f32 %v830, %v870
  %v887 = vadd.f32 %v831, %v871
  %v888 = vmul.f32 %v836, %v330
  %v889 = vmul.f32 %v837, %v330
  %v890 = vmul.f32 %v838, %v330
  %v891 = vmul.f32 %v839, %v330
  %v892 = vmul.f32 %v840, %v330
  %v893 = vmul.f32 %v841, %v330
  %v894 = vmul.f32 %v842, %v330
  %v895 = vmul.f32 %v843, %v330
  %v896 = vmul.f32 %v844, %v330
  %v897 = vmul.f32 %v845, %v330
  %v898 = vmul.f32 %v846, %v330
  %v899 = vmul.f32 %v847, %v330
  %v900 = vmul.f32 %v848, %v330
  %v901 = vmul.f32 %v849, %v330
  %v902 = vmul.f32 %v850, %v330
  %v903 = vmul.f32 %v851, %v330
  %v904 = vadd.f32 %v872, %v888
  %v905 = vadd.f32 %v873, %v889
  %v906 = vadd.f32 %v874, %v890
  %v907 = vadd.f32 %v875, %v891
  %v908 = vadd.f32 %v876, %v892
  %v909 = vadd.f32 %v877, %v893
  %v910 = vadd.f32 %v878, %v894
  %v911 = vadd.f32 %v879, %v895
  %v912 = vadd.f32 %v880, %v896
  %v913 = vadd.f32 %v881, %v897
  %v914 = vadd.f32 %v882, %v898
  %v915 = vadd.f32 %v883, %v899
  %v916 = vadd.f32 %v884, %v900
  %v917 = vadd.f32 %v885, %v901
  %v918 = vadd.f32 %v886, %v902
  %v919 = vadd.f32 %v887, %v903
  %v920 = vmul.f32 %v840, %v366
  %v921 = vmul.f32 %v841, %v366
  %v922 = vmul.f32 %v842, %v366
  %v923 = vmul.f32 %v843, %v366
  %v924 = vmul.f32 %v844, %v366
  %v925 = vmul.f32 %v845, %v366
  %v926 = vmul.f32 %v846, %v366
  %v927 = vmul.f32 %v847, %v366
  %v928 = vmul.f32 %v848, %v366
  %v929 = vmul.f32 %v849, %v366
  %v930 = vmul.f32 %v850, %v366
  %v931 = vmul.f32 %v851, %v366
  %v932 = vmul.f32 %v852, %v366
  %v933 = vmul.f32 %v853, %v366
  %v934 = vmul.f32 %v854, %v366
  %v935 = vmul.f32 %v855, %v366
  %v936 = vadd.f32 %v904, %v920
  %v937 = vadd.f32 %v905, %v921
  %v938 = vadd.f32 %v906, %v922
  %v939 = vadd.f32 %v907, %v923
  %v940 = vadd.f32 %v908, %v924
  %v941 = vadd.f32 %v909, %v925
  %v942 = vadd.f32 %v910, %v926
  %v943 = vadd.f32 %v911, %v927
  %v944 = vadd.f32 %v912, %v928
  %v945 = vadd.f32 %v913, %v929
  %v946 = vadd.f32 %v914, %v930
  %v947 = vadd.f32 %v915, %v931
  %v948 = vadd.f32 %v916, %v932
  %v949 = vadd.f32 %v917, %v933
  %v950 = vadd.f32 %v918, %v934
  %v951 = vadd.f32 %v919, %v935
  %s952 = scalar_lea.vmem %s4, 128
  %953 = vst [vmem:[%s952] sm:$0xff] %v936
  %954 = vst [vmem:[%s952 + $0x8] sm:$0xff] %v937
  %955 = vst [vmem:[%s952 + $0x10] sm:$0xff] %v938
  %956 = vst [vmem:[%s952 + $0x18] sm:$0xf] %v939
  %957 = vst [vmem:[%s952 + $0x20] sm:$0xff] %v940
  %958 = vst [vmem:[%s952 + $0x28] sm:$0xff] %v941
  %959 = vst [vmem:[%s952 + $0x30] sm:$0xff] %v942
  %960 = vst [vmem:[%s952 + $0x38] sm:$0xf] %v943
  %961 = vst [vmem:[%s952 + $0x40] sm:$0xff] %v944
  %962 = vst [vmem:[%s952 + $0x48] sm:$0xff] %v945
  %963 = vst [vmem:[%s952 + $0x50] sm:$0xff] %v946
  %964 = vst [vmem:[%s952 + $0x58] sm:$0xf] %v947
  %965 = vst [vmem:[%s952 + $0x60] sm:$0xff] %v948
  %966 = vst [vmem:[%s952 + $0x68] sm:$0xff] %v949
  %967 = vst [vmem:[%s952 + $0x70] sm:$0xff] %v950
  %968 = vst [vmem:[%s952 + $0x78] sm:$0xf] %v951
  %v985 = vcombine.high %v936, %v936
  %v986 = vcombine.high %v937, %v937
  %v987 = vcombine.high %v938, %v938
  %v988 = vcombine.high %v940, %v940
  %v989 = vcombine.high %v941, %v941
  %v990 = vcombine.high %v942, %v942
  %v991 = vcombine.high %v944, %v944
  %v992 = vcombine.high %v945, %v945
  %v993 = vcombine.high %v946, %v946
  %v994 = vcombine.high %v948, %v948
  %v995 = vcombine.high %v949, %v949
  %v996 = vcombine.high %v950, %v950
  %v1009 = vcombine.low %v936, %v985
  %v1010 = vcombine.low %v937, %v986
  %v1011 = vcombine.low %v938, %v987
  %v1012 = vcombine.low %v939, %v940
  %v1013 = vcombine.low %v988, %v941
  %v1014 = vcombine.low %v989, %v942
  %v1015 = vcombine.low %v990, %v943
  %v1016 = vcombine.low %v944, %v991
  %v1017 = vcombine.low %v945, %v992
  %v1018 = vcombine.low %v946, %v993
  %v1019 = vcombine.low %v947, %v948
  %v1020 = vcombine.low %v994, %v949
  %v1021 = vcombine.low %v995, %v950
  %v1022 = vcombine.low %v996, %v951
  %v1037 = vadd.f32 %v1009, %v1010
  %v1038 = vadd.f32 %v1037, %v1011
  %v1039 = vadd.f32 %v1038, %v1012
  %v1040 = vadd.f32 %v1039, %v1013
  %v1041 = vadd.f32 %v1040, %v1014
  %v1042 = vadd.f32 %v1041, %v1015
  %v1043 = vadd.f32 %v1042, %v1016
  %v1044 = vadd.f32 %v1043, %v1017
  %v1045 = vadd.f32 %v1044, %v1018
  %v1046 = vadd.f32 %v1045, %v1019
  %v1047 = vadd.f32 %v1046, %v1020
  %v1048 = vadd.f32 %v1047, %v1021
  %v1049 = vadd.f32 %v1048, %v1022
  %v1050 = vrot.slane %v1049, 4
  %v1051 = vadd.f32 %v1049, %v1050
  %v1052 = vrot.slane %v1051, 2
  %v1053 = vadd.f32 %v1051, %v1052
  %v1054 = vrot.slane %v1053, 1
  %v1055 = vadd.f32 %v1053, %v1054
  %v1056 = vadd.f32 %v502, %v1055
  %v1057 = vmul.f32 %v936, %v936
  %v1058 = vmul.f32 %v985, %v985
  %v1059 = vmul.f32 %v937, %v937
  %v1060 = vmul.f32 %v986, %v986
  %v1061 = vmul.f32 %v938, %v938
  %v1062 = vmul.f32 %v987, %v987
  %v1063 = vmul.f32 %v939, %v939
  %v1064 = vmul.f32 %v940, %v940
  %v1065 = vmul.f32 %v988, %v988
  %v1066 = vmul.f32 %v941, %v941
  %v1067 = vmul.f32 %v989, %v989
  %v1068 = vmul.f32 %v942, %v942
  %v1069 = vmul.f32 %v990, %v990
  %v1070 = vmul.f32 %v943, %v943
  %v1071 = vmul.f32 %v944, %v944
  %v1072 = vmul.f32 %v991, %v991
  %v1073 = vmul.f32 %v945, %v945
  %v1074 = vmul.f32 %v992, %v992
  %v1075 = vmul.f32 %v946, %v946
  %v1076 = vmul.f32 %v993, %v993
  %v1077 = vmul.f32 %v947, %v947
  %v1078 = vmul.f32 %v948, %v948
  %v1079 = vmul.f32 %v994, %v994
  %v1080 = vmul.f32 %v949, %v949
  %v1081 = vmul.f32 %v995, %v995
  %v1082 = vmul.f32 %v950, %v950
  %v1083 = vmul.f32 %v996, %v996
  %v1084 = vmul.f32 %v951, %v951
  %v1113 = vcombine.low %v1057, %v1058
  %v1114 = vcombine.low %v1059, %v1060
  %v1115 = vcombine.low %v1061, %v1062
  %v1116 = vcombine.low %v1063, %v1064
  %v1117 = vcombine.low %v1065, %v1066
  %v1118 = vcombine.low %v1067, %v1068
  %v1119 = vcombine.low %v1069, %v1070
  %v1120 = vcombine.low %v1071, %v1072
  %v1121 = vcombine.low %v1073, %v1074
  %v1122 = vcombine.low %v1075, %v1076
  %v1123 = vcombine.low %v1077, %v1078
  %v1124 = vcombine.low %v1079, %v1080
  %v1125 = vcombine.low %v1081, %v1082
  %v1126 = vcombine.low %v1083, %v1084
  %v1141 = vadd.f32 %v1113, %v1114
  %v1142 = vadd.f32 %v1141, %v1115
  %v1143 = vadd.f32 %v1142, %v1116
  %v1144 = vadd.f32 %v1143, %v1117
  %v1145 = vadd.f32 %v1144, %v1118
  %v1146 = vadd.f32 %v1145, %v1119
  %v1147 = vadd.f32 %v1146, %v1120
  %v1148 = vadd.f32 %v1147, %v1121
  %v1149 = vadd.f32 %v1148, %v1122
  %v1150 = vadd.f32 %v1149, %v1123
  %v1151 = vadd.f32 %v1150, %v1124
  %v1152 = vadd.f32 %v1151, %v1125
  %v1153 = vadd.f32 %v1152, %v1126
  %v1154 = vrot.slane %v1153, 4
  %v1155 = vadd.f32 %v1153, %v1154
  %v1156 = vrot.slane %v1155, 2
  %v1157 = vadd.f32 %v1155, %v1156
  %v1158 = vrot.slane %v1157, 1
  %v1159 = vadd.f32 %v1157, %v1158
  %v1160 = vadd.f32 %v606, %v1159
  %s1161 = scalar_lea.vmem %s0, 256
  %v1162 = vld [vmem:[%s1161] sm:$0xff]
  %v1163 = vld [vmem:[%s1161 + $0x8] sm:$0xff]
  %v1164 = vld [vmem:[%s1161 + $0x10] sm:$0xff]
  %v1165 = vld [vmem:[%s1161 + $0x18] sm:$0xf]
  %v1166 = vld [vmem:[%s1161 + $0x20] sm:$0xff]
  %v1167 = vld [vmem:[%s1161 + $0x28] sm:$0xff]
  %v1168 = vld [vmem:[%s1161 + $0x30] sm:$0xff]
  %v1169 = vld [vmem:[%s1161 + $0x38] sm:$0xf]
  %v1170 = vld [vmem:[%s1161 + $0x40] sm:$0xff]
  %v1171 = vld [vmem:[%s1161 + $0x48] sm:$0xff]
  %v1172 = vld [vmem:[%s1161 + $0x50] sm:$0xff]
  %v1173 = vld [vmem:[%s1161 + $0x58] sm:$0xf]
  %v1174 = vld [vmem:[%s1161 + $0x60] sm:$0xff]
  %v1175 = vld [vmem:[%s1161 + $0x68] sm:$0xff]
  %v1176 = vld [vmem:[%s1161 + $0x70] sm:$0xff]
  %v1177 = vld [vmem:[%s1161 + $0x78] sm:$0xf]
  %v1178 = vld [vmem:[%s1161 + $0x80] sm:$0xff]
  %v1179 = vld [vmem:[%s1161 + $0x88] sm:$0xff]
  %v1180 = vld [vmem:[%s1161 + $0x90] sm:$0xff]
  %v1181 = vld [vmem:[%s1161 + $0x98] sm:$0xf]
  %v1182 = vld [vmem:[%s1161 + $0xa0] sm:$0xff]
  %v1183 = vld [vmem:[%s1161 + $0xa8] sm:$0xff]
  %v1184 = vld [vmem:[%s1161 + $0xb0] sm:$0xff]
  %v1185 = vld [vmem:[%s1161 + $0xb8] sm:$0xf]
  %v1186 = vmul.f32 %v1162, %v46
  %v1187 = vmul.f32 %v1163, %v46
  %v1188 = vmul.f32 %v1164, %v46
  %v1189 = vmul.f32 %v1165, %v46
  %v1190 = vmul.f32 %v1166, %v46
  %v1191 = vmul.f32 %v1167, %v46
  %v1192 = vmul.f32 %v1168, %v46
  %v1193 = vmul.f32 %v1169, %v46
  %v1194 = vmul.f32 %v1170, %v46
  %v1195 = vmul.f32 %v1171, %v46
  %v1196 = vmul.f32 %v1172, %v46
  %v1197 = vmul.f32 %v1173, %v46
  %v1198 = vmul.f32 %v1174, %v46
  %v1199 = vmul.f32 %v1175, %v46
  %v1200 = vmul.f32 %v1176, %v46
  %v1201 = vmul.f32 %v1177, %v46
  %v1202 = vmul.f32 %v1166, %v66
  %v1203 = vmul.f32 %v1167, %v66
  %v1204 = vmul.f32 %v1168, %v66
  %v1205 = vmul.f32 %v1169, %v66
  %v1206 = vmul.f32 %v1170, %v66
  %v1207 = vmul.f32 %v1171, %v66
  %v1208 = vmul.f32 %v1172, %v66
  %v1209 = vmul.f32 %v1173, %v66
  %v1210 = vmul.f32 %v1174, %v66
  %v1211 = vmul.f32 %v1175, %v66
  %v1212 = vmul.f32 %v1176, %v66
  %v1213 = vmul.f32 %v1177, %v66
  %v1214 = vmul.f32 %v1178, %v66
  %v1215 = vmul.f32 %v1179, %v66
  %v1216 = vmul.f32 %v1180, %v66
  %v1217 = vmul.f32 %v1181, %v66
  %v1218 = vadd.f32 %v1186, %v1202
  %v1219 = vadd.f32 %v1187, %v1203
  %v1220 = vadd.f32 %v1188, %v1204
  %v1221 = vadd.f32 %v1189, %v1205
  %v1222 = vadd.f32 %v1190, %v1206
  %v1223 = vadd.f32 %v1191, %v1207
  %v1224 = vadd.f32 %v1192, %v1208
  %v1225 = vadd.f32 %v1193, %v1209
  %v1226 = vadd.f32 %v1194, %v1210
  %v1227 = vadd.f32 %v1195, %v1211
  %v1228 = vadd.f32 %v1196, %v1212
  %v1229 = vadd.f32 %v1197, %v1213
  %v1230 = vadd.f32 %v1198, %v1214
  %v1231 = vadd.f32 %v1199, %v1215
  %v1232 = vadd.f32 %v1200, %v1216
  %v1233 = vadd.f32 %v1201, %v1217
  %v1234 = vmul.f32 %v1170, %v102
  %v1235 = vmul.f32 %v1171, %v102
  %v1236 = vmul.f32 %v1172, %v102
  %v1237 = vmul.f32 %v1173, %v102
  %v1238 = vmul.f32 %v1174, %v102
  %v1239 = vmul.f32 %v1175, %v102
  %v1240 = vmul.f32 %v1176, %v102
  %v1241 = vmul.f32 %v1177, %v102
  %v1242 = vmul.f32 %v1178, %v102
  %v1243 = vmul.f32 %v1179, %v102
  %v1244 = vmul.f32 %v1180, %v102
  %v1245 = vmul.f32 %v1181, %v102
  %v1246 = vmul.f32 %v1182, %v102
  %v1247 = vmul.f32 %v1183, %v102
  %v1248 = vmul.f32 %v1184, %v102
  %v1249 = vmul.f32 %v1185, %v102
  %v1250 = vadd.f32 %v1218, %v1234
  %v1251 = vadd.f32 %v1219, %v1235
  %v1252 = vadd.f32 %v1220, %v1236
  %v1253 = vadd.f32 %v1221, %v1237
  %v1254 = vadd.f32 %v1222, %v1238
  %v1255 = vadd.f32 %v1223, %v1239
  %v1256 = vadd.f32 %v1224, %v1240
  %v1257 = vadd.f32 %v1225, %v1241
  %v1258 = vadd.f32 %v1226, %v1242
  %v1259 = vadd.f32 %v1227, %v1243
  %v1260 = vadd.f32 %v1228, %v1244
  %v1261 = vadd.f32 %v1229, %v1245
  %v1262 = vadd.f32 %v1230, %v1246
  %v1263 = vadd.f32 %v1231, %v1247
  %v1264 = vadd.f32 %v1232, %v1248
  %v1265 = vadd.f32 %v1233, %v1249
  %v1266 = vld [vmem:[%s1161 + $0x1] sm:$0xff]
  %v1267 = vld [vmem:[%s1161 + $0x9] sm:$0xff]
  %v1268 = vld [vmem:[%s1161 + $0x11] sm:$0xff]
  %v1269 = vld [vmem:[%s1161 + $0x19] sm:$0xf]
  %v1270 = vld [vmem:[%s1161 + $0x21] sm:$0xff]
  %v1271 = vld [vmem:[%s1161 + $0x29] sm:$0xff]
  %v1272 = vld [vmem:[%s1161 + $0x31] sm:$0xff]
  %v1273 = vld [vmem:[%s1161 + $0x39] sm:$0xf]
  %v1274 = vld [vmem:[%s1161 + $0x41] sm:$0xff]
  %v1275 = vld [vmem:[%s1161 + $0x49] sm:$0xff]
  %v1276 = vld [vmem:[%s1161 + $0x51] sm:$0xff]
  %v1277 = vld [vmem:[%s1161 + $0x59] sm:$0xf]
  %v1278 = vld [vmem:[%s1161 + $0x61] sm:$0xff]
  %v1279 = vld [vmem:[%s1161 + $0x69] sm:$0xff]
  %v1280 = vld [vmem:[%s1161 + $0x71] sm:$0xff]
  %v1281 = vld [vmem:[%s1161 + $0x79] sm:$0xf]
  %v1282 = vld [vmem:[%s1161 + $0x81] sm:$0xff]
  %v1283 = vld [vmem:[%s1161 + $0x89] sm:$0xff]
  %v1284 = vld [vmem:[%s1161 + $0x91] sm:$0xff]
  %v1285 = vld [vmem:[%s1161 + $0x99] sm:$0xf]
  %v1286 = vld [vmem:[%s1161 + $0xa1] sm:$0xff]
  %v1287 = vld [vmem:[%s1161 + $0xa9] sm:$0xff]
  %v1288 = vld [vmem:[%s1161 + $0xb1] sm:$0xff]
  %v1289 = vld [vmem:[%s1161 + $0xb9] sm:$0xf]
  %v1290 = vmul.f32 %v1266, %v162
  %v1291 = vmul.f32 %v1267, %v162
  %v1292 = vmul.f32 %v1268, %v162
  %v1293 = vmul.f32 %v1269, %v162
  %v1294 = vmul.f32 %v1270, %v162
  %v1295 = vmul.f32 %v1271, %v162
  %v1296 = vmul.f32 %v1272, %v162
  %v1297 = vmul.f32 %v1273, %v162
  %v1298 = vmul.f32 %v1274, %v162
  %v1299 = vmul.f32 %v1275, %v162
  %v1300 = vmul.f32 %v1276, %v162
  %v1301 = vmul.f32 %v1277, %v162
  %v1302 = vmul.f32 %v1278, %v162
  %v1303 = vmul.f32 %v1279, %v162
  %v1304 = vmul.f32 %v1280, %v162
  %v1305 = vmul.f32 %v1281, %v162
  %v1306 = vadd.f32 %v1250, %v1290
  %v1307 = vadd.f32 %v1251, %v1291
  %v1308 = vadd.f32 %v1252, %v1292
  %v1309 = vadd.f32 %v1253, %v1293
  %v1310 = vadd.f32 %v1254, %v1294
  %v1311 = vadd.f32 %v1255, %v1295
  %v1312 = vadd.f32 %v1256, %v1296
  %v1313 = vadd.f32 %v1257, %v1297
  %v1314 = vadd.f32 %v1258, %v1298
  %v1315 = vadd.f32 %v1259, %v1299
  %v1316 = vadd.f32 %v1260, %v1300
  %v1317 = vadd.f32 %v1261, %v1301
  %v1318 = vadd.f32 %v1262, %v1302
  %v1319 = vadd.f32 %v1263, %v1303
  %v1320 = vadd.f32 %v1264, %v1304
  %v1321 = vadd.f32 %v1265, %v1305
  %v1322 = vmul.f32 %v1270, %v198
  %v1323 = vmul.f32 %v1271, %v198
  %v1324 = vmul.f32 %v1272, %v198
  %v1325 = vmul.f32 %v1273, %v198
  %v1326 = vmul.f32 %v1274, %v198
  %v1327 = vmul.f32 %v1275, %v198
  %v1328 = vmul.f32 %v1276, %v198
  %v1329 = vmul.f32 %v1277, %v198
  %v1330 = vmul.f32 %v1278, %v198
  %v1331 = vmul.f32 %v1279, %v198
  %v1332 = vmul.f32 %v1280, %v198
  %v1333 = vmul.f32 %v1281, %v198
  %v1334 = vmul.f32 %v1282, %v198
  %v1335 = vmul.f32 %v1283, %v198
  %v1336 = vmul.f32 %v1284, %v198
  %v1337 = vmul.f32 %v1285, %v198
  %v1338 = vadd.f32 %v1306, %v1322
  %v1339 = vadd.f32 %v1307, %v1323
  %v1340 = vadd.f32 %v1308, %v1324
  %v1341 = vadd.f32 %v1309, %v1325
  %v1342 = vadd.f32 %v1310, %v1326
  %v1343 = vadd.f32 %v1311, %v1327
  %v1344 = vadd.f32 %v1312, %v1328
  %v1345 = vadd.f32 %v1313, %v1329
  %v1346 = vadd.f32 %v1314, %v1330
  %v1347 = vadd.f32 %v1315, %v1331
  %v1348 = vadd.f32 %v1316, %v1332
  %v1349 = vadd.f32 %v1317, %v1333
  %v1350 = vadd.f32 %v1318, %v1334
  %v1351 = vadd.f32 %v1319, %v1335
  %v1352 = vadd.f32 %v1320, %v1336
  %v1353 = vadd.f32 %v1321, %v1337
  %v1354 = vmul.f32 %v1274, %v234
  %v1355 = vmul.f32 %v1275, %v234
  %v1356 = vmul.f32 %v1276, %v234
  %v1357 = vmul.f32 %v1277, %v234
  %v1358 = vmul.f32 %v1278, %v234
  %v1359 = vmul.f32 %v1279, %v234
  %v1360 = vmul.f32 %v1280, %v234
  %v1361 = vmul.f32 %v1281, %v234
  %v1362 = vmul.f32 %v1282, %v234
  %v1363 = vmul.f32 %v1283, %v234
  %v1364 = vmul.f32 %v1284, %v234
  %v1365 = vmul.f32 %v1285, %v234
  %v1366 = vmul.f32 %v1286, %v234
  %v1367 = vmul.f32 %v1287, %v234
  %v1368 = vmul.f32 %v1288, %v234
  %v1369 = vmul.f32 %v1289, %v234
  %v1370 = vadd.f32 %v1338, %v1354
  %v1371 = vadd.f32 %v1339, %v1355
  %v1372 = vadd.f32 %v1340, %v1356
  %v1373 = vadd.f32 %v1341, %v1357
  %v1374 = vadd.f32 %v1342, %v1358
  %v1375 = vadd.f32 %v1343, %v1359
  %v1376 = vadd.f32 %v1344, %v1360
  %v1377 = vadd.f32 %v1345, %v1361
  %v1378 = vadd.f32 %v1346, %v1362
  %v1379 = vadd.f32 %v1347, %v1363
  %v1380 = vadd.f32 %v1348, %v1364
  %v1381 = vadd.f32 %v1349, %v1365
  %v1382 = vadd.f32 %v1350, %v1366
  %v1383 = vadd.f32 %v1351, %v1367
  %v1384 = vadd.f32 %v1352, %v1368
  %v1385 = vadd.f32 %v1353, %v1369
  %v1386 = vld [vmem:[%s1161 + $0x2] sm:$0xff]
  %v1387 = vld [vmem:[%s1161 + $0xa] sm:$0xff]
  %v1388 = vld [vmem:[%s1161 + $0x12] sm:$0xff]
  %v1389 = vld [vmem:[%s1161 + $0x1a] sm:$0xf]
  %v1390 = vld [vmem:[%s1161 + $0x22] sm:$0xff]
  %v1391 = vld [vmem:[%s1161 + $0x2a] sm:$0xff]
  %v1392 = vld [vmem:[%s1161 + $0x32] sm:$0xff]
  %v1393 = vld [vmem:[%s1161 + $0x3a] sm:$0xf]
  %v1394 = vld [vmem:[%s1161 + $0x42] sm:$0xff]
  %v1395 = vld [vmem:[%s1161 + $0x4a] sm:$0xff]
  %v1396 = vld [vmem:[%s1161 + $0x52] sm:$0xff]
  %v1397 = vld [vmem:[%s1161 + $0x5a] sm:$0xf]
  %v1398 = vld [vmem:[%s1161 + $0x62] sm:$0xff]
  %v1399 = vld [vmem:[%s1161 + $0x6a] sm:$0xff]
  %v1400 = vld [vmem:[%s1161 + $0x72] sm:$0xff]
  %v1401 = vld [vmem:[%s1161 + $0x7a] sm:$0xf]
  %v1402 = vld [vmem:[%s1161 + $0x82] sm:$0xff]
  %v1403 = vld [vmem:[%s1161 + $0x8a] sm:$0xff]
  %v1404 = vld [vmem:[%s1161 + $0x92] sm:$0xff]
  %v1405 = vld [vmem:[%s1161 + $0x9a] sm:$0xf]
  %v1406 = vld [vmem:[%s1161 + $0xa2] sm:$0xff]
  %v1407 = vld [vmem:[%s1161 + $0xaa] sm:$0xff]
  %v1408 = vld [vmem:[%s1161 + $0xb2] sm:$0xff]
  %v1409 = vld [vmem:[%s1161 + $0xba] sm:$0xf]
  %v1410 = vmul.f32 %v1386, %v294
  %v1411 = vmul.f32 %v1387, %v294
  %v1412 = vmul.f32 %v1388, %v294
  %v1413 = vmul.f32 %v1389, %v294
  %v1414 = vmul.f32 %v1390, %v294
  %v1415 = vmul.f32 %v1391, %v294
  %v1416 = vmul.f32 %v1392, %v294
  %v1417 = vmul.f32 %v1393, %v294
  %v1418 = vmul.f32 %v1394, %v294
  %v1419 = vmul.f32 %v1395, %v294
  %v1420 = vmul.f32 %v1396, %v294
  %v1421 = vmul.f32 %v1397, %v294
  %v1422 = vmul.f32 %v1398, %v294
  %v1423 = vmul.f32 %v1399, %v294
  %v1424 = vmul.f32 %v1400, %v294
  %v1425 = vmul.f32 %v1401, %v294
  %v1426 = vadd.f32 %v1370, %v1410
  %v1427 = vadd.f32 %v1371, %v1411
  %v1428 = vadd.f32 %v1372, %v1412
  %v1429 = vadd.f32 %v1373, %v1413
  %v1430 = vadd.f32 %v1374, %v1414
  %v1431 = vadd.f32 %v1375, %v1415
  %v1432 = vadd.f32 %v1376, %v1416
  %v1433 = vadd.f32 %v1377, %v1417
  %v1434 = vadd.f32 %v1378, %v1418
  %v1435 = vadd.f32 %v1379, %v1419
  %v1436 = vadd.f32 %v1380, %v1420
  %v1437 = vadd.f32 %v1381, %v1421
  %v1438 = vadd.f32 %v1382, %v1422
  %v1439 = vadd.f32 %v1383, %v1423
  %v1440 = vadd.f32 %v1384, %v1424
  %v1441 = vadd.f32 %v1385, %v1425
  %v1442 = vmul.f32 %v1390, %v330
  %v1443 = vmul.f32 %v1391, %v330
  %v1444 = vmul.f32 %v1392, %v330
  %v1445 = vmul.f32 %v1393, %v330
  %v1446 = vmul.f32 %v1394, %v330
  %v1447 = vmul.f32 %v1395, %v330
  %v1448 = vmul.f32 %v1396, %v330
  %v1449 = vmul.f32 %v1397, %v330
  %v1450 = vmul.f32 %v1398, %v330
  %v1451 = vmul.f32 %v1399, %v330
  %v1452 = vmul.f32 %v1400, %v330
  %v1453 = vmul.f32 %v1401, %v330
  %v1454 = vmul.f32 %v1402, %v330
  %v1455 = vmul.f32 %v1403, %v330
  %v1456 = vmul.f32 %v1404, %v330
  %v1457 = vmul.f32 %v1405, %v330
  %v1458 = vadd.f32 %v1426, %v1442
  %v1459 = vadd.f32 %v1427, %v1443
  %v1460 = vadd.f32 %v1428, %v1444
  %v1461 = vadd.f32 %v1429, %v1445
  %v1462 = vadd.f32 %v1430, %v1446
  %v1463 = vadd.f32 %v1431, %v1447
  %v1464 = vadd.f32 %v1432, %v1448
  %v1465 = vadd.f32 %v1433, %v1449
  %v1466 = vadd.f32 %v1434, %v1450
  %v1467 = vadd.f32 %v1435, %v1451
  %v1468 = vadd.f32 %v1436, %v1452
  %v1469 = vadd.f32 %v1437, %v1453
  %v1470 = vadd.f32 %v1438, %v1454
  %v1471 = vadd.f32 %v1439, %v1455
  %v1472 = vadd.f32 %v1440, %v1456
  %v1473 = vadd.f32 %v1441, %v1457
  %v1474 = vmul.f32 %v1394, %v366
  %v1475 = vmul.f32 %v1395, %v366
  %v1476 = vmul.f32 %v1396, %v366
  %v1477 = vmul.f32 %v1397, %v366
  %v1478 = vmul.f32 %v1398, %v366
  %v1479 = vmul.f32 %v1399, %v366
  %v1480 = vmul.f32 %v1400, %v366
  %v1481 = vmul.f32 %v1401, %v366
  %v1482 = vmul.f32 %v1402, %v366
  %v1483 = vmul.f32 %v1403, %v366
  %v1484 = vmul.f32 %v1404, %v366
  %v1485 = vmul.f32 %v1405, %v366
  %v1486 = vmul.f32 %v1406, %v366
  %v1487 = vmul.f32 %v1407, %v366
  %v1488 = vmul.f32 %v1408, %v366
  %v1489 = vmul.f32 %v1409, %v366
  %v1490 = vadd.f32 %v1458, %v1474
  %v1491 = vadd.f32 %v1459, %v1475
  %v1492 = vadd.f32 %v1460, %v1476
  %v1493 = vadd.f32 %v1461, %v1477
  %v1494 = vadd.f32 %v1462, %v1478
  %v1495 = vadd.f32 %v1463, %v1479
  %v1496 = vadd.f32 %v1464, %v1480
  %v1497 = vadd.f32 %v1465, %v1481
  %v1498 = vadd.f32 %v1466, %v1482
  %v1499 = vadd.f32 %v1467, %v1483
  %v1500 = vadd.f32 %v1468, %v1484
  %v1501 = vadd.f32 %v1469, %v1485
  %v1502 = vadd.f32 %v1470, %v1486
  %v1503 = vadd.f32 %v1471, %v1487
  %v1504 = vadd.f32 %v1472, %v1488
  %v1505 = vadd.f32 %v1473, %v1489
  %s1506 = scalar_lea.vmem %s4, 256
  %1507 = vst [vmem:[%s1506] sm:$0xff] %v1490
  %1508 = vst [vmem:[%s1506 + $0x8] sm:$0xff] %v1491
  %1509 = vst [vmem:[%s1506 + $0x10] sm:$0xff] %v1492
  %1510 = vst [vmem:[%s1506 + $0x18] sm:$0xf] %v1493
  %1511 = vst [vmem:[%s1506 + $0x20] sm:$0xff] %v1494
  %1512 = vst [vmem:[%s1506 + $0x28] sm:$0xff] %v1495
  %1513 = vst [vmem:[%s1506 + $0x30] sm:$0xff] %v1496
  %1514 = vst [vmem:[%s1506 + $0x38] sm:$0xf] %v1497
  %1515 = vst [vmem:[%s1506 + $0x40] sm:$0xff] %v1498
  %1516 = vst [vmem:[%s1506 + $0x48] sm:$0xff] %v1499
  %1517 = vst [vmem:[%s1506 + $0x50] sm:$0xff] %v1500
  %1518 = vst [vmem:[%s1506 + $0x58] sm:$0xf] %v1501
  %1519 = vst [vmem:[%s1506 + $0x60] sm:$0xff] %v1502
  %1520 = vst [vmem:[%s1506 + $0x68] sm:$0xff] %v1503
  %1521 = vst [vmem:[%s1506 + $0x70] sm:$0xff] %v1504
  %1522 = vst [vmem:[%s1506 + $0x78] sm:$0xf] %v1505
  %v1539 = vcombine.high %v1490, %v1490
  %v1540 = vcombine.high %v1491, %v1491
  %v1541 = vcombine.high %v1492, %v1492
  %v1542 = vcombine.high %v1494, %v1494
  %v1543 = vcombine.high %v1495, %v1495
  %v1544 = vcombine.high %v1496, %v1496
  %v1545 = vcombine.high %v1498, %v1498
  %v1546 = vcombine.high %v1499, %v1499
  %v1547 = vcombine.high %v1500, %v1500
  %v1548 = vcombine.high %v1502, %v1502
  %v1549 = vcombine.high %v1503, %v1503
  %v1550 = vcombine.high %v1504, %v1504
  %v1563 = vcombine.low %v1490, %v1539
  %v1564 = vcombine.low %v1491, %v1540
  %v1565 = vcombine.low %v1492, %v1541
  %v1566 = vcombine.low %v1493, %v1494
  %v1567 = vcombine.low %v1542, %v1495
  %v1568 = vcombine.low %v1543, %v1496
  %v1569 = vcombine.low %v1544, %v1497
  %v1570 = vcombine.low %v1498, %v1545
  %v1571 = vcombine.low %v1499, %v1546
  %v1572 = vcombine.low %v1500, %v1547
  %v1573 = vcombine.low %v1501, %v1502
  %v1574 = vcombine.low %v1548, %v1503
  %v1575 = vcombine.low %v1549, %v1504
  %v1576 = vcombine.low %v1550, %v1505
  %v1591 = vadd.f32 %v1563, %v1564
  %v1592 = vadd.f32 %v1591, %v1565
  %v1593 = vadd.f32 %v1592, %v1566
  %v1594 = vadd.f32 %v1593, %v1567
  %v1595 = vadd.f32 %v1594, %v1568
  %v1596 = vadd.f32 %v1595, %v1569
  %v1597 = vadd.f32 %v1596, %v1570
  %v1598 = vadd.f32 %v1597, %v1571
  %v1599 = vadd.f32 %v1598, %v1572
  %v1600 = vadd.f32 %v1599, %v1573
  %v1601 = vadd.f32 %v1600, %v1574
  %v1602 = vadd.f32 %v1601, %v1575
  %v1603 = vadd.f32 %v1602, %v1576
  %v1604 = vrot.slane %v1603, 4
  %v1605 = vadd.f32 %v1603, %v1604
  %v1606 = vrot.slane %v1605, 2
  %v1607 = vadd.f32 %v1605, %v1606
  %v1608 = vrot.slane %v1607, 1
  %v1609 = vadd.f32 %v1607, %v1608
  %v1610 = vadd.f32 %v1056, %v1609
  %v1611 = vmul.f32 %v1490, %v1490
  %v1612 = vmul.f32 %v1539, %v1539
  %v1613 = vmul.f32 %v1491, %v1491
  %v1614 = vmul.f32 %v1540, %v1540
  %v1615 = vmul.f32 %v1492, %v1492
  %v1616 = vmul.f32 %v1541, %v1541
  %v1617 = vmul.f32 %v1493, %v1493
  %v1618 = vmul.f32 %v1494, %v1494
  %v1619 = vmul.f32 %v1542, %v1542
  %v1620 = vmul.f32 %v1495, %v1495
  %v1621 = vmul.f32 %v1543, %v1543
  %v1622 = vmul.f32 %v1496, %v1496
  %v1623 = vmul.f32 %v1544, %v1544
  %v1624 = vmul.f32 %v1497, %v1497
  %v1625 = vmul.f32 %v1498, %v1498
  %v1626 = vmul.f32 %v1545, %v1545
  %v1627 = vmul.f32 %v1499, %v1499
  %v1628 = vmul.f32 %v1546, %v1546
  %v1629 = vmul.f32 %v1500, %v1500
  %v1630 = vmul.f32 %v1547, %v1547
  %v1631 = vmul.f32 %v1501, %v1501
  %v1632 = vmul.f32 %v1502, %v1502
  %v1633 = vmul.f32 %v1548, %v1548
  %v1634 = vmul.f32 %v1503, %v1503
  %v1635 = vmul.f32 %v1549, %v1549
  %v1636 = vmul.f32 %v1504, %v1504
  %v1637 = vmul.f32 %v1550, %v1550
  %v1638 = vmul.f32 %v1505, %v1505
  %v1667 = vcombine.low %v1611, %v1612
  %v1668 = vcombine.low %v1613, %v1614
  %v1669 = vcombine.low %v1615, %v1616
  %v1670 = vcombine.low %v1617, %v1618
  %v1671 = vcombine.low %v1619, %v1620
  %v1672 = vcombine.low %v1621, %v1622
  %v1673 = vcombine.low %v1623, %v1624
  %v1674 = vcombine.low %v1625, %v1626
  %v1675 = vcombine.low %v1627, %v1628
  %v1676 = vcombine.low %v1629, %v1630
  %v1677 = vcombine.low %v1631, %v1632
  %v1678 = vcombine.low %v1633, %v1634
  %v1679 = vcombine.low %v1635, %v1636
  %v1680 = vcombine.low %v1637, %v1638
  %v1695 = vadd.f32 %v1667, %v1668
  %v1696 = vadd.f32 %v1695, %v1669
  %v1697 = vadd.f32 %v1696, %v1670
  %v1698 = vadd.f32 %v1697, %v1671
  %v1699 = vadd.f32 %v1698, %v1672
  %v1700 = vadd.f32 %v1699, %v1673
  %v1701 = vadd.f32 %v1700, %v1674
  %v1702 = vadd.f32 %v1701, %v1675
  %v1703 = vadd.f32 %v1702, %v1676
  %v1704 = vadd.f32 %v1703, %v1677
  %v1705 = vadd.f32 %v1704, %v1678
  %v1706 = vadd.f32 %v1705, %v1679
  %v1707 = vadd.f32 %v1706, %v1680
  %v1708 = vrot.slane %v1707, 4
  %v1709 = vadd.f32 %v1707, %v1708
  %v1710 = vrot.slane %v1709, 2
  %v1711 = vadd.f32 %v1709, %v1710
  %v1712 = vrot.slane %v1711, 1
  %v1713 = vadd.f32 %v1711, %v1712
  %v1714 = vadd.f32 %v1160, %v1713
  %s1715 = scalar_lea.vmem %s0, 384
  %v1716 = vld [vmem:[%s1715] sm:$0xff]
  %v1717 = vld [vmem:[%s1715 + $0x8] sm:$0xff]
  %v1718 = vld [vmem:[%s1715 + $0x10] sm:$0xff]
  %v1719 = vld [vmem:[%s1715 + $0x18] sm:$0xf]
  %v1720 = vld [vmem:[%s1715 + $0x20] sm:$0xff]
  %v1721 = vld [vmem:[%s1715 + $0x28] sm:$0xff]
  %v1722 = vld [vmem:[%s1715 + $0x30] sm:$0xff]
  %v1723 = vld [vmem:[%s1715 + $0x38] sm:$0xf]
  %v1724 = vld [vmem:[%s1715 + $0x40] sm:$0xff]
  %v1725 = vld [vmem:[%s1715 + $0x48] sm:$0xff]
  %v1726 = vld [vmem:[%s1715 + $0x50] sm:$0xff]
  %v1727 = vld [vmem:[%s1715 + $0x58] sm:$0xf]
  %v1728 = vld [vmem:[%s1715 + $0x60] sm:$0xff]
  %v1729 = vld [vmem:[%s1715 + $0x68] sm:$0xff]
  %v1730 = vld [vmem:[%s1715 + $0x70] sm:$0xff]
  %v1731 = vld [vmem:[%s1715 + $0x78] sm:$0xf]
  %v1732 = vld [vmem:[%s1715 + $0x80] sm:$0xff]
  %v1733 = vld [vmem:[%s1715 + $0x88] sm:$0xff]
  %v1734 = vld [vmem:[%s1715 + $0x90] sm:$0xff]
  %v1735 = vld [vmem:[%s1715 + $0x98] sm:$0xf]
  %v1736 = vld [vmem:[%s1715 + $0xa0] sm:$0xff]
  %v1737 = vld [vmem:[%s1715 + $0xa8] sm:$0xff]
  %v1738 = vld [vmem:[%s1715 + $0xb0] sm:$0xff]
  %v1739 = vld [vmem:[%s1715 + $0xb8] sm:$0xf]
  %v1740 = vmul.f32 %v1716, %v46
  %v1741 = vmul.f32 %v1717, %v46
  %v1742 = vmul.f32 %v1718, %v46
  %v1743 = vmul.f32 %v1719, %v46
  %v1744 = vmul.f32 %v1720, %v46
  %v1745 = vmul.f32 %v1721, %v46
  %v1746 = vmul.f32 %v1722, %v46
  %v1747 = vmul.f32 %v1723, %v46
  %v1748 = vmul.f32 %v1724, %v46
  %v1749 = vmul.f32 %v1725, %v46
  %v1750 = vmul.f32 %v1726, %v46
  %v1751 = vmul.f32 %v1727, %v46
  %v1752 = vmul.f32 %v1728, %v46
  %v1753 = vmul.f32 %v1729, %v46
  %v1754 = vmul.f32 %v1730, %v46
  %v1755 = vmul.f32 %v1731, %v46
  %v1756 = vmul.f32 %v1720, %v66
  %v1757 = vmul.f32 %v1721, %v66
  %v1758 = vmul.f32 %v1722, %v66
  %v1759 = vmul.f32 %v1723, %v66
  %v1760 = vmul.f32 %v1724, %v66
  %v1761 = vmul.f32 %v1725, %v66
  %v1762 = vmul.f32 %v1726, %v66
  %v1763 = vmul.f32 %v1727, %v66
  %v1764 = vmul.f32 %v1728, %v66
  %v1765 = vmul.f32 %v1729, %v66
  %v1766 = vmul.f32 %v1730, %v66
  %v1767 = vmul.f32 %v1731, %v66
  %v1768 = vmul.f32 %v1732, %v66
  %v1769 = vmul.f32 %v1733, %v66
  %v1770 = vmul.f32 %v1734, %v66
  %v1771 = vmul.f32 %v1735, %v66
  %v1772 = vadd.f32 %v1740, %v1756
  %v1773 = vadd.f32 %v1741, %v1757
  %v1774 = vadd.f32 %v1742, %v1758
  %v1775 = vadd.f32 %v1743, %v1759
  %v1776 = vadd.f32 %v1744, %v1760
  %v1777 = vadd.f32 %v1745, %v1761
  %v1778 = vadd.f32 %v1746, %v1762
  %v1779 = vadd.f32 %v1747, %v1763
  %v1780 = vadd.f32 %v1748, %v1764
  %v1781 = vadd.f32 %v1749, %v1765
  %v1782 = vadd.f32 %v1750, %v1766
  %v1783 = vadd.f32 %v1751, %v1767
  %v1784 = vadd.f32 %v1752, %v1768
  %v1785 = vadd.f32 %v1753, %v1769
  %v1786 = vadd.f32 %v1754, %v1770
  %v1787 = vadd.f32 %v1755, %v1771
  %v1788 = vmul.f32 %v1724, %v102
  %v1789 = vmul.f32 %v1725, %v102
  %v1790 = vmul.f32 %v1726, %v102
  %v1791 = vmul.f32 %v1727, %v102
  %v1792 = vmul.f32 %v1728, %v102
  %v1793 = vmul.f32 %v1729, %v102
  %v1794 = vmul.f32 %v1730, %v102
  %v1795 = vmul.f32 %v1731, %v102
  %v1796 = vmul.f32 %v1732, %v102
  %v1797 = vmul.f32 %v1733, %v102
  %v1798 = vmul.f32 %v1734, %v102
  %v1799 = vmul.f32 %v1735, %v102
  %v1800 = vmul.f32 %v1736, %v102
  %v1801 = vmul.f32 %v1737, %v102
  %v1802 = vmul.f32 %v1738, %v102
  %v1803 = vmul.f32 %v1739, %v102
  %v1804 = vadd.f32 %v1772, %v1788
  %v1805 = vadd.f32 %v1773, %v1789
  %v1806 = vadd.f32 %v1774, %v1790
  %v1807 = vadd.f32 %v1775, %v1791
  %v1808 = vadd.f32 %v1776, %v1792
  %v1809 = vadd.f32 %v1777, %v1793
  %v1810 = vadd.f32 %v1778, %v1794
  %v1811 = vadd.f32 %v1779, %v1795
  %v1812 = vadd.f32 %v1780, %v1796
  %v1813 = vadd.f32 %v1781, %v1797
  %v1814 = vadd.f32 %v1782, %v1798
  %v1815 = vadd.f32 %v1783, %v1799
  %v1816 = vadd.f32 %v1784, %v1800
  %v1817 = vadd.f32 %v1785, %v1801
  %v1818 = vadd.f32 %v1786, %v1802
  %v1819 = vadd.f32 %v1787, %v1803
  %v1820 = vld [vmem:[%s1715 + $0x1] sm:$0xff]
  %v1821 = vld [vmem:[%s1715 + $0x9] sm:$0xff]
  %v1822 = vld [vmem:[%s1715 + $0x11] sm:$0xff]
  %v1823 = vld [vmem:[%s1715 + $0x19] sm:$0xf]
  %v1824 = vld [vmem:[%s1715 + $0x21] sm:$0xff]
  %v1825 = vld [vmem:[%s1715 + $0x29] sm:$0xff]
  %v1826 = vld [vmem:[%s1715 + $0x31] sm:$0xff]
  %v1827 = vld [vmem:[%s1715 + $0x39] sm:$0xf]
  %v1828 = vld [vmem:[%s1715 + $0x41] sm:$0xff]
  %v1829 = vld [vmem:[%s1715 + $0x49] sm:$0xff]
  %v1830 = vld [vmem:[%s1715 + $0x51] sm:$0xff]
  %v1831 = vld [vmem:[%s1715 + $0x59] sm:$0xf]
  %v1832 = vld [vmem:[%s1715 + $0x61] sm:$0xff]
  %v1833 = vld [vmem:[%s1715 + $0x69] sm:$0xff]
  %v1834 = vld [vmem:[%s1715 + $0x71] sm:$0xff]
  %v1835 = vld [vmem:[%s1715 + $0x79] sm:$0xf]
  %v1836 = vld [vmem:[%s1715 + $0x81] sm:$0xff]
  %v1837 = vld [vmem:[%s1715 + $0x89] sm:$0xff]
  %v1838 = vld [vmem:[%s1715 + $0x91] sm:$0xff]
  %v1839 = vld [vmem:[%s1715 + $0x99] sm:$0xf]
  %v1840 = vld [vmem:[%s1715 + $0xa1] sm:$0xff]
  %v1841 = vld [vmem:[%s1715 + $0xa9] sm:$0xff]
  %v1842 = vld [vmem:[%s1715 + $0xb1] sm:$0xff]
  %v1843 = vld [vmem:[%s1715 + $0xb9] sm:$0xf]
  %v1844 = vmul.f32 %v1820, %v162
  %v1845 = vmul.f32 %v1821, %v162
  %v1846 = vmul.f32 %v1822, %v162
  %v1847 = vmul.f32 %v1823, %v162
  %v1848 = vmul.f32 %v1824, %v162
  %v1849 = vmul.f32 %v1825, %v162
  %v1850 = vmul.f32 %v1826, %v162
  %v1851 = vmul.f32 %v1827, %v162
  %v1852 = vmul.f32 %v1828, %v162
  %v1853 = vmul.f32 %v1829, %v162
  %v1854 = vmul.f32 %v1830, %v162
  %v1855 = vmul.f32 %v1831, %v162
  %v1856 = vmul.f32 %v1832, %v162
  %v1857 = vmul.f32 %v1833, %v162
  %v1858 = vmul.f32 %v1834, %v162
  %v1859 = vmul.f32 %v1835, %v162
  %v1860 = vadd.f32 %v1804, %v1844
  %v1861 = vadd.f32 %v1805, %v1845
  %v1862 = vadd.f32 %v1806, %v1846
  %v1863 = vadd.f32 %v1807, %v1847
  %v1864 = vadd.f32 %v1808, %v1848
  %v1865 = vadd.f32 %v1809, %v1849
  %v1866 = vadd.f32 %v1810, %v1850
  %v1867 = vadd.f32 %v1811, %v1851
  %v1868 = vadd.f32 %v1812, %v1852
  %v1869 = vadd.f32 %v1813, %v1853
  %v1870 = vadd.f32 %v1814, %v1854
  %v1871 = vadd.f32 %v1815, %v1855
  %v1872 = vadd.f32 %v1816, %v1856
  %v1873 = vadd.f32 %v1817, %v1857
  %v1874 = vadd.f32 %v1818, %v1858
  %v1875 = vadd.f32 %v1819, %v1859
  %v1876 = vmul.f32 %v1824, %v198
  %v1877 = vmul.f32 %v1825, %v198
  %v1878 = vmul.f32 %v1826, %v198
  %v1879 = vmul.f32 %v1827, %v198
  %v1880 = vmul.f32 %v1828, %v198
  %v1881 = vmul.f32 %v1829, %v198
  %v1882 = vmul.f32 %v1830, %v198
  %v1883 = vmul.f32 %v1831, %v198
  %v1884 = vmul.f32 %v1832, %v198
  %v1885 = vmul.f32 %v1833, %v198
  %v1886 = vmul.f32 %v1834, %v198
  %v1887 = vmul.f32 %v1835, %v198
  %v1888 = vmul.f32 %v1836, %v198
  %v1889 = vmul.f32 %v1837, %v198
  %v1890 = vmul.f32 %v1838, %v198
  %v1891 = vmul.f32 %v1839, %v198
  %v1892 = vadd.f32 %v1860, %v1876
  %v1893 = vadd.f32 %v1861, %v1877
  %v1894 = vadd.f32 %v1862, %v1878
  %v1895 = vadd.f32 %v1863, %v1879
  %v1896 = vadd.f32 %v1864, %v1880
  %v1897 = vadd.f32 %v1865, %v1881
  %v1898 = vadd.f32 %v1866, %v1882
  %v1899 = vadd.f32 %v1867, %v1883
  %v1900 = vadd.f32 %v1868, %v1884
  %v1901 = vadd.f32 %v1869, %v1885
  %v1902 = vadd.f32 %v1870, %v1886
  %v1903 = vadd.f32 %v1871, %v1887
  %v1904 = vadd.f32 %v1872, %v1888
  %v1905 = vadd.f32 %v1873, %v1889
  %v1906 = vadd.f32 %v1874, %v1890
  %v1907 = vadd.f32 %v1875, %v1891
  %v1908 = vmul.f32 %v1828, %v234
  %v1909 = vmul.f32 %v1829, %v234
  %v1910 = vmul.f32 %v1830, %v234
  %v1911 = vmul.f32 %v1831, %v234
  %v1912 = vmul.f32 %v1832, %v234
  %v1913 = vmul.f32 %v1833, %v234
  %v1914 = vmul.f32 %v1834, %v234
  %v1915 = vmul.f32 %v1835, %v234
  %v1916 = vmul.f32 %v1836, %v234
  %v1917 = vmul.f32 %v1837, %v234
  %v1918 = vmul.f32 %v1838, %v234
  %v1919 = vmul.f32 %v1839, %v234
  %v1920 = vmul.f32 %v1840, %v234
  %v1921 = vmul.f32 %v1841, %v234
  %v1922 = vmul.f32 %v1842, %v234
  %v1923 = vmul.f32 %v1843, %v234
  %v1924 = vadd.f32 %v1892, %v1908
  %v1925 = vadd.f32 %v1893, %v1909
  %v1926 = vadd.f32 %v1894, %v1910
  %v1927 = vadd.f32 %v1895, %v1911
  %v1928 = vadd.f32 %v1896, %v1912
  %v1929 = vadd.f32 %v1897, %v1913
  %v1930 = vadd.f32 %v1898, %v1914
  %v1931 = vadd.f32 %v1899, %v1915
  %v1932 = vadd.f32 %v1900, %v1916
  %v1933 = vadd.f32 %v1901, %v1917
  %v1934 = vadd.f32 %v1902, %v1918
  %v1935 = vadd.f32 %v1903, %v1919
  %v1936 = vadd.f32 %v1904, %v1920
  %v1937 = vadd.f32 %v1905, %v1921
  %v1938 = vadd.f32 %v1906, %v1922
  %v1939 = vadd.f32 %v1907, %v1923
  %v1940 = vld [vmem:[%s1715 + $0x2] sm:$0xff]
  %v1941 = vld [vmem:[%s1715 + $0xa] sm:$0xff]
  %v1942 = vld [vmem:[%s1715 + $0x12] sm:$0xff]
  %v1943 = vld [vmem:[%s1715 + $0x1a] sm:$0xf]
  %v1944 = vld [vmem:[%s1715 + $0x22] sm:$0xff]
  %v1945 = vld [vmem:[%s1715 + $0x2a] sm:$0xff]
  %v1946 = vld [vmem:[%s1715 + $0x32] sm:$0xff]
  %v1947 = vld [vmem:[%s1715 + $0x3a] sm:$0xf]
  %v1948 = vld [vmem:[%s1715 + $0x42] sm:$0xff]
  %v1949 = vld [vmem:[%s1715 + $0x4a] sm:$0xff]
  %v1950 = vld [vmem:[%s1715 + $0x52] sm:$0xff]
  %v1951 = vld [vmem:[%s1715 + $0x5a] sm:$0xf]
  %v1952 = vld [vmem:[%s1715 + $0x62] sm:$0xff]
  %v1953 = vld [vmem:[%s1715 + $0x6a] sm:$0xff]
  %v1954 = vld [vmem:[%s1715 + $0x72] sm:$0xff]
  %v1955 = vld [vmem:[%s1715 + $0x7a] sm:$0xf]
  %v1956 = vld [vmem:[%s1715 + $0x82] sm:$0xff]
  %v1957 = vld [vmem:[%s1715 + $0x8a] sm:$0xff]
  %v1958 = vld [vmem:[%s1715 + $0x92] sm:$0xff]
  %v1959 = vld [vmem:[%s1715 + $0x9a] sm:$0xf]
  %v1960 = vld [vmem:[%s1715 + $0xa2] sm:$0xff]
  %v1961 = vld [vmem:[%s1715 + $0xaa] sm:$0xff]
  %v1962 = vld [vmem:[%s1715 + $0xb2] sm:$0xff]
  %v1963 = vld [vmem:[%s1715 + $0xba] sm:$0xf]
  %v1964 = vmul.f32 %v1940, %v294
  %v1965 = vmul.f32 %v1941, %v294
  %v1966 = vmul.f32 %v1942, %v294
  %v1967 = vmul.f32 %v1943, %v294
  %v1968 = vmul.f32 %v1944, %v294
  %v1969 = vmul.f32 %v1945, %v294
  %v1970 = vmul.f32 %v1946, %v294
  %v1971 = vmul.f32 %v1947, %v294
  %v1972 = vmul.f32 %v1948, %v294
  %v1973 = vmul.f32 %v1949, %v294
  %v1974 = vmul.f32 %v1950, %v294
  %v1975 = vmul.f32 %v1951, %v294
  %v1976 = vmul.f32 %v1952, %v294
  %v1977 = vmul.f32 %v1953, %v294
  %v1978 = vmul.f32 %v1954, %v294
  %v1979 = vmul.f32 %v1955, %v294
  %v1980 = vadd.f32 %v1924, %v1964
  %v1981 = vadd.f32 %v1925, %v1965
  %v1982 = vadd.f32 %v1926, %v1966
  %v1983 = vadd.f32 %v1927, %v1967
  %v1984 = vadd.f32 %v1928, %v1968
  %v1985 = vadd.f32 %v1929, %v1969
  %v1986 = vadd.f32 %v1930, %v1970
  %v1987 = vadd.f32 %v1931, %v1971
  %v1988 = vadd.f32 %v1932, %v1972
  %v1989 = vadd.f32 %v1933, %v1973
  %v1990 = vadd.f32 %v1934, %v1974
  %v1991 = vadd.f32 %v1935, %v1975
  %v1992 = vadd.f32 %v1936, %v1976
  %v1993 = vadd.f32 %v1937, %v1977
  %v1994 = vadd.f32 %v1938, %v1978
  %v1995 = vadd.f32 %v1939, %v1979
  %v1996 = vmul.f32 %v1944, %v330
  %v1997 = vmul.f32 %v1945, %v330
  %v1998 = vmul.f32 %v1946, %v330
  %v1999 = vmul.f32 %v1947, %v330
  %v2000 = vmul.f32 %v1948, %v330
  %v2001 = vmul.f32 %v1949, %v330
  %v2002 = vmul.f32 %v1950, %v330
  %v2003 = vmul.f32 %v1951, %v330
  %v2004 = vmul.f32 %v1952, %v330
  %v2005 = vmul.f32 %v1953, %v330
  %v2006 = vmul.f32 %v1954, %v330
  %v2007 = vmul.f32 %v1955, %v330
  %v2008 = vmul.f32 %v1956, %v330
  %v2009 = vmul.f32 %v1957, %v330
  %v2010 = vmul.f32 %v1958, %v330
  %v2011 = vmul.f32 %v1959, %v330
  %v2012 = vadd.f32 %v1980, %v1996
  %v2013 = vadd.f32 %v1981, %v1997
  %v2014 = vadd.f32 %v1982, %v1998
  %v2015 = vadd.f32 %v1983, %v1999
  %v2016 = vadd.f32 %v1984, %v2000
  %v2017 = vadd.f32 %v1985, %v2001
  %v2018 = vadd.f32 %v1986, %v2002
  %v2019 = vadd.f32 %v1987, %v2003
  %v2020 = vadd.f32 %v1988, %v2004
  %v2021 = vadd.f32 %v1989, %v2005
  %v2022 = vadd.f32 %v1990, %v2006
  %v2023 = vadd.f32 %v1991, %v2007
  %v2024 = vadd.f32 %v1992, %v2008
  %v2025 = vadd.f32 %v1993, %v2009
  %v2026 = vadd.f32 %v1994, %v2010
  %v2027 = vadd.f32 %v1995, %v2011
  %v2028 = vmul.f32 %v1948, %v366
  %v2029 = vmul.f32 %v1949, %v366
  %v2030 = vmul.f32 %v1950, %v366
  %v2031 = vmul.f32 %v1951, %v366
  %v2032 = vmul.f32 %v1952, %v366
  %v2033 = vmul.f32 %v1953, %v366
  %v2034 = vmul.f32 %v1954, %v366
  %v2035 = vmul.f32 %v1955, %v366
  %v2036 = vmul.f32 %v1956, %v366
  %v2037 = vmul.f32 %v1957, %v366
  %v2038 = vmul.f32 %v1958, %v366
  %v2039 = vmul.f32 %v1959, %v366
  %v2040 = vmul.f32 %v1960, %v366
  %v2041 = vmul.f32 %v1961, %v366
  %v2042 = vmul.f32 %v1962, %v366
  %v2043 = vmul.f32 %v1963, %v366
  %v2044 = vadd.f32 %v2012, %v2028
  %v2045 = vadd.f32 %v2013, %v2029
  %v2046 = vadd.f32 %v2014, %v2030
  %v2047 = vadd.f32 %v2015, %v2031
  %v2048 = vadd.f32 %v2016, %v2032
  %v2049 = vadd.f32 %v2017, %v2033
  %v2050 = vadd.f32 %v2018, %v2034
  %v2051 = vadd.f32 %v2019, %v2035
  %v2052 = vadd.f32 %v2020, %v2036
  %v2053 = vadd.f32 %v2021, %v2037
  %v2054 = vadd.f32 %v2022, %v2038
  %v2055 = vadd.f32 %v2023, %v2039
  %v2056 = vadd.f32 %v2024, %v2040
  %v2057 = vadd.f32 %v2025, %v2041
  %v2058 = vadd.f32 %v2026, %v2042
  %v2059 = vadd.f32 %v2027, %v2043
  %s2060 = scalar_lea.vmem %s4, 384
  %2061 = vst [vmem:[%s2060] sm:$0xff] %v2044
  %2062 = vst [vmem:[%s2060 + $0x8] sm:$0xff] %v2045
  %2063 = vst [vmem:[%s2060 + $0x10] sm:$0xff] %v2046
  %2064 = vst [vmem:[%s2060 + $0x18] sm:$0xf] %v2047
  %2065 = vst [vmem:[%s2060 + $0x20] sm:$0xff] %v2048
  %2066 = vst [vmem:[%s2060 + $0x28] sm:$0xff] %v2049
  %2067 = vst [vmem:[%s2060 + $0x30] sm:$0xff] %v2050
  %2068 = vst [vmem:[%s2060 + $0x38] sm:$0xf] %v2051
  %2069 = vst [vmem:[%s2060 + $0x40] sm:$0xff] %v2052
  %2070 = vst [vmem:[%s2060 + $0x48] sm:$0xff] %v2053
  %2071 = vst [vmem:[%s2060 + $0x50] sm:$0xff] %v2054
  %2072 = vst [vmem:[%s2060 + $0x58] sm:$0xf] %v2055
  %2073 = vst [vmem:[%s2060 + $0x60] sm:$0xff] %v2056
  %2074 = vst [vmem:[%s2060 + $0x68] sm:$0xff] %v2057
  %2075 = vst [vmem:[%s2060 + $0x70] sm:$0xff] %v2058
  %2076 = vst [vmem:[%s2060 + $0x78] sm:$0xf] %v2059
  %v2093 = vcombine.high %v2044, %v2044
  %v2094 = vcombine.high %v2045, %v2045
  %v2095 = vcombine.high %v2046, %v2046
  %v2096 = vcombine.high %v2048, %v2048
  %v2097 = vcombine.high %v2049, %v2049
  %v2098 = vcombine.high %v2050, %v2050
  %v2099 = vcombine.high %v2052, %v2052
  %v2100 = vcombine.high %v2053, %v2053
  %v2101 = vcombine.high %v2054, %v2054
  %v2102 = vcombine.high %v2056, %v2056
  %v2103 = vcombine.high %v2057, %v2057
  %v2104 = vcombine.high %v2058, %v2058
  %v2117 = vcombine.low %v2044, %v2093
  %v2118 = vcombine.low %v2045, %v2094
  %v2119 = vcombine.low %v2046, %v2095
  %v2120 = vcombine.low %v2047, %v2048
  %v2121 = vcombine.low %v2096, %v2049
  %v2122 = vcombine.low %v2097, %v2050
  %v2123 = vcombine.low %v2098, %v2051
  %v2124 = vcombine.low %v2052, %v2099
  %v2125 = vcombine.low %v2053, %v2100
  %v2126 = vcombine.low %v2054, %v2101
  %v2127 = vcombine.low %v2055, %v2056
  %v2128 = vcombine.low %v2102, %v2057
  %v2129 = vcombine.low %v2103, %v2058
  %v2130 = vcombine.low %v2104, %v2059
  %v2145 = vadd.f32 %v2117, %v2118
  %v2146 = vadd.f32 %v2145, %v2119
  %v2147 = vadd.f32 %v2146, %v2120
  %v2148 = vadd.f32 %v2147, %v2121
  %v2149 = vadd.f32 %v2148, %v2122
  %v2150 = vadd.f32 %v2149, %v2123
  %v2151 = vadd.f32 %v2150, %v2124
  %v2152 = vadd.f32 %v2151, %v2125
  %v2153 = vadd.f32 %v2152, %v2126
  %v2154 = vadd.f32 %v2153, %v2127
  %v2155 = vadd.f32 %v2154, %v2128
  %v2156 = vadd.f32 %v2155, %v2129
  %v2157 = vadd.f32 %v2156, %v2130
  %v2158 = vrot.slane %v2157, 4
  %v2159 = vadd.f32 %v2157, %v2158
  %v2160 = vrot.slane %v2159, 2
  %v2161 = vadd.f32 %v2159, %v2160
  %v2162 = vrot.slane %v2161, 1
  %v2163 = vadd.f32 %v2161, %v2162
  %v2164 = vadd.f32 %v1610, %v2163
  %v2165 = vmul.f32 %v2044, %v2044
  %v2166 = vmul.f32 %v2093, %v2093
  %v2167 = vmul.f32 %v2045, %v2045
  %v2168 = vmul.f32 %v2094, %v2094
  %v2169 = vmul.f32 %v2046, %v2046
  %v2170 = vmul.f32 %v2095, %v2095
  %v2171 = vmul.f32 %v2047, %v2047
  %v2172 = vmul.f32 %v2048, %v2048
  %v2173 = vmul.f32 %v2096, %v2096
  %v2174 = vmul.f32 %v2049, %v2049
  %v2175 = vmul.f32 %v2097, %v2097
  %v2176 = vmul.f32 %v2050, %v2050
  %v2177 = vmul.f32 %v2098, %v2098
  %v2178 = vmul.f32 %v2051, %v2051
  %v2179 = vmul.f32 %v2052, %v2052
  %v2180 = vmul.f32 %v2099, %v2099
  %v2181 = vmul.f32 %v2053, %v2053
  %v2182 = vmul.f32 %v2100, %v2100
  %v2183 = vmul.f32 %v2054, %v2054
  %v2184 = vmul.f32 %v2101, %v2101
  %v2185 = vmul.f32 %v2055, %v2055
  %v2186 = vmul.f32 %v2056, %v2056
  %v2187 = vmul.f32 %v2102, %v2102
  %v2188 = vmul.f32 %v2057, %v2057
  %v2189 = vmul.f32 %v2103, %v2103
  %v2190 = vmul.f32 %v2058, %v2058
  %v2191 = vmul.f32 %v2104, %v2104
  %v2192 = vmul.f32 %v2059, %v2059
  %v2221 = vcombine.low %v2165, %v2166
  %v2222 = vcombine.low %v2167, %v2168
  %v2223 = vcombine.low %v2169, %v2170
  %v2224 = vcombine.low %v2171, %v2172
  %v2225 = vcombine.low %v2173, %v2174
  %v2226 = vcombine.low %v2175, %v2176
  %v2227 = vcombine.low %v2177, %v2178
  %v2228 = vcombine.low %v2179, %v2180
  %v2229 = vcombine.low %v2181, %v2182
  %v2230 = vcombine.low %v2183, %v2184
  %v2231 = vcombine.low %v2185, %v2186
  %v2232 = vcombine.low %v2187, %v2188
  %v2233 = vcombine.low %v2189, %v2190
  %v2234 = vcombine.low %v2191, %v2192
  %v2249 = vadd.f32 %v2221, %v2222
  %v2250 = vadd.f32 %v2249, %v2223
  %v2251 = vadd.f32 %v2250, %v2224
  %v2252 = vadd.f32 %v2251, %v2225
  %v2253 = vadd.f32 %v2252, %v2226
  %v2254 = vadd.f32 %v2253, %v2227
  %v2255 = vadd.f32 %v2254, %v2228
  %v2256 = vadd.f32 %v2255, %v2229
  %v2257 = vadd.f32 %v2256, %v2230
  %v2258 = vadd.f32 %v2257, %v2231
  %v2259 = vadd.f32 %v2258, %v2232
  %v2260 = vadd.f32 %v2259, %v2233
  %v2261 = vadd.f32 %v2260, %v2234
  %v2262 = vrot.slane %v2261, 4
  %v2263 = vadd.f32 %v2261, %v2262
  %v2264 = vrot.slane %v2263, 2
  %v2265 = vadd.f32 %v2263, %v2264
  %v2266 = vrot.slane %v2265, 1
  %v2267 = vadd.f32 %v2265, %v2266
  %v2268 = vadd.f32 %v1714, %v2267
  %s2269 = scalar_lea.vmem %s0, 512
  %v2270 = vld [vmem:[%s2269] sm:$0xff]
  %v2271 = vld [vmem:[%s2269 + $0x8] sm:$0xff]
  %v2272 = vld [vmem:[%s2269 + $0x10] sm:$0xff]
  %v2273 = vld [vmem:[%s2269 + $0x18] sm:$0xf]
  %v2274 = vld [vmem:[%s2269 + $0x20] sm:$0xff]
  %v2275 = vld [vmem:[%s2269 + $0x28] sm:$0xff]
  %v2276 = vld [vmem:[%s2269 + $0x30] sm:$0xff]
  %v2277 = vld [vmem:[%s2269 + $0x38] sm:$0xf]
  %v2278 = vld [vmem:[%s2269 + $0x40] sm:$0xff]
  %v2279 = vld [vmem:[%s2269 + $0x48] sm:$0xff]
  %v2280 = vld [vmem:[%s2269 + $0x50] sm:$0xff]
  %v2281 = vld [vmem:[%s2269 + $0x58] sm:$0xf]
  %v2282 = vld [vmem:[%s2269 + $0x60] sm:$0xff]
  %v2283 = vld [vmem:[%s2269 + $0x68] sm:$0xff]
  %v2284 = vld [vmem:[%s2269 + $0x70] sm:$0xff]
  %v2285 = vld [vmem:[%s2269 + $0x78] sm:$0xf]
  %v2286 = vld [vmem:[%s2269 + $0x80] sm:$0xff]
  %v2287 = vld [vmem:[%s2269 + $0x88] sm:$0xff]
  %v2288 = vld [vmem:[%s2269 + $0x90] sm:$0xff]
  %v2289 = vld [vmem:[%s2269 + $0x98] sm:$0xf]
  %v2290 = vld [vmem:[%s2269 + $0xa0] sm:$0xff]
  %v2291 = vld [vmem:[%s2269 + $0xa8] sm:$0xff]
  %v2292 = vld [vmem:[%s2269 + $0xb0] sm:$0xff]
  %v2293 = vld [vmem:[%s2269 + $0xb8] sm:$0xf]
  %v2294 = vmul.f32 %v2270, %v46
  %v2295 = vmul.f32 %v2271, %v46
  %v2296 = vmul.f32 %v2272, %v46
  %v2297 = vmul.f32 %v2273, %v46
  %v2298 = vmul.f32 %v2274, %v46
  %v2299 = vmul.f32 %v2275, %v46
  %v2300 = vmul.f32 %v2276, %v46
  %v2301 = vmul.f32 %v2277, %v46
  %v2302 = vmul.f32 %v2278, %v46
  %v2303 = vmul.f32 %v2279, %v46
  %v2304 = vmul.f32 %v2280, %v46
  %v2305 = vmul.f32 %v2281, %v46
  %v2306 = vmul.f32 %v2282, %v46
  %v2307 = vmul.f32 %v2283, %v46
  %v2308 = vmul.f32 %v2284, %v46
  %v2309 = vmul.f32 %v2285, %v46
  %v2310 = vmul.f32 %v2274, %v66
  %v2311 = vmul.f32 %v2275, %v66
  %v2312 = vmul.f32 %v2276, %v66
  %v2313 = vmul.f32 %v2277, %v66
  %v2314 = vmul.f32 %v2278, %v66
  %v2315 = vmul.f32 %v2279, %v66
  %v2316 = vmul.f32 %v2280, %v66
  %v2317 = vmul.f32 %v2281, %v66
  %v2318 = vmul.f32 %v2282, %v66
  %v2319 = vmul.f32 %v2283, %v66
  %v2320 = vmul.f32 %v2284, %v66
  %v2321 = vmul.f32 %v2285, %v66
  %v2322 = vmul.f32 %v2286, %v66
  %v2323 = vmul.f32 %v2287, %v66
  %v2324 = vmul.f32 %v2288, %v66
  %v2325 = vmul.f32 %v2289, %v66
  %v2326 = vadd.f32 %v2294, %v2310
  %v2327 = vadd.f32 %v2295, %v2311
  %v2328 = vadd.f32 %v2296, %v2312
  %v2329 = vadd.f32 %v2297, %v2313
  %v2330 = vadd.f32 %v2298, %v2314
  %v2331 = vadd.f32 %v2299, %v2315
  %v2332 = vadd.f32 %v2300, %v2316
  %v2333 = vadd.f32 %v2301, %v2317
  %v2334 = vadd.f32 %v2302, %v2318
  %v2335 = vadd.f32 %v2303, %v2319
  %v2336 = vadd.f32 %v2304, %v2320
  %v2337 = vadd.f32 %v2305, %v2321
  %v2338 = vadd.f32 %v2306, %v2322
  %v2339 = vadd.f32 %v2307, %v2323
  %v2340 = vadd.f32 %v2308, %v2324
  %v2341 = vadd.f32 %v2309, %v2325
  %v2342 = vmul.f32 %v2278, %v102
  %v2343 = vmul.f32 %v2279, %v102
  %v2344 = vmul.f32 %v2280, %v102
  %v2345 = vmul.f32 %v2281, %v102
  %v2346 = vmul.f32 %v2282, %v102
  %v2347 = vmul.f32 %v2283, %v102
  %v2348 = vmul.f32 %v2284, %v102
  %v2349 = vmul.f32 %v2285, %v102
  %v2350 = vmul.f32 %v2286, %v102
  %v2351 = vmul.f32 %v2287, %v102
  %v2352 = vmul.f32 %v2288, %v102
  %v2353 = vmul.f32 %v2289, %v102
  %v2354 = vmul.f32 %v2290, %v102
  %v2355 = vmul.f32 %v2291, %v102
  %v2356 = vmul.f32 %v2292, %v102
  %v2357 = vmul.f32 %v2293, %v102
  %v2358 = vadd.f32 %v2326, %v2342
  %v2359 = vadd.f32 %v2327, %v2343
  %v2360 = vadd.f32 %v2328, %v2344
  %v2361 = vadd.f32 %v2329, %v2345
  %v2362 = vadd.f32 %v2330, %v2346
  %v2363 = vadd.f32 %v2331, %v2347
  %v2364 = vadd.f32 %v2332, %v2348
  %v2365 = vadd.f32 %v2333, %v2349
  %v2366 = vadd.f32 %v2334, %v2350
  %v2367 = vadd.f32 %v2335, %v2351
  %v2368 = vadd.f32 %v2336, %v2352
  %v2369 = vadd.f32 %v2337, %v2353
  %v2370 = vadd.f32 %v2338, %v2354
  %v2371 = vadd.f32 %v2339, %v2355
  %v2372 = vadd.f32 %v2340, %v2356
  %v2373 = vadd.f32 %v2341, %v2357
  %v2374 = vld [vmem:[%s2269 + $0x1] sm:$0xff]
  %v2375 = vld [vmem:[%s2269 + $0x9] sm:$0xff]
  %v2376 = vld [vmem:[%s2269 + $0x11] sm:$0xff]
  %v2377 = vld [vmem:[%s2269 + $0x19] sm:$0xf]
  %v2378 = vld [vmem:[%s2269 + $0x21] sm:$0xff]
  %v2379 = vld [vmem:[%s2269 + $0x29] sm:$0xff]
  %v2380 = vld [vmem:[%s2269 + $0x31] sm:$0xff]
  %v2381 = vld [vmem:[%s2269 + $0x39] sm:$0xf]
  %v2382 = vld [vmem:[%s2269 + $0x41] sm:$0xff]
  %v2383 = vld [vmem:[%s2269 + $0x49] sm:$0xff]
  %v2384 = vld [vmem:[%s2269 + $0x51] sm:$0xff]
  %v2385 = vld [vmem:[%s2269 + $0x59] sm:$0xf]
  %v2386 = vld [vmem:[%s2269 + $0x61] sm:$0xff]
  %v2387 = vld [vmem:[%s2269 + $0x69] sm:$0xff]
  %v2388 = vld [vmem:[%s2269 + $0x71] sm:$0xff]
  %v2389 = vld [vmem:[%s2269 + $0x79] sm:$0xf]
  %v2390 = vld [vmem:[%s2269 + $0x81] sm:$0xff]
  %v2391 = vld [vmem:[%s2269 + $0x89] sm:$0xff]
  %v2392 = vld [vmem:[%s2269 + $0x91] sm:$0xff]
  %v2393 = vld [vmem:[%s2269 + $0x99] sm:$0xf]
  %v2394 = vld [vmem:[%s2269 + $0xa1] sm:$0xff]
  %v2395 = vld [vmem:[%s2269 + $0xa9] sm:$0xff]
  %v2396 = vld [vmem:[%s2269 + $0xb1] sm:$0xff]
  %v2397 = vld [vmem:[%s2269 + $0xb9] sm:$0xf]
  %v2398 = vmul.f32 %v2374, %v162
  %v2399 = vmul.f32 %v2375, %v162
  %v2400 = vmul.f32 %v2376, %v162
  %v2401 = vmul.f32 %v2377, %v162
  %v2402 = vmul.f32 %v2378, %v162
  %v2403 = vmul.f32 %v2379, %v162
  %v2404 = vmul.f32 %v2380, %v162
  %v2405 = vmul.f32 %v2381, %v162
  %v2406 = vmul.f32 %v2382, %v162
  %v2407 = vmul.f32 %v2383, %v162
  %v2408 = vmul.f32 %v2384, %v162
  %v2409 = vmul.f32 %v2385, %v162
  %v2410 = vmul.f32 %v2386, %v162
  %v2411 = vmul.f32 %v2387, %v162
  %v2412 = vmul.f32 %v2388, %v162
  %v2413 = vmul.f32 %v2389, %v162
  %v2414 = vadd.f32 %v2358, %v2398
  %v2415 = vadd.f32 %v2359, %v2399
  %v2416 = vadd.f32 %v2360, %v2400
  %v2417 = vadd.f32 %v2361, %v2401
  %v2418 = vadd.f32 %v2362, %v2402
  %v2419 = vadd.f32 %v2363, %v2403
  %v2420 = vadd.f32 %v2364, %v2404
  %v2421 = vadd.f32 %v2365, %v2405
  %v2422 = vadd.f32 %v2366, %v2406
  %v2423 = vadd.f32 %v2367, %v2407
  %v2424 = vadd.f32 %v2368, %v2408
  %v2425 = vadd.f32 %v2369, %v2409
  %v2426 = vadd.f32 %v2370, %v2410
  %v2427 = vadd.f32 %v2371, %v2411
  %v2428 = vadd.f32 %v2372, %v2412
  %v2429 = vadd.f32 %v2373, %v2413
  %v2430 = vmul.f32 %v2378, %v198
  %v2431 = vmul.f32 %v2379, %v198
  %v2432 = vmul.f32 %v2380, %v198
  %v2433 = vmul.f32 %v2381, %v198
  %v2434 = vmul.f32 %v2382, %v198
  %v2435 = vmul.f32 %v2383, %v198
  %v2436 = vmul.f32 %v2384, %v198
  %v2437 = vmul.f32 %v2385, %v198
  %v2438 = vmul.f32 %v2386, %v198
  %v2439 = vmul.f32 %v2387, %v198
  %v2440 = vmul.f32 %v2388, %v198
  %v2441 = vmul.f32 %v2389, %v198
  %v2442 = vmul.f32 %v2390, %v198
  %v2443 = vmul.f32 %v2391, %v198
  %v2444 = vmul.f32 %v2392, %v198
  %v2445 = vmul.f32 %v2393, %v198
  %v2446 = vadd.f32 %v2414, %v2430
  %v2447 = vadd.f32 %v2415, %v2431
  %v2448 = vadd.f32 %v2416, %v2432
  %v2449 = vadd.f32 %v2417, %v2433
  %v2450 = vadd.f32 %v2418, %v2434
  %v2451 = vadd.f32 %v2419, %v2435
  %v2452 = vadd.f32 %v2420, %v2436
  %v2453 = vadd.f32 %v2421, %v2437
  %v2454 = vadd.f32 %v2422, %v2438
  %v2455 = vadd.f32 %v2423, %v2439
  %v2456 = vadd.f32 %v2424, %v2440
  %v2457 = vadd.f32 %v2425, %v2441
  %v2458 = vadd.f32 %v2426, %v2442
  %v2459 = vadd.f32 %v2427, %v2443
  %v2460 = vadd.f32 %v2428, %v2444
  %v2461 = vadd.f32 %v2429, %v2445
  %v2462 = vmul.f32 %v2382, %v234
  %v2463 = vmul.f32 %v2383, %v234
  %v2464 = vmul.f32 %v2384, %v234
  %v2465 = vmul.f32 %v2385, %v234
  %v2466 = vmul.f32 %v2386, %v234
  %v2467 = vmul.f32 %v2387, %v234
  %v2468 = vmul.f32 %v2388, %v234
  %v2469 = vmul.f32 %v2389, %v234
  %v2470 = vmul.f32 %v2390, %v234
  %v2471 = vmul.f32 %v2391, %v234
  %v2472 = vmul.f32 %v2392, %v234
  %v2473 = vmul.f32 %v2393, %v234
  %v2474 = vmul.f32 %v2394, %v234
  %v2475 = vmul.f32 %v2395, %v234
  %v2476 = vmul.f32 %v2396, %v234
  %v2477 = vmul.f32 %v2397, %v234
  %v2478 = vadd.f32 %v2446, %v2462
  %v2479 = vadd.f32 %v2447, %v2463
  %v2480 = vadd.f32 %v2448, %v2464
  %v2481 = vadd.f32 %v2449, %v2465
  %v2482 = vadd.f32 %v2450, %v2466
  %v2483 = vadd.f32 %v2451, %v2467
  %v2484 = vadd.f32 %v2452, %v2468
  %v2485 = vadd.f32 %v2453, %v2469
  %v2486 = vadd.f32 %v2454, %v2470
  %v2487 = vadd.f32 %v2455, %v2471
  %v2488 = vadd.f32 %v2456, %v2472
  %v2489 = vadd.f32 %v2457, %v2473
  %v2490 = vadd.f32 %v2458, %v2474
  %v2491 = vadd.f32 %v2459, %v2475
  %v2492 = vadd.f32 %v2460, %v2476
  %v2493 = vadd.f32 %v2461, %v2477
  %v2494 = vld [vmem:[%s2269 + $0x2] sm:$0xff]
  %v2495 = vld [vmem:[%s2269 + $0xa] sm:$0xff]
  %v2496 = vld [vmem:[%s2269 + $0x12] sm:$0xff]
  %v2497 = vld [vmem:[%s2269 + $0x1a] sm:$0xf]
  %v2498 = vld [vmem:[%s2269 + $0x22] sm:$0xff]
  %v2499 = vld [vmem:[%s2269 + $0x2a] sm:$0xff]
  %v2500 = vld [vmem:[%s2269 + $0x32] sm:$0xff]
  %v2501 = vld [vmem:[%s2269 + $0x3a] sm:$0xf]
  %v2502 = vld [vmem:[%s2269 + $0x42] sm:$0xff]
  %v2503 = vld [vmem:[%s2269 + $0x4a] sm:$0xff]
  %v2504 = vld [vmem:[%s2269 + $0x52] sm:$0xff]
  %v2505 = vld [vmem:[%s2269 + $0x5a] sm:$0xf]
  %v2506 = vld [vmem:[%s2269 + $0x62] sm:$0xff]
  %v2507 = vld [vmem:[%s2269 + $0x6a] sm:$0xff]
  %v2508 = vld [vmem:[%s2269 + $0x72] sm:$0xff]
  %v2509 = vld [vmem:[%s2269 + $0x7a] sm:$0xf]
  %v2510 = vld [vmem:[%s2269 + $0x82] sm:$0xff]
  %v2511 = vld [vmem:[%s2269 + $0x8a] sm:$0xff]
  %v2512 = vld [vmem:[%s2269 + $0x92] sm:$0xff]
  %v2513 = vld [vmem:[%s2269 + $0x9a] sm:$0xf]
  %v2514 = vld [vmem:[%s2269 + $0xa2] sm:$0xff]
  %v2515 = vld [vmem:[%s2269 + $0xaa] sm:$0xff]
  %v2516 = vld [vmem:[%s2269 + $0xb2] sm:$0xff]
  %v2517 = vld [vmem:[%s2269 + $0xba] sm:$0xf]
  %v2518 = vmul.f32 %v2494, %v294
  %v2519 = vmul.f32 %v2495, %v294
  %v2520 = vmul.f32 %v2496, %v294
  %v2521 = vmul.f32 %v2497, %v294
  %v2522 = vmul.f32 %v2498, %v294
  %v2523 = vmul.f32 %v2499, %v294
  %v2524 = vmul.f32 %v2500, %v294
  %v2525 = vmul.f32 %v2501, %v294
  %v2526 = vmul.f32 %v2502, %v294
  %v2527 = vmul.f32 %v2503, %v294
  %v2528 = vmul.f32 %v2504, %v294
  %v2529 = vmul.f32 %v2505, %v294
  %v2530 = vmul.f32 %v2506, %v294
  %v2531 = vmul.f32 %v2507, %v294
  %v2532 = vmul.f32 %v2508, %v294
  %v2533 = vmul.f32 %v2509, %v294
  %v2534 = vadd.f32 %v2478, %v2518
  %v2535 = vadd.f32 %v2479, %v2519
  %v2536 = vadd.f32 %v2480, %v2520
  %v2537 = vadd.f32 %v2481, %v2521
  %v2538 = vadd.f32 %v2482, %v2522
  %v2539 = vadd.f32 %v2483, %v2523
  %v2540 = vadd.f32 %v2484, %v2524
  %v2541 = vadd.f32 %v2485, %v2525
  %v2542 = vadd.f32 %v2486, %v2526
  %v2543 = vadd.f32 %v2487, %v2527
  %v2544 = vadd.f32 %v2488, %v2528
  %v2545 = vadd.f32 %v2489, %v2529
  %v2546 = vadd.f32 %v2490, %v2530
  %v2547 = vadd.f32 %v2491, %v2531
  %v2548 = vadd.f32 %v2492, %v2532
  %v2549 = vadd.f32 %v2493, %v2533
  %v2550 = vmul.f32 %v2498, %v330
  %v2551 = vmul.f32 %v2499, %v330
  %v2552 = vmul.f32 %v2500, %v330
  %v2553 = vmul.f32 %v2501, %v330
  %v2554 = vmul.f32 %v2502, %v330
  %v2555 = vmul.f32 %v2503, %v330
  %v2556 = vmul.f32 %v2504, %v330
  %v2557 = vmul.f32 %v2505, %v330
  %v2558 = vmul.f32 %v2506, %v330
  %v2559 = vmul.f32 %v2507, %v330
  %v2560 = vmul.f32 %v2508, %v330
  %v2561 = vmul.f32 %v2509, %v330
  %v2562 = vmul.f32 %v2510, %v330
  %v2563 = vmul.f32 %v2511, %v330
  %v2564 = vmul.f32 %v2512, %v330
  %v2565 = vmul.f32 %v2513, %v330
  %v2566 = vadd.f32 %v2534, %v2550
  %v2567 = vadd.f32 %v2535, %v2551
  %v2568 = vadd.f32 %v2536, %v2552
  %v2569 = vadd.f32 %v2537, %v2553
  %v2570 = vadd.f32 %v2538, %v2554
  %v2571 = vadd.f32 %v2539, %v2555
  %v2572 = vadd.f32 %v2540, %v2556
  %v2573 = vadd.f32 %v2541, %v2557
  %v2574 = vadd.f32 %v2542, %v2558
  %v2575 = vadd.f32 %v2543, %v2559
  %v2576 = vadd.f32 %v2544, %v2560
  %v2577 = vadd.f32 %v2545, %v2561
  %v2578 = vadd.f32 %v2546, %v2562
  %v2579 = vadd.f32 %v2547, %v2563
  %v2580 = vadd.f32 %v2548, %v2564
  %v2581 = vadd.f32 %v2549, %v2565
  %v2582 = vmul.f32 %v2502, %v366
  %v2583 = vmul.f32 %v2503, %v366
  %v2584 = vmul.f32 %v2504, %v366
  %v2585 = vmul.f32 %v2505, %v366
  %v2586 = vmul.f32 %v2506, %v366
  %v2587 = vmul.f32 %v2507, %v366
  %v2588 = vmul.f32 %v2508, %v366
  %v2589 = vmul.f32 %v2509, %v366
  %v2590 = vmul.f32 %v2510, %v366
  %v2591 = vmul.f32 %v2511, %v366
  %v2592 = vmul.f32 %v2512, %v366
  %v2593 = vmul.f32 %v2513, %v366
  %v2594 = vmul.f32 %v2514, %v366
  %v2595 = vmul.f32 %v2515, %v366
  %v2596 = vmul.f32 %v2516, %v366
  %v2597 = vmul.f32 %v2517, %v366
  %v2598 = vadd.f32 %v2566, %v2582
  %v2599 = vadd.f32 %v2567, %v2583
  %v2600 = vadd.f32 %v2568, %v2584
  %v2601 = vadd.f32 %v2569, %v2585
  %v2602 = vadd.f32 %v2570, %v2586
  %v2603 = vadd.f32 %v2571, %v2587
  %v2604 = vadd.f32 %v2572, %v2588
  %v2605 = vadd.f32 %v2573, %v2589
  %v2606 = vadd.f32 %v2574, %v2590
  %v2607 = vadd.f32 %v2575, %v2591
  %v2608 = vadd.f32 %v2576, %v2592
  %v2609 = vadd.f32 %v2577, %v2593
  %v2610 = vadd.f32 %v2578, %v2594
  %v2611 = vadd.f32 %v2579, %v2595
  %v2612 = vadd.f32 %v2580, %v2596
  %v2613 = vadd.f32 %v2581, %v2597
  %s2614 = scalar_lea.vmem %s4, 512
  %2615 = vst [vmem:[%s2614] sm:$0xff] %v2598
  %2616 = vst [vmem:[%s2614 + $0x8] sm:$0xff] %v2599
  %2617 = vst [vmem:[%s2614 + $0x10] sm:$0xff] %v2600
  %2618 = vst [vmem:[%s2614 + $0x18] sm:$0xf] %v2601
  %2619 = vst [vmem:[%s2614 + $0x20] sm:$0xff] %v2602
  %2620 = vst [vmem:[%s2614 + $0x28] sm:$0xff] %v2603
  %2621 = vst [vmem:[%s2614 + $0x30] sm:$0xff] %v2604
  %2622 = vst [vmem:[%s2614 + $0x38] sm:$0xf] %v2605
  %2623 = vst [vmem:[%s2614 + $0x40] sm:$0xff] %v2606
  %2624 = vst [vmem:[%s2614 + $0x48] sm:$0xff] %v2607
  %2625 = vst [vmem:[%s2614 + $0x50] sm:$0xff] %v2608
  %2626 = vst [vmem:[%s2614 + $0x58] sm:$0xf] %v2609
  %2627 = vst [vmem:[%s2614 + $0x60] sm:$0xff] %v2610
  %2628 = vst [vmem:[%s2614 + $0x68] sm:$0xff] %v2611
  %2629 = vst [vmem:[%s2614 + $0x70] sm:$0xff] %v2612
  %2630 = vst [vmem:[%s2614 + $0x78] sm:$0xf] %v2613
  %v2647 = vcombine.high %v2598, %v2598
  %v2648 = vcombine.high %v2599, %v2599
  %v2649 = vcombine.high %v2600, %v2600
  %v2650 = vcombine.high %v2602, %v2602
  %v2651 = vcombine.high %v2603, %v2603
  %v2652 = vcombine.high %v2604, %v2604
  %v2653 = vcombine.high %v2606, %v2606
  %v2654 = vcombine.high %v2607, %v2607
  %v2655 = vcombine.high %v2608, %v2608
  %v2656 = vcombine.high %v2610, %v2610
  %v2657 = vcombine.high %v2611, %v2611
  %v2658 = vcombine.high %v2612, %v2612
  %v2671 = vcombine.low %v2598, %v2647
  %v2672 = vcombine.low %v2599, %v2648
  %v2673 = vcombine.low %v2600, %v2649
  %v2674 = vcombine.low %v2601, %v2602
  %v2675 = vcombine.low %v2650, %v2603
  %v2676 = vcombine.low %v2651, %v2604
  %v2677 = vcombine.low %v2652, %v2605
  %v2678 = vcombine.low %v2606, %v2653
  %v2679 = vcombine.low %v2607, %v2654
  %v2680 = vcombine.low %v2608, %v2655
  %v2681 = vcombine.low %v2609, %v2610
  %v2682 = vcombine.low %v2656, %v2611
  %v2683 = vcombine.low %v2657, %v2612
  %v2684 = vcombine.low %v2658, %v2613
  %v2699 = vadd.f32 %v2671, %v2672
  %v2700 = vadd.f32 %v2699, %v2673
  %v2701 = vadd.f32 %v2700, %v2674
  %v2702 = vadd.f32 %v2701, %v2675
  %v2703 = vadd.f32 %v2702, %v2676
  %v2704 = vadd.f32 %v2703, %v2677
  %v2705 = vadd.f32 %v2704, %v2678
  %v2706 = vadd.f32 %v2705, %v2679
  %v2707 = vadd.f32 %v2706, %v2680
  %v2708 = vadd.f32 %v2707, %v2681
  %v2709 = vadd.f32 %v2708, %v2682
  %v2710 = vadd.f32 %v2709, %v2683
  %v2711 = vadd.f32 %v2710, %v2684
  %v2712 = vrot.slane %v2711, 4
  %v2713 = vadd.f32 %v2711, %v2712
  %v2714 = vrot.slane %v2713, 2
  %v2715 = vadd.f32 %v2713, %v2714
  %v2716 = vrot.slane %v2715, 1
  %v2717 = vadd.f32 %v2715, %v2716
  %v2718 = vadd.f32 %v2164, %v2717
  %v2719 = vmul.f32 %v2598, %v2598
  %v2720 = vmul.f32 %v2647, %v2647
  %v2721 = vmul.f32 %v2599, %v2599
  %v2722 = vmul.f32 %v2648, %v2648
  %v2723 = vmul.f32 %v2600, %v2600
  %v2724 = vmul.f32 %v2649, %v2649
  %v2725 = vmul.f32 %v2601, %v2601
  %v2726 = vmul.f32 %v2602, %v2602
  %v2727 = vmul.f32 %v2650, %v2650
  %v2728 = vmul.f32 %v2603, %v2603
  %v2729 = vmul.f32 %v2651, %v2651
  %v2730 = vmul.f32 %v2604, %v2604
  %v2731 = vmul.f32 %v2652, %v2652
  %v2732 = vmul.f32 %v2605, %v2605
  %v2733 = vmul.f32 %v2606, %v2606
  %v2734 = vmul.f32 %v2653, %v2653
  %v2735 = vmul.f32 %v2607, %v2607
  %v2736 = vmul.f32 %v2654, %v2654
  %v2737 = vmul.f32 %v2608, %v2608
  %v2738 = vmul.f32 %v2655, %v2655
  %v2739 = vmul.f32 %v2609, %v2609
  %v2740 = vmul.f32 %v2610, %v2610
  %v2741 = vmul.f32 %v2656, %v2656
  %v2742 = vmul.f32 %v2611, %v2611
  %v2743 = vmul.f32 %v2657, %v2657
  %v2744 = vmul.f32 %v2612, %v2612
  %v2745 = vmul.f32 %v2658, %v2658
  %v2746 = vmul.f32 %v2613, %v2613
  %v2775 = vcombine.low %v2719, %v2720
  %v2776 = vcombine.low %v2721, %v2722
  %v2777 = vcombine.low %v2723, %v2724
  %v2778 = vcombine.low %v2725, %v2726
  %v2779 = vcombine.low %v2727, %v2728
  %v2780 = vcombine.low %v2729, %v2730
  %v2781 = vcombine.low %v2731, %v2732
  %v2782 = vcombine.low %v2733, %v2734
  %v2783 = vcombine.low %v2735, %v2736
  %v2784 = vcombine.low %v2737, %v2738
  %v2785 = vcombine.low %v2739, %v2740
  %v2786 = vcombine.low %v2741, %v2742
  %v2787 = vcombine.low %v2743, %v2744
  %v2788 = vcombine.low %v2745, %v2746
  %v2803 = vadd.f32 %v2775, %v2776
  %v2804 = vadd.f32 %v2803, %v2777
  %v2805 = vadd.f32 %v2804, %v2778
  %v2806 = vadd.f32 %v2805, %v2779
  %v2807 = vadd.f32 %v2806, %v2780
  %v2808 = vadd.f32 %v2807, %v2781
  %v2809 = vadd.f32 %v2808, %v2782
  %v2810 = vadd.f32 %v2809, %v2783
  %v2811 = vadd.f32 %v2810, %v2784
  %v2812 = vadd.f32 %v2811, %v2785
  %v2813 = vadd.f32 %v2812, %v2786
  %v2814 = vadd.f32 %v2813, %v2787
  %v2815 = vadd.f32 %v2814, %v2788
  %v2816 = vrot.slane %v2815, 4
  %v2817 = vadd.f32 %v2815, %v2816
  %v2818 = vrot.slane %v2817, 2
  %v2819 = vadd.f32 %v2817, %v2818
  %v2820 = vrot.slane %v2819, 1
  %v2821 = vadd.f32 %v2819, %v2820
  %v2822 = vadd.f32 %v2268, %v2821
  %s2823 = scalar_lea.vmem %s0, 640
  %v2824 = vld [vmem:[%s2823] sm:$0xff]
  %v2825 = vld [vmem:[%s2823 + $0x8] sm:$0xff]
  %v2826 = vld [vmem:[%s2823 + $0x10] sm:$0xff]
  %v2827 = vld [vmem:[%s2823 + $0x18] sm:$0xf]
  %v2828 = vld [vmem:[%s2823 + $0x20] sm:$0xff]
  %v2829 = vld [vmem:[%s2823 + $0x28] sm:$0xff]
  %v2830 = vld [vmem:[%s2823 + $0x30] sm:$0xff]
  %v2831 = vld [vmem:[%s2823 + $0x38] sm:$0xf]
  %v2832 = vld [vmem:[%s2823 + $0x40] sm:$0xff]
  %v2833 = vld [vmem:[%s2823 + $0x48] sm:$0xff]
  %v2834 = vld [vmem:[%s2823 + $0x50] sm:$0xff]
  %v2835 = vld [vmem:[%s2823 + $0x58] sm:$0xf]
  %v2836 = vld [vmem:[%s2823 + $0x60] sm:$0xff]
  %v2837 = vld [vmem:[%s2823 + $0x68] sm:$0xff]
  %v2838 = vld [vmem:[%s2823 + $0x70] sm:$0xff]
  %v2839 = vld [vmem:[%s2823 + $0x78] sm:$0xf]
  %v2840 = vld [vmem:[%s2823 + $0x80] sm:$0xff]
  %v2841 = vld [vmem:[%s2823 + $0x88] sm:$0xff]
  %v2842 = vld [vmem:[%s2823 + $0x90] sm:$0xff]
  %v2843 = vld [vmem:[%s2823 + $0x98] sm:$0xf]
  %v2844 = vld [vmem:[%s2823 + $0xa0] sm:$0xff]
  %v2845 = vld [vmem:[%s2823 + $0xa8] sm:$0xff]
  %v2846 = vld [vmem:[%s2823 + $0xb0] sm:$0xff]
  %v2847 = vld [vmem:[%s2823 + $0xb8] sm:$0xf]
  %v2848 = vmul.f32 %v2824, %v46
  %v2849 = vmul.f32 %v2825, %v46
  %v2850 = vmul.f32 %v2826, %v46
  %v2851 = vmul.f32 %v2827, %v46
  %v2852 = vmul.f32 %v2828, %v46
  %v2853 = vmul.f32 %v2829, %v46
  %v2854 = vmul.f32 %v2830, %v46
  %v2855 = vmul.f32 %v2831, %v46
  %v2856 = vmul.f32 %v2832, %v46
  %v2857 = vmul.f32 %v2833, %v46
  %v2858 = vmul.f32 %v2834, %v46
  %v2859 = vmul.f32 %v2835, %v46
  %v2860 = vmul.f32 %v2836, %v46
  %v2861 = vmul.f32 %v2837, %v46
  %v2862 = vmul.f32 %v2838, %v46
  %v2863 = vmul.f32 %v2839, %v46
  %v2864 = vmul.f32 %v2828, %v66
  %v2865 = vmul.f32 %v2829, %v66
  %v2866 = vmul.f32 %v2830, %v66
  %v2867 = vmul.f32 %v2831, %v66
  %v2868 = vmul.f32 %v2832, %v66
  %v2869 = vmul.f32 %v2833, %v66
  %v2870 = vmul.f32 %v2834, %v66
  %v2871 = vmul.f32 %v2835, %v66
  %v2872 = vmul.f32 %v2836, %v66
  %v2873 = vmul.f32 %v2837, %v66
  %v2874 = vmul.f32 %v2838, %v66
  %v2875 = vmul.f32 %v2839, %v66
  %v2876 = vmul.f32 %v2840, %v66
  %v2877 = vmul.f32 %v2841, %v66
  %v2878 = vmul.f32 %v2842, %v66
  %v2879 = vmul.f32 %v2843, %v66
  %v2880 = vadd.f32 %v2848, %v2864
  %v2881 = vadd.f32 %v2849, %v2865
  %v2882 = vadd.f32 %v2850, %v2866
  %v2883 = vadd.f32 %v2851, %v2867
  %v2884 = vadd.f32 %v2852, %v2868
  %v2885 = vadd.f32 %v2853, %v2869
  %v2886 = vadd.f32 %v2854, %v2870
  %v2887 = vadd.f32 %v2855, %v2871
  %v2888 = vadd.f32 %v2856, %v2872
  %v2889 = vadd.f32 %v2857, %v2873
  %v2890 = vadd.f32 %v2858, %v2874
  %v2891 = vadd.f32 %v2859, %v2875
  %v2892 = vadd.f32 %v2860, %v2876
  %v2893 = vadd.f32 %v2861, %v2877
  %v2894 = vadd.f32 %v2862, %v2878
  %v2895 = vadd.f32 %v2863, %v2879
  %v2896 = vmul.f32 %v2832, %v102
  %v2897 = vmul.f32 %v2833, %v102
  %v2898 = vmul.f32 %v2834, %v102
  %v2899 = vmul.f32 %v2835, %v102
  %v2900 = vmul.f32 %v2836, %v102
  %v2901 = vmul.f32 %v2837, %v102
  %v2902 = vmul.f32 %v2838, %v102
  %v2903 = vmul.f32 %v2839, %v102
  %v2904 = vmul.f32 %v2840, %v102
  %v2905 = vmul.f32 %v2841, %v102
  %v2906 = vmul.f32 %v2842, %v102
  %v2907 = vmul.f32 %v2843, %v102
  %v2908 = vmul.f32 %v2844, %v102
  %v2909 = vmul.f32 %v2845, %v102
  %v2910 = vmul.f32 %v2846, %v102
  %v2911 = vmul.f32 %v2847, %v102
  %v2912 = vadd.f32 %v2880, %v2896
  %v2913 = vadd.f32 %v2881, %v2897
  %v2914 = vadd.f32 %v2882, %v2898
  %v2915 = vadd.f32 %v2883, %v2899
  %v2916 = vadd.f32 %v2884, %v2900
  %v2917 = vadd.f32 %v2885, %v2901
  %v2918 = vadd.f32 %v2886, %v2902
  %v2919 = vadd.f32 %v2887, %v2903
  %v2920 = vadd.f32 %v2888, %v2904
  %v2921 = vadd.f32 %v2889, %v2905
  %v2922 = vadd.f32 %v2890, %v2906
  %v2923 = vadd.f32 %v2891, %v2907
  %v2924 = vadd.f32 %v2892, %v2908
  %v2925 = vadd.f32 %v2893, %v2909
  %v2926 = vadd.f32 %v2894, %v2910
  %v2927 = vadd.f32 %v2895, %v2911
  %v2928 = vld [vmem:[%s2823 + $0x1] sm:$0xff]
  %v2929 = vld [vmem:[%s2823 + $0x9] sm:$0xff]
  %v2930 = vld [vmem:[%s2823 + $0x11] sm:$0xff]
  %v2931 = vld [vmem:[%s2823 + $0x19] sm:$0xf]
  %v2932 = vld [vmem:[%s2823 + $0x21] sm:$0xff]
  %v2933 = vld [vmem:[%s2823 + $0x29] sm:$0xff]
  %v2934 = vld [vmem:[%s2823 + $0x31] sm:$0xff]
  %v2935 = vld [vmem:[%s2823 + $0x39] sm:$0xf]
  %v2936 = vld [vmem:[%s2823 + $0x41] sm:$0xff]
  %v2937 = vld [vmem:[%s2823 + $0x49] sm:$0xff]
  %v2938 = vld [vmem:[%s2823 + $0x51] sm:$0xff]
  %v2939 = vld [vmem:[%s2823 + $0x59] sm:$0xf]
  %v2940 = vld [vmem:[%s2823 + $0x61] sm:$0xff]
  %v2941 = vld [vmem:[%s2823 + $0x69] sm:$0xff]
  %v2942 = vld [vmem:[%s2823 + $0x71] sm:$0xff]
  %v2943 = vld [vmem:[%s2823 + $0x79] sm:$0xf]
  %v2944 = vld [vmem:[%s2823 + $0x81] sm:$0xff]
  %v2945 = vld [vmem:[%s2823 + $0x89] sm:$0xff]
  %v2946 = vld [vmem:[%s2823 + $0x91] sm:$0xff]
  %v2947 = vld [vmem:[%s2823 + $0x99] sm:$0xf]
  %v2948 = vld [vmem:[%s2823 + $0xa1] sm:$0xff]
  %v2949 = vld [vmem:[%s2823 + $0xa9] sm:$0xff]
  %v2950 = vld [vmem:[%s2823 + $0xb1] sm:$0xff]
  %v2951 = vld [vmem:[%s2823 + $0xb9] sm:$0xf]
  %v2952 = vmul.f32 %v2928, %v162
  %v2953 = vmul.f32 %v2929, %v162
  %v2954 = vmul.f32 %v2930, %v162
  %v2955 = vmul.f32 %v2931, %v162
  %v2956 = vmul.f32 %v2932, %v162
  %v2957 = vmul.f32 %v2933, %v162
  %v2958 = vmul.f32 %v2934, %v162
  %v2959 = vmul.f32 %v2935, %v162
  %v2960 = vmul.f32 %v2936, %v162
  %v2961 = vmul.f32 %v2937, %v162
  %v2962 = vmul.f32 %v2938, %v162
  %v2963 = vmul.f32 %v2939, %v162
  %v2964 = vmul.f32 %v2940, %v162
  %v2965 = vmul.f32 %v2941, %v162
  %v2966 = vmul.f32 %v2942, %v162
  %v2967 = vmul.f32 %v2943, %v162
  %v2968 = vadd.f32 %v2912, %v2952
  %v2969 = vadd.f32 %v2913, %v2953
  %v2970 = vadd.f32 %v2914, %v2954
  %v2971 = vadd.f32 %v2915, %v2955
  %v2972 = vadd.f32 %v2916, %v2956
  %v2973 = vadd.f32 %v2917, %v2957
  %v2974 = vadd.f32 %v2918, %v2958
  %v2975 = vadd.f32 %v2919, %v2959
  %v2976 = vadd.f32 %v2920, %v2960
  %v2977 = vadd.f32 %v2921, %v2961
  %v2978 = vadd.f32 %v2922, %v2962
  %v2979 = vadd.f32 %v2923, %v2963
  %v2980 = vadd.f32 %v2924, %v2964
  %v2981 = vadd.f32 %v2925, %v2965
  %v2982 = vadd.f32 %v2926, %v2966
  %v2983 = vadd.f32 %v2927, %v2967
  %v2984 = vmul.f32 %v2932, %v198
  %v2985 = vmul.f32 %v2933, %v198
  %v2986 = vmul.f32 %v2934, %v198
  %v2987 = vmul.f32 %v2935, %v198
  %v2988 = vmul.f32 %v2936, %v198
  %v2989 = vmul.f32 %v2937, %v198
  %v2990 = vmul.f32 %v2938, %v198
  %v2991 = vmul.f32 %v2939, %v198
  %v2992 = vmul.f32 %v2940, %v198
  %v2993 = vmul.f32 %v2941, %v198
  %v2994 = vmul.f32 %v2942, %v198
  %v2995 = vmul.f32 %v2943, %v198
  %v2996 = vmul.f32 %v2944, %v198
  %v2997 = vmul.f32 %v2945, %v198
  %v2998 = vmul.f32 %v2946, %v198
  %v2999 = vmul.f32 %v2947, %v198
  %v3000 = vadd.f32 %v2968, %v2984
  %v3001 = vadd.f32 %v2969, %v2985
  %v3002 = vadd.f32 %v2970, %v2986
  %v3003 = vadd.f32 %v2971, %v2987
  %v3004 = vadd.f32 %v2972, %v2988
  %v3005 = vadd.f32 %v2973, %v2989
  %v3006 = vadd.f32 %v2974, %v2990
  %v3007 = vadd.f32 %v2975, %v2991
  %v3008 = vadd.f32 %v2976, %v2992
  %v3009 = vadd.f32 %v2977, %v2993
  %v3010 = vadd.f32 %v2978, %v2994
  %v3011 = vadd.f32 %v2979, %v2995
  %v3012 = vadd.f32 %v2980, %v2996
  %v3013 = vadd.f32 %v2981, %v2997
  %v3014 = vadd.f32 %v2982, %v2998
  %v3015 = vadd.f32 %v2983, %v2999
  %v3016 = vmul.f32 %v2936, %v234
  %v3017 = vmul.f32 %v2937, %v234
  %v3018 = vmul.f32 %v2938, %v234
  %v3019 = vmul.f32 %v2939, %v234
  %v3020 = vmul.f32 %v2940, %v234
  %v3021 = vmul.f32 %v2941, %v234
  %v3022 = vmul.f32 %v2942, %v234
  %v3023 = vmul.f32 %v2943, %v234
  %v3024 = vmul.f32 %v2944, %v234
  %v3025 = vmul.f32 %v2945, %v234
  %v3026 = vmul.f32 %v2946, %v234
  %v3027 = vmul.f32 %v2947, %v234
  %v3028 = vmul.f32 %v2948, %v234
  %v3029 = vmul.f32 %v2949, %v234
  %v3030 = vmul.f32 %v2950, %v234
  %v3031 = vmul.f32 %v2951, %v234
  %v3032 = vadd.f32 %v3000, %v3016
  %v3033 = vadd.f32 %v3001, %v3017
  %v3034 = vadd.f32 %v3002, %v3018
  %v3035 = vadd.f32 %v3003, %v3019
  %v3036 = vadd.f32 %v3004, %v3020
  %v3037 = vadd.f32 %v3005, %v3021
  %v3038 = vadd.f32 %v3006, %v3022
  %v3039 = vadd.f32 %v3007, %v3023
  %v3040 = vadd.f32 %v3008, %v3024
  %v3041 = vadd.f32 %v3009, %v3025
  %v3042 = vadd.f32 %v3010, %v3026
  %v3043 = vadd.f32 %v3011, %v3027
  %v3044 = vadd.f32 %v3012, %v3028
  %v3045 = vadd.f32 %v3013, %v3029
  %v3046 = vadd.f32 %v3014, %v3030
  %v3047 = vadd.f32 %v3015, %v3031
  %v3048 = vld [vmem:[%s2823 + $0x2] sm:$0xff]
  %v3049 = vld [vmem:[%s2823 + $0xa] sm:$0xff]
  %v3050 = vld [vmem:[%s2823 + $0x12] sm:$0xff]
  %v3051 = vld [vmem:[%s2823 + $0x1a] sm:$0xf]
  %v3052 = vld [vmem:[%s2823 + $0x22] sm:$0xff]
  %v3053 = vld [vmem:[%s2823 + $0x2a] sm:$0xff]
  %v3054 = vld [vmem:[%s2823 + $0x32] sm:$0xff]
  %v3055 = vld [vmem:[%s2823 + $0x3a] sm:$0xf]
  %v3056 = vld [vmem:[%s2823 + $0x42] sm:$0xff]
  %v3057 = vld [vmem:[%s2823 + $0x4a] sm:$0xff]
  %v3058 = vld [vmem:[%s2823 + $0x52] sm:$0xff]
  %v3059 = vld [vmem:[%s2823 + $0x5a] sm:$0xf]
  %v3060 = vld [vmem:[%s2823 + $0x62] sm:$0xff]
  %v3061 = vld [vmem:[%s2823 + $0x6a] sm:$0xff]
  %v3062 = vld [vmem:[%s2823 + $0x72] sm:$0xff]
  %v3063 = vld [vmem:[%s2823 + $0x7a] sm:$0xf]
  %v3064 = vld [vmem:[%s2823 + $0x82] sm:$0xff]
  %v3065 = vld [vmem:[%s2823 + $0x8a] sm:$0xff]
  %v3066 = vld [vmem:[%s2823 + $0x92] sm:$0xff]
  %v3067 = vld [vmem:[%s2823 + $0x9a] sm:$0xf]
  %v3068 = vld [vmem:[%s2823 + $0xa2] sm:$0xff]
  %v3069 = vld [vmem:[%s2823 + $0xaa] sm:$0xff]
  %v3070 = vld [vmem:[%s2823 + $0xb2] sm:$0xff]
  %v3071 = vld [vmem:[%s2823 + $0xba] sm:$0xf]
  %v3072 = vmul.f32 %v3048, %v294
  %v3073 = vmul.f32 %v3049, %v294
  %v3074 = vmul.f32 %v3050, %v294
  %v3075 = vmul.f32 %v3051, %v294
  %v3076 = vmul.f32 %v3052, %v294
  %v3077 = vmul.f32 %v3053, %v294
  %v3078 = vmul.f32 %v3054, %v294
  %v3079 = vmul.f32 %v3055, %v294
  %v3080 = vmul.f32 %v3056, %v294
  %v3081 = vmul.f32 %v3057, %v294
  %v3082 = vmul.f32 %v3058, %v294
  %v3083 = vmul.f32 %v3059, %v294
  %v3084 = vmul.f32 %v3060, %v294
  %v3085 = vmul.f32 %v3061, %v294
  %v3086 = vmul.f32 %v3062, %v294
  %v3087 = vmul.f32 %v3063, %v294
  %v3088 = vadd.f32 %v3032, %v3072
  %v3089 = vadd.f32 %v3033, %v3073
  %v3090 = vadd.f32 %v3034, %v3074
  %v3091 = vadd.f32 %v3035, %v3075
  %v3092 = vadd.f32 %v3036, %v3076
  %v3093 = vadd.f32 %v3037, %v3077
  %v3094 = vadd.f32 %v3038, %v3078
  %v3095 = vadd.f32 %v3039, %v3079
  %v3096 = vadd.f32 %v3040, %v3080
  %v3097 = vadd.f32 %v3041, %v3081
  %v3098 = vadd.f32 %v3042, %v3082
  %v3099 = vadd.f32 %v3043, %v3083
  %v3100 = vadd.f32 %v3044, %v3084
  %v3101 = vadd.f32 %v3045, %v3085
  %v3102 = vadd.f32 %v3046, %v3086
  %v3103 = vadd.f32 %v3047, %v3087
  %v3104 = vmul.f32 %v3052, %v330
  %v3105 = vmul.f32 %v3053, %v330
  %v3106 = vmul.f32 %v3054, %v330
  %v3107 = vmul.f32 %v3055, %v330
  %v3108 = vmul.f32 %v3056, %v330
  %v3109 = vmul.f32 %v3057, %v330
  %v3110 = vmul.f32 %v3058, %v330
  %v3111 = vmul.f32 %v3059, %v330
  %v3112 = vmul.f32 %v3060, %v330
  %v3113 = vmul.f32 %v3061, %v330
  %v3114 = vmul.f32 %v3062, %v330
  %v3115 = vmul.f32 %v3063, %v330
  %v3116 = vmul.f32 %v3064, %v330
  %v3117 = vmul.f32 %v3065, %v330
  %v3118 = vmul.f32 %v3066, %v330
  %v3119 = vmul.f32 %v3067, %v330
  %v3120 = vadd.f32 %v3088, %v3104
  %v3121 = vadd.f32 %v3089, %v3105
  %v3122 = vadd.f32 %v3090, %v3106
  %v3123 = vadd.f32 %v3091, %v3107
  %v3124 = vadd.f32 %v3092, %v3108
  %v3125 = vadd.f32 %v3093, %v3109
  %v3126 = vadd.f32 %v3094, %v3110
  %v3127 = vadd.f32 %v3095, %v3111
  %v3128 = vadd.f32 %v3096, %v3112
  %v3129 = vadd.f32 %v3097, %v3113
  %v3130 = vadd.f32 %v3098, %v3114
  %v3131 = vadd.f32 %v3099, %v3115
  %v3132 = vadd.f32 %v3100, %v3116
  %v3133 = vadd.f32 %v3101, %v3117
  %v3134 = vadd.f32 %v3102, %v3118
  %v3135 = vadd.f32 %v3103, %v3119
  %v3136 = vmul.f32 %v3056, %v366
  %v3137 = vmul.f32 %v3057, %v366
  %v3138 = vmul.f32 %v3058, %v366
  %v3139 = vmul.f32 %v3059, %v366
  %v3140 = vmul.f32 %v3060, %v366
  %v3141 = vmul.f32 %v3061, %v366
  %v3142 = vmul.f32 %v3062, %v366
  %v3143 = vmul.f32 %v3063, %v366
  %v3144 = vmul.f32 %v3064, %v366
  %v3145 = vmul.f32 %v3065, %v366
  %v3146 = vmul.f32 %v3066, %v366
  %v3147 = vmul.f32 %v3067, %v366
  %v3148 = vmul.f32 %v3068, %v366
  %v3149 = vmul.f32 %v3069, %v366
  %v3150 = vmul.f32 %v3070, %v366
  %v3151 = vmul.f32 %v3071, %v366
  %v3152 = vadd.f32 %v3120, %v3136
  %v3153 = vadd.f32 %v3121, %v3137
  %v3154 = vadd.f32 %v3122, %v3138
  %v3155 = vadd.f32 %v3123, %v3139
  %v3156 = vadd.f32 %v3124, %v3140
  %v3157 = vadd.f32 %v3125, %v3141
  %v3158 = vadd.f32 %v3126, %v3142
  %v3159 = vadd.f32 %v3127, %v3143
  %v3160 = vadd.f32 %v3128, %v3144
  %v3161 = vadd.f32 %v3129, %v3145
  %v3162 = vadd.f32 %v3130, %v3146
  %v3163 = vadd.f32 %v3131, %v3147
  %v3164 = vadd.f32 %v3132, %v3148
  %v3165 = vadd.f32 %v3133, %v3149
  %v3166 = vadd.f32 %v3134, %v3150
  %v3167 = vadd.f32 %v3135, %v3151
  %s3168 = scalar_lea.vmem %s4, 640
  %3169 = vst [vmem:[%s3168] sm:$0xff] %v3152
  %3170 = vst [vmem:[%s3168 + $0x8] sm:$0xff] %v3153
  %3171 = vst [vmem:[%s3168 + $0x10] sm:$0xff] %v3154
  %3172 = vst [vmem:[%s3168 + $0x18] sm:$0xf] %v3155
  %3173 = vst [vmem:[%s3168 + $0x20] sm:$0xff] %v3156
  %3174 = vst [vmem:[%s3168 + $0x28] sm:$0xff] %v3157
  %3175 = vst [vmem:[%s3168 + $0x30] sm:$0xff] %v3158
  %3176 = vst [vmem:[%s3168 + $0x38] sm:$0xf] %v3159
  %3177 = vst [vmem:[%s3168 + $0x40] sm:$0xff] %v3160
  %3178 = vst [vmem:[%s3168 + $0x48] sm:$0xff] %v3161
  %3179 = vst [vmem:[%s3168 + $0x50] sm:$0xff] %v3162
  %3180 = vst [vmem:[%s3168 + $0x58] sm:$0xf] %v3163
  %3181 = vst [vmem:[%s3168 + $0x60] sm:$0xff] %v3164
  %3182 = vst [vmem:[%s3168 + $0x68] sm:$0xff] %v3165
  %3183 = vst [vmem:[%s3168 + $0x70] sm:$0xff] %v3166
  %3184 = vst [vmem:[%s3168 + $0x78] sm:$0xf] %v3167
  %v3201 = vcombine.high %v3152, %v3152
  %v3202 = vcombine.high %v3153, %v3153
  %v3203 = vcombine.high %v3154, %v3154
  %v3204 = vcombine.high %v3156, %v3156
  %v3205 = vcombine.high %v3157, %v3157
  %v3206 = vcombine.high %v3158, %v3158
  %v3207 = vcombine.high %v3160, %v3160
  %v3208 = vcombine.high %v3161, %v3161
  %v3209 = vcombine.high %v3162, %v3162
  %v3210 = vcombine.high %v3164, %v3164
  %v3211 = vcombine.high %v3165, %v3165
  %v3212 = vcombine.high %v3166, %v3166
  %v3225 = vcombine.low %v3152, %v3201
  %v3226 = vcombine.low %v3153, %v3202
  %v3227 = vcombine.low %v3154, %v3203
  %v3228 = vcombine.low %v3155, %v3156
  %v3229 = vcombine.low %v3204, %v3157
  %v3230 = vcombine.low %v3205, %v3158
  %v3231 = vcombine.low %v3206, %v3159
  %v3232 = vcombine.low %v3160, %v3207
  %v3233 = vcombine.low %v3161, %v3208
  %v3234 = vcombine.low %v3162, %v3209
  %v3235 = vcombine.low %v3163, %v3164
  %v3236 = vcombine.low %v3210, %v3165
  %v3237 = vcombine.low %v3211, %v3166
  %v3238 = vcombine.low %v3212, %v3167
  %v3253 = vadd.f32 %v3225, %v3226
  %v3254 = vadd.f32 %v3253, %v3227
  %v3255 = vadd.f32 %v3254, %v3228
  %v3256 = vadd.f32 %v3255, %v3229
  %v3257 = vadd.f32 %v3256, %v3230
  %v3258 = vadd.f32 %v3257, %v3231
  %v3259 = vadd.f32 %v3258, %v3232
  %v3260 = vadd.f32 %v3259, %v3233
  %v3261 = vadd.f32 %v3260, %v3234
  %v3262 = vadd.f32 %v3261, %v3235
  %v3263 = vadd.f32 %v3262, %v3236
  %v3264 = vadd.f32 %v3263, %v3237
  %v3265 = vadd.f32 %v3264, %v3238
  %v3266 = vrot.slane %v3265, 4
  %v3267 = vadd.f32 %v3265, %v3266
  %v3268 = vrot.slane %v3267, 2
  %v3269 = vadd.f32 %v3267, %v3268
  %v3270 = vrot.slane %v3269, 1
  %v3271 = vadd.f32 %v3269, %v3270
  %v3272 = vadd.f32 %v2718, %v3271
  %v3273 = vmul.f32 %v3152, %v3152
  %v3274 = vmul.f32 %v3201, %v3201
  %v3275 = vmul.f32 %v3153, %v3153
  %v3276 = vmul.f32 %v3202, %v3202
  %v3277 = vmul.f32 %v3154, %v3154
  %v3278 = vmul.f32 %v3203, %v3203
  %v3279 = vmul.f32 %v3155, %v3155
  %v3280 = vmul.f32 %v3156, %v3156
  %v3281 = vmul.f32 %v3204, %v3204
  %v3282 = vmul.f32 %v3157, %v3157
  %v3283 = vmul.f32 %v3205, %v3205
  %v3284 = vmul.f32 %v3158, %v3158
  %v3285 = vmul.f32 %v3206, %v3206
  %v3286 = vmul.f32 %v3159, %v3159
  %v3287 = vmul.f32 %v3160, %v3160
  %v3288 = vmul.f32 %v3207, %v3207
  %v3289 = vmul.f32 %v3161, %v3161
  %v3290 = vmul.f32 %v3208, %v3208
  %v3291 = vmul.f32 %v3162, %v3162
  %v3292 = vmul.f32 %v3209, %v3209
  %v3293 = vmul.f32 %v3163, %v3163
  %v3294 = vmul.f32 %v3164, %v3164
  %v3295 = vmul.f32 %v3210, %v3210
  %v3296 = vmul.f32 %v3165, %v3165
  %v3297 = vmul.f32 %v3211, %v3211
  %v3298 = vmul.f32 %v3166, %v3166
  %v3299 = vmul.f32 %v3212, %v3212
  %v3300 = vmul.f32 %v3167, %v3167
  %v3329 = vcombine.low %v3273, %v3274
  %v3330 = vcombine.low %v3275, %v3276
  %v3331 = vcombine.low %v3277, %v3278
  %v3332 = vcombine.low %v3279, %v3280
  %v3333 = vcombine.low %v3281, %v3282
  %v3334 = vcombine.low %v3283, %v3284
  %v3335 = vcombine.low %v3285, %v3286
  %v3336 = vcombine.low %v3287, %v3288
  %v3337 = vcombine.low %v3289, %v3290
  %v3338 = vcombine.low %v3291, %v3292
  %v3339 = vcombine.low %v3293, %v3294
  %v3340 = vcombine.low %v3295, %v3296
  %v3341 = vcombine.low %v3297, %v3298
  %v3342 = vcombine.low %v3299, %v3300
  %v3357 = vadd.f32 %v3329, %v3330
  %v3358 = vadd.f32 %v3357, %v3331
  %v3359 = vadd.f32 %v3358, %v3332
  %v3360 = vadd.f32 %v3359, %v3333
  %v3361 = vadd.f32 %v3360, %v3334
  %v3362 = vadd.f32 %v3361, %v3335
  %v3363 = vadd.f32 %v3362, %v3336
  %v3364 = vadd.f32 %v3363, %v3337
  %v3365 = vadd.f32 %v3364, %v3338
  %v3366 = vadd.f32 %v3365, %v3339
  %v3367 = vadd.f32 %v3366, %v3340
  %v3368 = vadd.f32 %v3367, %v3341
  %v3369 = vadd.f32 %v3368, %v3342
  %v3370 = vrot.slane %v3369, 4
  %v3371 = vadd.f32 %v3369, %v3370
  %v3372 = vrot.slane %v3371, 2
  %v3373 = vadd.f32 %v3371, %v3372
  %v3374 = vrot.slane %v3373, 1
  %v3375 = vadd.f32 %v3373, %v3374
  %v3376 = vadd.f32 %v2822, %v3375
  %s3377 = scalar_lea.vmem %s0, 768
  %v3378 = vld [vmem:[%s3377] sm:$0xff]
  %v3379 = vld [vmem:[%s3377 + $0x8] sm:$0xff]
  %v3380 = vld [vmem:[%s3377 + $0x10] sm:$0xff]
  %v3381 = vld [vmem:[%s3377 + $0x18] sm:$0xf]
  %v3382 = vld [vmem:[%s3377 + $0x20] sm:$0xff]
  %v3383 = vld [vmem:[%s3377 + $0x28] sm:$0xff]
  %v3384 = vld [vmem:[%s3377 + $0x30] sm:$0xff]
  %v3385 = vld [vmem:[%s3377 + $0x38] sm:$0xf]
  %v3386 = vld [vmem:[%s3377 + $0x40] sm:$0xff]
  %v3387 = vld [vmem:[%s3377 + $0x48] sm:$0xff]
  %v3388 = vld [vmem:[%s3377 + $0x50] sm:$0xff]
  %v3389 = vld [vmem:[%s3377 + $0x58] sm:$0xf]
  %v3390 = vld [vmem:[%s3377 + $0x60] sm:$0xff]
  %v3391 = vld [vmem:[%s3377 + $0x68] sm:$0xff]
  %v3392 = vld [vmem:[%s3377 + $0x70] sm:$0xff]
  %v3393 = vld [vmem:[%s3377 + $0x78] sm:$0xf]
  %v3394 = vld [vmem:[%s3377 + $0x80] sm:$0xff]
  %v3395 = vld [vmem:[%s3377 + $0x88] sm:$0xff]
  %v3396 = vld [vmem:[%s3377 + $0x90] sm:$0xff]
  %v3397 = vld [vmem:[%s3377 + $0x98] sm:$0xf]
  %v3398 = vld [vmem:[%s3377 + $0xa0] sm:$0xff]
  %v3399 = vld [vmem:[%s3377 + $0xa8] sm:$0xff]
  %v3400 = vld [vmem:[%s3377 + $0xb0] sm:$0xff]
  %v3401 = vld [vmem:[%s3377 + $0xb8] sm:$0xf]
  %v3402 = vmul.f32 %v3378, %v46
  %v3403 = vmul.f32 %v3379, %v46
  %v3404 = vmul.f32 %v3380, %v46
  %v3405 = vmul.f32 %v3381, %v46
  %v3406 = vmul.f32 %v3382, %v46
  %v3407 = vmul.f32 %v3383, %v46
  %v3408 = vmul.f32 %v3384, %v46
  %v3409 = vmul.f32 %v3385, %v46
  %v3410 = vmul.f32 %v3386, %v46
  %v3411 = vmul.f32 %v3387, %v46
  %v3412 = vmul.f32 %v3388, %v46
  %v3413 = vmul.f32 %v3389, %v46
  %v3414 = vmul.f32 %v3390, %v46
  %v3415 = vmul.f32 %v3391, %v46
  %v3416 = vmul.f32 %v3392, %v46
  %v3417 = vmul.f32 %v3393, %v46
  %v3418 = vmul.f32 %v3382, %v66
  %v3419 = vmul.f32 %v3383, %v66
  %v3420 = vmul.f32 %v3384, %v66
  %v3421 = vmul.f32 %v3385, %v66
  %v3422 = vmul.f32 %v3386, %v66
  %v3423 = vmul.f32 %v3387, %v66
  %v3424 = vmul.f32 %v3388, %v66
  %v3425 = vmul.f32 %v3389, %v66
  %v3426 = vmul.f32 %v3390, %v66
  %v3427 = vmul.f32 %v3391, %v66
  %v3428 = vmul.f32 %v3392, %v66
  %v3429 = vmul.f32 %v3393, %v66
  %v3430 = vmul.f32 %v3394, %v66
  %v3431 = vmul.f32 %v3395, %v66
  %v3432 = vmul.f32 %v3396, %v66
  %v3433 = vmul.f32 %v3397, %v66
  %v3434 = vadd.f32 %v3402, %v3418
  %v3435 = vadd.f32 %v3403, %v3419
  %v3436 = vadd.f32 %v3404, %v3420
  %v3437 = vadd.f32 %v3405, %v3421
  %v3438 = vadd.f32 %v3406, %v3422
  %v3439 = vadd.f32 %v3407, %v3423
  %v3440 = vadd.f32 %v3408, %v3424
  %v3441 = vadd.f32 %v3409, %v3425
  %v3442 = vadd.f32 %v3410, %v3426
  %v3443 = vadd.f32 %v3411, %v3427
  %v3444 = vadd.f32 %v3412, %v3428
  %v3445 = vadd.f32 %v3413, %v3429
  %v3446 = vadd.f32 %v3414, %v3430
  %v3447 = vadd.f32 %v3415, %v3431
  %v3448 = vadd.f32 %v3416, %v3432
  %v3449 = vadd.f32 %v3417, %v3433
  %v3450 = vmul.f32 %v3386, %v102
  %v3451 = vmul.f32 %v3387, %v102
  %v3452 = vmul.f32 %v3388, %v102
  %v3453 = vmul.f32 %v3389, %v102
  %v3454 = vmul.f32 %v3390, %v102
  %v3455 = vmul.f32 %v3391, %v102
  %v3456 = vmul.f32 %v3392, %v102
  %v3457 = vmul.f32 %v3393, %v102
  %v3458 = vmul.f32 %v3394, %v102
  %v3459 = vmul.f32 %v3395, %v102
  %v3460 = vmul.f32 %v3396, %v102
  %v3461 = vmul.f32 %v3397, %v102
  %v3462 = vmul.f32 %v3398, %v102
  %v3463 = vmul.f32 %v3399, %v102
  %v3464 = vmul.f32 %v3400, %v102
  %v3465 = vmul.f32 %v3401, %v102
  %v3466 = vadd.f32 %v3434, %v3450
  %v3467 = vadd.f32 %v3435, %v3451
  %v3468 = vadd.f32 %v3436, %v3452
  %v3469 = vadd.f32 %v3437, %v3453
  %v3470 = vadd.f32 %v3438, %v3454
  %v3471 = vadd.f32 %v3439, %v3455
  %v3472 = vadd.f32 %v3440, %v3456
  %v3473 = vadd.f32 %v3441, %v3457
  %v3474 = vadd.f32 %v3442, %v3458
  %v3475 = vadd.f32 %v3443, %v3459
  %v3476 = vadd.f32 %v3444, %v3460
  %v3477 = vadd.f32 %v3445, %v3461
  %v3478 = vadd.f32 %v3446, %v3462
  %v3479 = vadd.f32 %v3447, %v3463
  %v3480 = vadd.f32 %v3448, %v3464
  %v3481 = vadd.f32 %v3449, %v3465
  %v3482 = vld [vmem:[%s3377 + $0x1] sm:$0xff]
  %v3483 = vld [vmem:[%s3377 + $0x9] sm:$0xff]
  %v3484 = vld [vmem:[%s3377 + $0x11] sm:$0xff]
  %v3485 = vld [vmem:[%s3377 + $0x19] sm:$0xf]
  %v3486 = vld [vmem:[%s3377 + $0x21] sm:$0xff]
  %v3487 = vld [vmem:[%s3377 + $0x29] sm:$0xff]
  %v3488 = vld [vmem:[%s3377 + $0x31] sm:$0xff]
  %v3489 = vld [vmem:[%s3377 + $0x39] sm:$0xf]
  %v3490 = vld [vmem:[%s3377 + $0x41] sm:$0xff]
  %v3491 = vld [vmem:[%s3377 + $0x49] sm:$0xff]
  %v3492 = vld [vmem:[%s3377 + $0x51] sm:$0xff]
  %v3493 = vld [vmem:[%s3377 + $0x59] sm:$0xf]
  %v3494 = vld [vmem:[%s3377 + $0x61] sm:$0xff]
  %v3495 = vld [vmem:[%s3377 + $0x69] sm:$0xff]
  %v3496 = vld [vmem:[%s3377 + $0x71] sm:$0xff]
  %v3497 = vld [vmem:[%s3377 + $0x79] sm:$0xf]
  %v3498 = vld [vmem:[%s3377 + $0x81] sm:$0xff]
  %v3499 = vld [vmem:[%s3377 + $0x89] sm:$0xff]
  %v3500 = vld [vmem:[%s3377 + $0x91] sm:$0xff]
  %v3501 = vld [vmem:[%s3377 + $0x99] sm:$0xf]
  %v3502 = vld [vmem:[%s3377 + $0xa1] sm:$0xff]
  %v3503 = vld [vmem:[%s3377 + $0xa9] sm:$0xff]
  %v3504 = vld [vmem:[%s3377 + $0xb1] sm:$0xff]
  %v3505 = vld [vmem:[%s3377 + $0xb9] sm:$0xf]
  %v3506 = vmul.f32 %v3482, %v162
  %v3507 = vmul.f32 %v3483, %v162
  %v3508 = vmul.f32 %v3484, %v162
  %v3509 = vmul.f32 %v3485, %v162
  %v3510 = vmul.f32 %v3486, %v162
  %v3511 = vmul.f32 %v3487, %v162
  %v3512 = vmul.f32 %v3488, %v162
  %v3513 = vmul.f32 %v3489, %v162
  %v3514 = vmul.f32 %v3490, %v162
  %v3515 = vmul.f32 %v3491, %v162
  %v3516 = vmul.f32 %v3492, %v162
  %v3517 = vmul.f32 %v3493, %v162
  %v3518 = vmul.f32 %v3494, %v162
  %v3519 = vmul.f32 %v3495, %v162
  %v3520 = vmul.f32 %v3496, %v162
  %v3521 = vmul.f32 %v3497, %v162
  %v3522 = vadd.f32 %v3466, %v3506
  %v3523 = vadd.f32 %v3467, %v3507
  %v3524 = vadd.f32 %v3468, %v3508
  %v3525 = vadd.f32 %v3469, %v3509
  %v3526 = vadd.f32 %v3470, %v3510
  %v3527 = vadd.f32 %v3471, %v3511
  %v3528 = vadd.f32 %v3472, %v3512
  %v3529 = vadd.f32 %v3473, %v3513
  %v3530 = vadd.f32 %v3474, %v3514
  %v3531 = vadd.f32 %v3475, %v3515
  %v3532 = vadd.f32 %v3476, %v3516
  %v3533 = vadd.f32 %v3477, %v3517
  %v3534 = vadd.f32 %v3478, %v3518
  %v3535 = vadd.f32 %v3479, %v3519
  %v3536 = vadd.f32 %v3480, %v3520
  %v3537 = vadd.f32 %v3481, %v3521
  %v3538 = vmul.f32 %v3486, %v198
  %v3539 = vmul.f32 %v3487, %v198
  %v3540 = vmul.f32 %v3488, %v198
  %v3541 = vmul.f32 %v3489, %v198
  %v3542 = vmul.f32 %v3490, %v198
  %v3543 = vmul.f32 %v3491, %v198
  %v3544 = vmul.f32 %v3492, %v198
  %v3545 = vmul.f32 %v3493, %v198
  %v3546 = vmul.f32 %v3494, %v198
  %v3547 = vmul.f32 %v3495, %v198
  %v3548 = vmul.f32 %v3496, %v198
  %v3549 = vmul.f32 %v3497, %v198
  %v3550 = vmul.f32 %v3498, %v198
  %v3551 = vmul.f32 %v3499, %v198
  %v3552 = vmul.f32 %v3500, %v198
  %v3553 = vmul.f32 %v3501, %v198
  %v3554 = vadd.f32 %v3522, %v3538
  %v3555 = vadd.f32 %v3523, %v3539
  %v3556 = vadd.f32 %v3524, %v3540
  %v3557 = vadd.f32 %v3525, %v3541
  %v3558 = vadd.f32 %v3526, %v3542
  %v3559 = vadd.f32 %v3527, %v3543
  %v3560 = vadd.f32 %v3528, %v3544
  %v3561 = vadd.f32 %v3529, %v3545
  %v3562 = vadd.f32 %v3530, %v3546
  %v3563 = vadd.f32 %v3531, %v3547
  %v3564 = vadd.f32 %v3532, %v3548
  %v3565 = vadd.f32 %v3533, %v3549
  %v3566 = vadd.f32 %v3534, %v3550
  %v3567 = vadd.f32 %v3535, %v3551
  %v3568 = vadd.f32 %v3536, %v3552
  %v3569 = vadd.f32 %v3537, %v3553
  %v3570 = vmul.f32 %v3490, %v234
  %v3571 = vmul.f32 %v3491, %v234
  %v3572 = vmul.f32 %v3492, %v234
  %v3573 = vmul.f32 %v3493, %v234
  %v3574 = vmul.f32 %v3494, %v234
  %v3575 = vmul.f32 %v3495, %v234
  %v3576 = vmul.f32 %v3496, %v234
  %v3577 = vmul.f32 %v3497, %v234
  %v3578 = vmul.f32 %v3498, %v234
  %v3579 = vmul.f32 %v3499, %v234
  %v3580 = vmul.f32 %v3500, %v234
  %v3581 = vmul.f32 %v3501, %v234
  %v3582 = vmul.f32 %v3502, %v234
  %v3583 = vmul.f32 %v3503, %v234
  %v3584 = vmul.f32 %v3504, %v234
  %v3585 = vmul.f32 %v3505, %v234
  %v3586 = vadd.f32 %v3554, %v3570
  %v3587 = vadd.f32 %v3555, %v3571
  %v3588 = vadd.f32 %v3556, %v3572
  %v3589 = vadd.f32 %v3557, %v3573
  %v3590 = vadd.f32 %v3558, %v3574
  %v3591 = vadd.f32 %v3559, %v3575
  %v3592 = vadd.f32 %v3560, %v3576
  %v3593 = vadd.f32 %v3561, %v3577
  %v3594 = vadd.f32 %v3562, %v3578
  %v3595 = vadd.f32 %v3563, %v3579
  %v3596 = vadd.f32 %v3564, %v3580
  %v3597 = vadd.f32 %v3565, %v3581
  %v3598 = vadd.f32 %v3566, %v3582
  %v3599 = vadd.f32 %v3567, %v3583
  %v3600 = vadd.f32 %v3568, %v3584
  %v3601 = vadd.f32 %v3569, %v3585
  %v3602 = vld [vmem:[%s3377 + $0x2] sm:$0xff]
  %v3603 = vld [vmem:[%s3377 + $0xa] sm:$0xff]
  %v3604 = vld [vmem:[%s3377 + $0x12] sm:$0xff]
  %v3605 = vld [vmem:[%s3377 + $0x1a] sm:$0xf]
  %v3606 = vld [vmem:[%s3377 + $0x22] sm:$0xff]
  %v3607 = vld [vmem:[%s3377 + $0x2a] sm:$0xff]
  %v3608 = vld [vmem:[%s3377 + $0x32] sm:$0xff]
  %v3609 = vld [vmem:[%s3377 + $0x3a] sm:$0xf]
  %v3610 = vld [vmem:[%s3377 + $0x42] sm:$0xff]
  %v3611 = vld [vmem:[%s3377 + $0x4a] sm:$0xff]
  %v3612 = vld [vmem:[%s3377 + $0x52] sm:$0xff]
  %v3613 = vld [vmem:[%s3377 + $0x5a] sm:$0xf]
  %v3614 = vld [vmem:[%s3377 + $0x62] sm:$0xff]
  %v3615 = vld [vmem:[%s3377 + $0x6a] sm:$0xff]
  %v3616 = vld [vmem:[%s3377 + $0x72] sm:$0xff]
  %v3617 = vld [vmem:[%s3377 + $0x7a] sm:$0xf]
  %v3618 = vld [vmem:[%s3377 + $0x82] sm:$0xff]
  %v3619 = vld [vmem:[%s3377 + $0x8a] sm:$0xff]
  %v3620 = vld [vmem:[%s3377 + $0x92] sm:$0xff]
  %v3621 = vld [vmem:[%s3377 + $0x9a] sm:$0xf]
  %v3622 = vld [vmem:[%s3377 + $0xa2] sm:$0xff]
  %v3623 = vld [vmem:[%s3377 + $0xaa] sm:$0xff]
  %v3624 = vld [vmem:[%s3377 + $0xb2] sm:$0xff]
  %v3625 = vld [vmem:[%s3377 + $0xba] sm:$0xf]
  %v3626 = vmul.f32 %v3602, %v294
  %v3627 = vmul.f32 %v3603, %v294
  %v3628 = vmul.f32 %v3604, %v294
  %v3629 = vmul.f32 %v3605, %v294
  %v3630 = vmul.f32 %v3606, %v294
  %v3631 = vmul.f32 %v3607, %v294
  %v3632 = vmul.f32 %v3608, %v294
  %v3633 = vmul.f32 %v3609, %v294
  %v3634 = vmul.f32 %v3610, %v294
  %v3635 = vmul.f32 %v3611, %v294
  %v3636 = vmul.f32 %v3612, %v294
  %v3637 = vmul.f32 %v3613, %v294
  %v3638 = vmul.f32 %v3614, %v294
  %v3639 = vmul.f32 %v3615, %v294
  %v3640 = vmul.f32 %v3616, %v294
  %v3641 = vmul.f32 %v3617, %v294
  %v3642 = vadd.f32 %v3586, %v3626
  %v3643 = vadd.f32 %v3587, %v3627
  %v3644 = vadd.f32 %v3588, %v3628
  %v3645 = vadd.f32 %v3589, %v3629
  %v3646 = vadd.f32 %v3590, %v3630
  %v3647 = vadd.f32 %v3591, %v3631
  %v3648 = vadd.f32 %v3592, %v3632
  %v3649 = vadd.f32 %v3593, %v3633
  %v3650 = vadd.f32 %v3594, %v3634
  %v3651 = vadd.f32 %v3595, %v3635
  %v3652 = vadd.f32 %v3596, %v3636
  %v3653 = vadd.f32 %v3597, %v3637
  %v3654 = vadd.f32 %v3598, %v3638
  %v3655 = vadd.f32 %v3599, %v3639
  %v3656 = vadd.f32 %v3600, %v3640
  %v3657 = vadd.f32 %v3601, %v3641
  %v3658 = vmul.f32 %v3606, %v330
  %v3659 = vmul.f32 %v3607, %v330
  %v3660 = vmul.f32 %v3608, %v330
  %v3661 = vmul.f32 %v3609, %v330
  %v3662 = vmul.f32 %v3610, %v330
  %v3663 = vmul.f32 %v3611, %v330
  %v3664 = vmul.f32 %v3612, %v330
  %v3665 = vmul.f32 %v3613, %v330
  %v3666 = vmul.f32 %v3614, %v330
  %v3667 = vmul.f32 %v3615, %v330
  %v3668 = vmul.f32 %v3616, %v330
  %v3669 = vmul.f32 %v3617, %v330
  %v3670 = vmul.f32 %v3618, %v330
  %v3671 = vmul.f32 %v3619, %v330
  %v3672 = vmul.f32 %v3620, %v330
  %v3673 = vmul.f32 %v3621, %v330
  %v3674 = vadd.f32 %v3642, %v3658
  %v3675 = vadd.f32 %v3643, %v3659
  %v3676 = vadd.f32 %v3644, %v3660
  %v3677 = vadd.f32 %v3645, %v3661
  %v3678 = vadd.f32 %v3646, %v3662
  %v3679 = vadd.f32 %v3647, %v3663
  %v3680 = vadd.f32 %v3648, %v3664
  %v3681 = vadd.f32 %v3649, %v3665
  %v3682 = vadd.f32 %v3650, %v3666
  %v3683 = vadd.f32 %v3651, %v3667
  %v3684 = vadd.f32 %v3652, %v3668
  %v3685 = vadd.f32 %v3653, %v3669
  %v3686 = vadd.f32 %v3654, %v3670
  %v3687 = vadd.f32 %v3655, %v3671
  %v3688 = vadd.f32 %v3656, %v3672
  %v3689 = vadd.f32 %v3657, %v3673
  %v3690 = vmul.f32 %v3610, %v366
  %v3691 = vmul.f32 %v3611, %v366
  %v3692 = vmul.f32 %v3612, %v366
  %v3693 = vmul.f32 %v3613, %v366
  %v3694 = vmul.f32 %v3614, %v366
  %v3695 = vmul.f32 %v3615, %v366
  %v3696 = vmul.f32 %v3616, %v366
  %v3697 = vmul.f32 %v3617, %v366
  %v3698 = vmul.f32 %v3618, %v366
  %v3699 = vmul.f32 %v3619, %v366
  %v3700 = vmul.f32 %v3620, %v366
  %v3701 = vmul.f32 %v3621, %v366
  %v3702 = vmul.f32 %v3622, %v366
  %v3703 = vmul.f32 %v3623, %v366
  %v3704 = vmul.f32 %v3624, %v366
  %v3705 = vmul.f32 %v3625, %v366
  %v3706 = vadd.f32 %v3674, %v3690
  %v3707 = vadd.f32 %v3675, %v3691
  %v3708 = vadd.f32 %v3676, %v3692
  %v3709 = vadd.f32 %v3677, %v3693
  %v3710 = vadd.f32 %v3678, %v3694
  %v3711 = vadd.f32 %v3679, %v3695
  %v3712 = vadd.f32 %v3680, %v3696
  %v3713 = vadd.f32 %v3681, %v3697
  %v3714 = vadd.f32 %v3682, %v3698
  %v3715 = vadd.f32 %v3683, %v3699
  %v3716 = vadd.f32 %v3684, %v3700
  %v3717 = vadd.f32 %v3685, %v3701
  %v3718 = vadd.f32 %v3686, %v3702
  %v3719 = vadd.f32 %v3687, %v3703
  %v3720 = vadd.f32 %v3688, %v3704
  %v3721 = vadd.f32 %v3689, %v3705
  %s3722 = scalar_lea.vmem %s4, 768
  %3723 = vst [vmem:[%s3722] sm:$0xff] %v3706
  %3724 = vst [vmem:[%s3722 + $0x8] sm:$0xff] %v3707
  %3725 = vst [vmem:[%s3722 + $0x10] sm:$0xff] %v3708
  %3726 = vst [vmem:[%s3722 + $0x18] sm:$0xf] %v3709
  %3727 = vst [vmem:[%s3722 + $0x20] sm:$0xff] %v3710
  %3728 = vst [vmem:[%s3722 + $0x28] sm:$0xff] %v3711
  %3729 = vst [vmem:[%s3722 + $0x30] sm:$0xff] %v3712
  %3730 = vst [vmem:[%s3722 + $0x38] sm:$0xf] %v3713
  %3731 = vst [vmem:[%s3722 + $0x40] sm:$0xff] %v3714
  %3732 = vst [vmem:[%s3722 + $0x48] sm:$0xff] %v3715
  %3733 = vst [vmem:[%s3722 + $0x50] sm:$0xff] %v3716
  %3734 = vst [vmem:[%s3722 + $0x58] sm:$0xf] %v3717
  %3735 = vst [vmem:[%s3722 + $0x60] sm:$0xff] %v3718
  %3736 = vst [vmem:[%s3722 + $0x68] sm:$0xff] %v3719
  %3737 = vst [vmem:[%s3722 + $0x70] sm:$0xff] %v3720
  %3738 = vst [vmem:[%s3722 + $0x78] sm:$0xf] %v3721
  %v3755 = vcombine.high %v3706, %v3706
  %v3756 = vcombine.high %v3707, %v3707
  %v3757 = vcombine.high %v3708, %v3708
  %v3758 = vcombine.high %v3710, %v3710
  %v3759 = vcombine.high %v3711, %v3711
  %v3760 = vcombine.high %v3712, %v3712
  %v3761 = vcombine.high %v3714, %v3714
  %v3762 = vcombine.high %v3715, %v3715
  %v3763 = vcombine.high %v3716, %v3716
  %v3764 = vcombine.high %v3718, %v3718
  %v3765 = vcombine.high %v3719, %v3719
  %v3766 = vcombine.high %v3720, %v3720
  %v3779 = vcombine.low %v3706, %v3755
  %v3780 = vcombine.low %v3707, %v3756
  %v3781 = vcombine.low %v3708, %v3757
  %v3782 = vcombine.low %v3709, %v3710
  %v3783 = vcombine.low %v3758, %v3711
  %v3784 = vcombine.low %v3759, %v3712
  %v3785 = vcombine.low %v3760, %v3713
  %v3786 = vcombine.low %v3714, %v3761
  %v3787 = vcombine.low %v3715, %v3762
  %v3788 = vcombine.low %v3716, %v3763
  %v3789 = vcombine.low %v3717, %v3718
  %v3790 = vcombine.low %v3764, %v3719
  %v3791 = vcombine.low %v3765, %v3720
  %v3792 = vcombine.low %v3766, %v3721
  %v3807 = vadd.f32 %v3779, %v3780
  %v3808 = vadd.f32 %v3807, %v3781
  %v3809 = vadd.f32 %v3808, %v3782
  %v3810 = vadd.f32 %v3809, %v3783
  %v3811 = vadd.f32 %v3810, %v3784
  %v3812 = vadd.f32 %v3811, %v3785
  %v3813 = vadd.f32 %v3812, %v3786
  %v3814 = vadd.f32 %v3813, %v3787
  %v3815 = vadd.f32 %v3814, %v3788
  %v3816 = vadd.f32 %v3815, %v3789
  %v3817 = vadd.f32 %v3816, %v3790
  %v3818 = vadd.f32 %v3817, %v3791
  %v3819 = vadd.f32 %v3818, %v3792
  %v3820 = vrot.slane %v3819, 4
  %v3821 = vadd.f32 %v3819, %v3820
  %v3822 = vrot.slane %v3821, 2
  %v3823 = vadd.f32 %v3821, %v3822
  %v3824 = vrot.slane %v3823, 1
  %v3825 = vadd.f32 %v3823, %v3824
  %v3826 = vadd.f32 %v3272, %v3825
  %v3827 = vmul.f32 %v3706, %v3706
  %v3828 = vmul.f32 %v3755, %v3755
  %v3829 = vmul.f32 %v3707, %v3707
  %v3830 = vmul.f32 %v3756, %v3756
  %v3831 = vmul.f32 %v3708, %v3708
  %v3832 = vmul.f32 %v3757, %v3757
  %v3833 = vmul.f32 %v3709, %v3709
  %v3834 = vmul.f32 %v3710, %v3710
  %v3835 = vmul.f32 %v3758, %v3758
  %v3836 = vmul.f32 %v3711, %v3711
  %v3837 = vmul.f32 %v3759, %v3759
  %v3838 = vmul.f32 %v3712, %v3712
  %v3839 = vmul.f32 %v3760, %v3760
  %v3840 = vmul.f32 %v3713, %v3713
  %v3841 = vmul.f32 %v3714, %v3714
  %v3842 = vmul.f32 %v3761, %v3761
  %v3843 = vmul.f32 %v3715, %v3715
  %v3844 = vmul.f32 %v3762, %v3762
  %v3845 = vmul.f32 %v3716, %v3716
  %v3846 = vmul.f32 %v3763, %v3763
  %v3847 = vmul.f32 %v3717, %v3717
  %v3848 = vmul.f32 %v3718, %v3718
  %v3849 = vmul.f32 %v3764, %v3764
  %v3850 = vmul.f32 %v3719, %v3719
  %v3851 = vmul.f32 %v3765, %v3765
  %v3852 = vmul.f32 %v3720, %v3720
  %v3853 = vmul.f32 %v3766, %v3766
  %v3854 = vmul.f32 %v3721, %v3721
  %v3883 = vcombine.low %v3827, %v3828
  %v3884 = vcombine.low %v3829, %v3830
  %v3885 = vcombine.low %v3831, %v3832
  %v3886 = vcombine.low %v3833, %v3834
  %v3887 = vcombine.low %v3835, %v3836
  %v3888 = vcombine.low %v3837, %v3838
  %v3889 = vcombine.low %v3839, %v3840
  %v3890 = vcombine.low %v3841, %v3842
  %v3891 = vcombine.low %v3843, %v3844
  %v3892 = vcombine.low %v3845, %v3846
  %v3893 = vcombine.low %v3847, %v3848
  %v3894 = vcombine.low %v3849, %v3850
  %v3895 = vcombine.low %v3851, %v3852
  %v3896 = vcombine.low %v3853, %v3854
  %v3911 = vadd.f32 %v3883, %v3884
  %v3912 = vadd.f32 %v3911, %v3885
  %v3913 = vadd.f32 %v3912, %v3886
  %v3914 = vadd.f32 %v3913, %v3887
  %v3915 = vadd.f32 %v3914, %v3888
  %v3916 = vadd.f32 %v3915, %v3889
  %v3917 = vadd.f32 %v3916, %v3890
  %v3918 = vadd.f32 %v3917, %v3891
  %v3919 = vadd.f32 %v3918, %v3892
  %v3920 = vadd.f32 %v3919, %v3893
  %v3921 = vadd.f32 %v3920, %v3894
  %v3922 = vadd.f32 %v3921, %v3895
  %v3923 = vadd.f32 %v3922, %v3896
  %v3924 = vrot.slane %v3923, 4
  %v3925 = vadd.f32 %v3923, %v3924
  %v3926 = vrot.slane %v3925, 2
  %v3927 = vadd.f32 %v3925, %v3926
  %v3928 = vrot.slane %v3927, 1
  %v3929 = vadd.f32 %v3927, %v3928
  %v3930 = vadd.f32 %v3376, %v3929
  %v3931 = vmul.f32 %v3826, 0.0012755102
  %v3932 = vmul.f32 %v3930, 0.0012755102
  %v3933 = vmul.f32 %v3931, %v3931
  %v3934 = vsub.f32 %v3932, %v3933
  %v3935 = vmax.f32 %v3934, 0.0
  %v3936 = vadd.f32 %v3935, 0.001
  %v3937 = vrsqrt.pop %v3936
  %v3938 = vld [vmem:[%s2] sm:$0x1]
  %v3939 = vld [vmem:[%s3] sm:$0x1]
  %v3940 = vmul.f32 %v3938, %v3937
  %v3941 = vmul.f32 %v3931, %v3938
  %v3942 = vmul.f32 %v3941, %v3937
  %v3943 = vsub.f32 %v3939, %v3942
  %v3944 = vld [vmem:[%s4] sm:$0xff]
  %v3945 = vld [vmem:[%s4 + $0x8] sm:$0xff]
  %v3946 = vld [vmem:[%s4 + $0x10] sm:$0xff]
  %v3947 = vld [vmem:[%s4 + $0x18] sm:$0xf]
  %v3948 = vld [vmem:[%s4 + $0x20] sm:$0xff]
  %v3949 = vld [vmem:[%s4 + $0x28] sm:$0xff]
  %v3950 = vld [vmem:[%s4 + $0x30] sm:$0xff]
  %v3951 = vld [vmem:[%s4 + $0x38] sm:$0xf]
  %v3952 = vld [vmem:[%s4 + $0x40] sm:$0xff]
  %v3953 = vld [vmem:[%s4 + $0x48] sm:$0xff]
  %v3954 = vld [vmem:[%s4 + $0x50] sm:$0xff]
  %v3955 = vld [vmem:[%s4 + $0x58] sm:$0xf]
  %v3956 = vld [vmem:[%s4 + $0x60] sm:$0xff]
  %v3957 = vld [vmem:[%s4 + $0x68] sm:$0xff]
  %v3958 = vld [vmem:[%s4 + $0x70] sm:$0xff]
  %v3959 = vld [vmem:[%s4 + $0x78] sm:$0xf]
  %v3960 = vld [vmem:[%s4 + $0x80] sm:$0xff]
  %v3961 = vld [vmem:[%s4 + $0x88] sm:$0xff]
  %v3962 = vld [vmem:[%s4 + $0x90] sm:$0xff]
  %v3963 = vld [vmem:[%s4 + $0x98] sm:$0xf]
  %v3964 = vld [vmem:[%s4 + $0xa0] sm:$0xff]
  %v3965 = vld [vmem:[%s4 + $0xa8] sm:$0xff]
  %v3966 = vld [vmem:[%s4 + $0xb0] sm:$0xff]
  %v3967 = vld [vmem:[%s4 + $0xb8] sm:$0xf]
  %v3968 = vld [vmem:[%s4 + $0xc0] sm:$0xff]
  %v3969 = vld [vmem:[%s4 + $0xc8] sm:$0xff]
  %v3970 = vld [vmem:[%s4 + $0xd0] sm:$0xff]
  %v3971 = vld [vmem:[%s4 + $0xd8] sm:$0xf]
  %v3972 = vld [vmem:[%s4 + $0xe0] sm:$0xff]
  %v3973 = vld [vmem:[%s4 + $0xe8] sm:$0xff]
  %v3974 = vld [vmem:[%s4 + $0xf0] sm:$0xff]
  %v3975 = vld [vmem:[%s4 + $0xf8] sm:$0xf]
  %v3976 = vld [vmem:[%s4 + $0x100] sm:$0xff]
  %v3977 = vld [vmem:[%s4 + $0x108] sm:$0xff]
  %v3978 = vld [vmem:[%s4 + $0x110] sm:$0xff]
  %v3979 = vld [vmem:[%s4 + $0x118] sm:$0xf]
  %v3980 = vld [vmem:[%s4 + $0x120] sm:$0xff]
  %v3981 = vld [vmem:[%s4 + $0x128] sm:$0xff]
  %v3982 = vld [vmem:[%s4 + $0x130] sm:$0xff]
  %v3983 = vld [vmem:[%s4 + $0x138] sm:$0xf]
  %v3984 = vld [vmem:[%s4 + $0x140] sm:$0xff]
  %v3985 = vld [vmem:[%s4 + $0x148] sm:$0xff]
  %v3986 = vld [vmem:[%s4 + $0x150] sm:$0xff]
  %v3987 = vld [vmem:[%s4 + $0x158] sm:$0xf]
  %v3988 = vld [vmem:[%s4 + $0x160] sm:$0xff]
  %v3989 = vld [vmem:[%s4 + $0x168] sm:$0xff]
  %v3990 = vld [vmem:[%s4 + $0x170] sm:$0xff]
  %v3991 = vld [vmem:[%s4 + $0x178] sm:$0xf]
  %v3992 = vld [vmem:[%s4 + $0x180] sm:$0xff]
  %v3993 = vld [vmem:[%s4 + $0x188] sm:$0xff]
  %v3994 = vld [vmem:[%s4 + $0x190] sm:$0xff]
  %v3995 = vld [vmem:[%s4 + $0x198] sm:$0xf]
  %v3996 = vld [vmem:[%s4 + $0x1a0] sm:$0xff]
  %v3997 = vld [vmem:[%s4 + $0x1a8] sm:$0xff]
  %v3998 = vld [vmem:[%s4 + $0x1b0] sm:$0xff]
  %v3999 = vld [vmem:[%s4 + $0x1b8] sm:$0xf]
  %v4001 = vlaneseq
  %v4002 = vshrl.u32 %v4001, 7
  %v4003 = vsub.s32 0, %v4002
  %v4004 = vrot.slane %v3940, %v4003
  %v4006 = vmul.f32 %v3944, %v4004
  %v4007 = vmul.f32 %v3945, %v4004
  %v4008 = vmul.f32 %v3946, %v4004
  %v4009 = vmul.f32 %v3947, %v4004
  %v4010 = vmul.f32 %v3948, %v4004
  %v4011 = vmul.f32 %v3949, %v4004
  %v4012 = vmul.f32 %v3950, %v4004
  %v4013 = vmul.f32 %v3951, %v4004
  %v4014 = vmul.f32 %v3952, %v4004
  %v4015 = vmul.f32 %v3953, %v4004
  %v4016 = vmul.f32 %v3954, %v4004
  %v4017 = vmul.f32 %v3955, %v4004
  %v4018 = vmul.f32 %v3956, %v4004
  %v4019 = vmul.f32 %v3957, %v4004
  %v4020 = vmul.f32 %v3958, %v4004
  %v4021 = vmul.f32 %v3959, %v4004
  %v4022 = vmul.f32 %v3960, %v4004
  %v4023 = vmul.f32 %v3961, %v4004
  %v4024 = vmul.f32 %v3962, %v4004
  %v4025 = vmul.f32 %v3963, %v4004
  %v4026 = vmul.f32 %v3964, %v4004
  %v4027 = vmul.f32 %v3965, %v4004
  %v4028 = vmul.f32 %v3966, %v4004
  %v4029 = vmul.f32 %v3967, %v4004
  %v4030 = vmul.f32 %v3968, %v4004
  %v4031 = vmul.f32 %v3969, %v4004
  %v4032 = vmul.f32 %v3970, %v4004
  %v4033 = vmul.f32 %v3971, %v4004
  %v4034 = vmul.f32 %v3972, %v4004
  %v4035 = vmul.f32 %v3973, %v4004
  %v4036 = vmul.f32 %v3974, %v4004
  %v4037 = vmul.f32 %v3975, %v4004
  %v4038 = vmul.f32 %v3976, %v4004
  %v4039 = vmul.f32 %v3977, %v4004
  %v4040 = vmul.f32 %v3978, %v4004
  %v4041 = vmul.f32 %v3979, %v4004
  %v4042 = vmul.f32 %v3980, %v4004
  %v4043 = vmul.f32 %v3981, %v4004
  %v4044 = vmul.f32 %v3982, %v4004
  %v4045 = vmul.f32 %v3983, %v4004
  %v4046 = vmul.f32 %v3984, %v4004
  %v4047 = vmul.f32 %v3985, %v4004
  %v4048 = vmul.f32 %v3986, %v4004
  %v4049 = vmul.f32 %v3987, %v4004
  %v4050 = vmul.f32 %v3988, %v4004
  %v4051 = vmul.f32 %v3989, %v4004
  %v4052 = vmul.f32 %v3990, %v4004
  %v4053 = vmul.f32 %v3991, %v4004
  %v4054 = vmul.f32 %v3992, %v4004
  %v4055 = vmul.f32 %v3993, %v4004
  %v4056 = vmul.f32 %v3994, %v4004
  %v4057 = vmul.f32 %v3995, %v4004
  %v4058 = vmul.f32 %v3996, %v4004
  %v4059 = vmul.f32 %v3997, %v4004
  %v4060 = vmul.f32 %v3998, %v4004
  %v4061 = vmul.f32 %v3999, %v4004
  %v4063 = vlaneseq
  %v4064 = vshrl.u32 %v4063, 7
  %v4065 = vsub.s32 0, %v4064
  %v4066 = vrot.slane %v3943, %v4065
  %v4068 = vadd.f32 %v4006, %v4066
  %v4069 = vadd.f32 %v4007, %v4066
  %v4070 = vadd.f32 %v4008, %v4066
  %v4071 = vadd.f32 %v4009, %v4066
  %v4072 = vadd.f32 %v4010, %v4066
  %v4073 = vadd.f32 %v4011, %v4066
  %v4074 = vadd.f32 %v4012, %v4066
  %v4075 = vadd.f32 %v4013, %v4066
  %v4076 = vadd.f32 %v4014, %v4066
  %v4077 = vadd.f32 %v4015, %v4066
  %v4078 = vadd.f32 %v4016, %v4066
  %v4079 = vadd.f32 %v4017, %v4066
  %v4080 = vadd.f32 %v4018, %v4066
  %v4081 = vadd.f32 %v4019, %v4066
  %v4082 = vadd.f32 %v4020, %v4066
  %v4083 = vadd.f32 %v4021, %v4066
  %v4084 = vadd.f32 %v4022, %v4066
  %v4085 = vadd.f32 %v4023, %v4066
  %v4086 = vadd.f32 %v4024, %v4066
  %v4087 = vadd.f32 %v4025, %v4066
  %v4088 = vadd.f32 %v4026, %v4066
  %v4089 = vadd.f32 %v4027, %v4066
  %v4090 = vadd.f32 %v4028, %v4066
  %v4091 = vadd.f32 %v4029, %v4066
  %v4092 = vadd.f32 %v4030, %v4066
  %v4093 = vadd.f32 %v4031, %v4066
  %v4094 = vadd.f32 %v4032, %v4066
  %v4095 = vadd.f32 %v4033, %v4066
  %v4096 = vadd.f32 %v4034, %v4066
  %v4097 = vadd.f32 %v4035, %v4066
  %v4098 = vadd.f32 %v4036, %v4066
  %v4099 = vadd.f32 %v4037, %v4066
  %v4100 = vadd.f32 %v4038, %v4066
  %v4101 = vadd.f32 %v4039, %v4066
  %v4102 = vadd.f32 %v4040, %v4066
  %v4103 = vadd.f32 %v4041, %v4066
  %v4104 = vadd.f32 %v4042, %v4066
  %v4105 = vadd.f32 %v4043, %v4066
  %v4106 = vadd.f32 %v4044, %v4066
  %v4107 = vadd.f32 %v4045, %v4066
  %v4108 = vadd.f32 %v4046, %v4066
  %v4109 = vadd.f32 %v4047, %v4066
  %v4110 = vadd.f32 %v4048, %v4066
  %v4111 = vadd.f32 %v4049, %v4066
  %v4112 = vadd.f32 %v4050, %v4066
  %v4113 = vadd.f32 %v4051, %v4066
  %v4114 = vadd.f32 %v4052, %v4066
  %v4115 = vadd.f32 %v4053, %v4066
  %v4116 = vadd.f32 %v4054, %v4066
  %v4117 = vadd.f32 %v4055, %v4066
  %v4118 = vadd.f32 %v4056, %v4066
  %v4119 = vadd.f32 %v4057, %v4066
  %v4120 = vadd.f32 %v4058, %v4066
  %v4121 = vadd.f32 %v4059, %v4066
  %v4122 = vadd.f32 %v4060, %v4066
  %v4123 = vadd.f32 %v4061, %v4066
  %4124 = vst [vmem:[%s4] sm:$0xff] %v4068
  %4125 = vst [vmem:[%s4 + $0x8] sm:$0xff] %v4069
  %4126 = vst [vmem:[%s4 + $0x10] sm:$0xff] %v4070
  %4127 = vst [vmem:[%s4 + $0x18] sm:$0xf] %v4071
  %4128 = vst [vmem:[%s4 + $0x20] sm:$0xff] %v4072
  %4129 = vst [vmem:[%s4 + $0x28] sm:$0xff] %v4073
  %4130 = vst [vmem:[%s4 + $0x30] sm:$0xff] %v4074
  %4131 = vst [vmem:[%s4 + $0x38] sm:$0xf] %v4075
  %4132 = vst [vmem:[%s4 + $0x40] sm:$0xff] %v4076
  %4133 = vst [vmem:[%s4 + $0x48] sm:$0xff] %v4077
  %4134 = vst [vmem:[%s4 + $0x50] sm:$0xff] %v4078
  %4135 = vst [vmem:[%s4 + $0x58] sm:$0xf] %v4079
  %4136 = vst [vmem:[%s4 + $0x60] sm:$0xff] %v4080
  %4137 = vst [vmem:[%s4 + $0x68] sm:$0xff] %v4081
  %4138 = vst [vmem:[%s4 + $0x70] sm:$0xff] %v4082
  %4139 = vst [vmem:[%s4 + $0x78] sm:$0xf] %v4083
  %4140 = vst [vmem:[%s4 + $0x80] sm:$0xff] %v4084
  %4141 = vst [vmem:[%s4 + $0x88] sm:$0xff] %v4085
  %4142 = vst [vmem:[%s4 + $0x90] sm:$0xff] %v4086
  %4143 = vst [vmem:[%s4 + $0x98] sm:$0xf] %v4087
  %4144 = vst [vmem:[%s4 + $0xa0] sm:$0xff] %v4088
  %4145 = vst [vmem:[%s4 + $0xa8] sm:$0xff] %v4089
  %4146 = vst [vmem:[%s4 + $0xb0] sm:$0xff] %v4090
  %4147 = vst [vmem:[%s4 + $0xb8] sm:$0xf] %v4091
  %4148 = vst [vmem:[%s4 + $0xc0] sm:$0xff] %v4092
  %4149 = vst [vmem:[%s4 + $0xc8] sm:$0xff] %v4093
  %4150 = vst [vmem:[%s4 + $0xd0] sm:$0xff] %v4094
  %4151 = vst [vmem:[%s4 + $0xd8] sm:$0xf] %v4095
  %4152 = vst [vmem:[%s4 + $0xe0] sm:$0xff] %v4096
  %4153 = vst [vmem:[%s4 + $0xe8] sm:$0xff] %v4097
  %4154 = vst [vmem:[%s4 + $0xf0] sm:$0xff] %v4098
  %4155 = vst [vmem:[%s4 + $0xf8] sm:$0xf] %v4099
  %4156 = vst [vmem:[%s4 + $0x100] sm:$0xff] %v4100
  %4157 = vst [vmem:[%s4 + $0x108] sm:$0xff] %v4101
  %4158 = vst [vmem:[%s4 + $0x110] sm:$0xff] %v4102
  %4159 = vst [vmem:[%s4 + $0x118] sm:$0xf] %v4103
  %4160 = vst [vmem:[%s4 + $0x120] sm:$0xff] %v4104
  %4161 = vst [vmem:[%s4 + $0x128] sm:$0xff] %v4105
  %4162 = vst [vmem:[%s4 + $0x130] sm:$0xff] %v4106
  %4163 = vst [vmem:[%s4 + $0x138] sm:$0xf] %v4107
  %4164 = vst [vmem:[%s4 + $0x140] sm:$0xff] %v4108
  %4165 = vst [vmem:[%s4 + $0x148] sm:$0xff] %v4109
  %4166 = vst [vmem:[%s4 + $0x150] sm:$0xff] %v4110
  %4167 = vst [vmem:[%s4 + $0x158] sm:$0xf] %v4111
  %4168 = vst [vmem:[%s4 + $0x160] sm:$0xff] %v4112
  %4169 = vst [vmem:[%s4 + $0x168] sm:$0xff] %v4113
  %4170 = vst [vmem:[%s4 + $0x170] sm:$0xff] %v4114
  %4171 = vst [vmem:[%s4 + $0x178] sm:$0xf] %v4115
  %4172 = vst [vmem:[%s4 + $0x180] sm:$0xff] %v4116
  %4173 = vst [vmem:[%s4 + $0x188] sm:$0xff] %v4117
  %4174 = vst [vmem:[%s4 + $0x190] sm:$0xff] %v4118
  %4175 = vst [vmem:[%s4 + $0x198] sm:$0xf] %v4119
  %4176 = vst [vmem:[%s4 + $0x1a0] sm:$0xff] %v4120
  %4177 = vst [vmem:[%s4 + $0x1a8] sm:$0xff] %v4121
  %4178 = vst [vmem:[%s4 + $0x1b0] sm:$0xff] %v4122
  %4179 = vst [vmem:[%s4 + $0x1b8] sm:$0xf] %v4123
  %s4180 = scalar_lea.vmem %s4, 448
  %v4181 = vld [vmem:[%s4180] sm:$0xff]
  %v4182 = vld [vmem:[%s4180 + $0x8] sm:$0xff]
  %v4183 = vld [vmem:[%s4180 + $0x10] sm:$0xff]
  %v4184 = vld [vmem:[%s4180 + $0x18] sm:$0xf]
  %v4185 = vld [vmem:[%s4180 + $0x20] sm:$0xff]
  %v4186 = vld [vmem:[%s4180 + $0x28] sm:$0xff]
  %v4187 = vld [vmem:[%s4180 + $0x30] sm:$0xff]
  %v4188 = vld [vmem:[%s4180 + $0x38] sm:$0xf]
  %v4189 = vld [vmem:[%s4180 + $0x40] sm:$0xff]
  %v4190 = vld [vmem:[%s4180 + $0x48] sm:$0xff]
  %v4191 = vld [vmem:[%s4180 + $0x50] sm:$0xff]
  %v4192 = vld [vmem:[%s4180 + $0x58] sm:$0xf]
  %v4193 = vld [vmem:[%s4180 + $0x60] sm:$0xff]
  %v4194 = vld [vmem:[%s4180 + $0x68] sm:$0xff]
  %v4195 = vld [vmem:[%s4180 + $0x70] sm:$0xff]
  %v4196 = vld [vmem:[%s4180 + $0x78] sm:$0xf]
  %v4197 = vld [vmem:[%s4180 + $0x80] sm:$0xff]
  %v4198 = vld [vmem:[%s4180 + $0x88] sm:$0xff]
  %v4199 = vld [vmem:[%s4180 + $0x90] sm:$0xff]
  %v4200 = vld [vmem:[%s4180 + $0x98] sm:$0xf]
  %v4201 = vld [vmem:[%s4180 + $0xa0] sm:$0xff]
  %v4202 = vld [vmem:[%s4180 + $0xa8] sm:$0xff]
  %v4203 = vld [vmem:[%s4180 + $0xb0] sm:$0xff]
  %v4204 = vld [vmem:[%s4180 + $0xb8] sm:$0xf]
  %v4205 = vld [vmem:[%s4180 + $0xc0] sm:$0xff]
  %v4206 = vld [vmem:[%s4180 + $0xc8] sm:$0xff]
  %v4207 = vld [vmem:[%s4180 + $0xd0] sm:$0xff]
  %v4208 = vld [vmem:[%s4180 + $0xd8] sm:$0xf]
  %v4209 = vld [vmem:[%s4180 + $0xe0] sm:$0xff]
  %v4210 = vld [vmem:[%s4180 + $0xe8] sm:$0xff]
  %v4211 = vld [vmem:[%s4180 + $0xf0] sm:$0xff]
  %v4212 = vld [vmem:[%s4180 + $0xf8] sm:$0xf]
  %v4213 = vld [vmem:[%s4180 + $0x100] sm:$0xff]
  %v4214 = vld [vmem:[%s4180 + $0x108] sm:$0xff]
  %v4215 = vld [vmem:[%s4180 + $0x110] sm:$0xff]
  %v4216 = vld [vmem:[%s4180 + $0x118] sm:$0xf]
  %v4217 = vld [vmem:[%s4180 + $0x120] sm:$0xff]
  %v4218 = vld [vmem:[%s4180 + $0x128] sm:$0xff]
  %v4219 = vld [vmem:[%s4180 + $0x130] sm:$0xff]
  %v4220 = vld [vmem:[%s4180 + $0x138] sm:$0xf]
  %v4221 = vld [vmem:[%s4180 + $0x140] sm:$0xff]
  %v4222 = vld [vmem:[%s4180 + $0x148] sm:$0xff]
  %v4223 = vld [vmem:[%s4180 + $0x150] sm:$0xff]
  %v4224 = vld [vmem:[%s4180 + $0x158] sm:$0xf]
  %v4225 = vld [vmem:[%s4180 + $0x160] sm:$0xff]
  %v4226 = vld [vmem:[%s4180 + $0x168] sm:$0xff]
  %v4227 = vld [vmem:[%s4180 + $0x170] sm:$0xff]
  %v4228 = vld [vmem:[%s4180 + $0x178] sm:$0xf]
  %v4229 = vld [vmem:[%s4180 + $0x180] sm:$0xff]
  %v4230 = vld [vmem:[%s4180 + $0x188] sm:$0xff]
  %v4231 = vld [vmem:[%s4180 + $0x190] sm:$0xff]
  %v4232 = vld [vmem:[%s4180 + $0x198] sm:$0xf]
  %v4233 = vld [vmem:[%s4180 + $0x1a0] sm:$0xff]
  %v4234 = vld [vmem:[%s4180 + $0x1a8] sm:$0xff]
  %v4235 = vld [vmem:[%s4180 + $0x1b0] sm:$0xff]
  %v4236 = vld [vmem:[%s4180 + $0x1b8] sm:$0xf]
  %v4237 = vmul.f32 %v4181, %v4004
  %v4238 = vmul.f32 %v4182, %v4004
  %v4239 = vmul.f32 %v4183, %v4004
  %v4240 = vmul.f32 %v4184, %v4004
  %v4241 = vmul.f32 %v4185, %v4004
  %v4242 = vmul.f32 %v4186, %v4004
  %v4243 = vmul.f32 %v4187, %v4004
  %v4244 = vmul.f32 %v4188, %v4004
  %v4245 = vmul.f32 %v4189, %v4004
  %v4246 = vmul.f32 %v4190, %v4004
  %v4247 = vmul.f32 %v4191, %v4004
  %v4248 = vmul.f32 %v4192, %v4004
  %v4249 = vmul.f32 %v4193, %v4004
  %v4250 = vmul.f32 %v4194, %v4004
  %v4251 = vmul.f32 %v4195, %v4004
  %v4252 = vmul.f32 %v4196, %v4004
  %v4253 = vmul.f32 %v4197, %v4004
  %v4254 = vmul.f32 %v4198, %v4004
  %v4255 = vmul.f32 %v4199, %v4004
  %v4256 = vmul.f32 %v4200, %v4004
  %v4257 = vmul.f32 %v4201, %v4004
  %v4258 = vmul.f32 %v4202, %v4004
  %v4259 = vmul.f32 %v4203, %v4004
  %v4260 = vmul.f32 %v4204, %v4004
  %v4261 = vmul.f32 %v4205, %v4004
  %v4262 = vmul.f32 %v4206, %v4004
  %v4263 = vmul.f32 %v4207, %v4004
  %v4264 = vmul.f32 %v4208, %v4004
  %v4265 = vmul.f32 %v4209, %v4004
  %v4266 = vmul.f32 %v4210, %v4004
  %v4267 = vmul.f32 %v4211, %v4004
  %v4268 = vmul.f32 %v4212, %v4004
  %v4269 = vmul.f32 %v4213, %v4004
  %v4270 = vmul.f32 %v4214, %v4004
  %v4271 = vmul.f32 %v4215, %v4004
  %v4272 = vmul.f32 %v4216, %v4004
  %v4273 = vmul.f32 %v4217, %v4004
  %v4274 = vmul.f32 %v4218, %v4004
  %v4275 = vmul.f32 %v4219, %v4004
  %v4276 = vmul.f32 %v4220, %v4004
  %v4277 = vmul.f32 %v4221, %v4004
  %v4278 = vmul.f32 %v4222, %v4004
  %v4279 = vmul.f32 %v4223, %v4004
  %v4280 = vmul.f32 %v4224, %v4004
  %v4281 = vmul.f32 %v4225, %v4004
  %v4282 = vmul.f32 %v4226, %v4004
  %v4283 = vmul.f32 %v4227, %v4004
  %v4284 = vmul.f32 %v4228, %v4004
  %v4285 = vmul.f32 %v4229, %v4004
  %v4286 = vmul.f32 %v4230, %v4004
  %v4287 = vmul.f32 %v4231, %v4004
  %v4288 = vmul.f32 %v4232, %v4004
  %v4289 = vmul.f32 %v4233, %v4004
  %v4290 = vmul.f32 %v4234, %v4004
  %v4291 = vmul.f32 %v4235, %v4004
  %v4292 = vmul.f32 %v4236, %v4004
  %v4293 = vadd.f32 %v4237, %v4066
  %v4294 = vadd.f32 %v4238, %v4066
  %v4295 = vadd.f32 %v4239, %v4066
  %v4296 = vadd.f32 %v4240, %v4066
  %v4297 = vadd.f32 %v4241, %v4066
  %v4298 = vadd.f32 %v4242, %v4066
  %v4299 = vadd.f32 %v4243, %v4066
  %v4300 = vadd.f32 %v4244, %v4066
  %v4301 = vadd.f32 %v4245, %v4066
  %v4302 = vadd.f32 %v4246, %v4066
  %v4303 = vadd.f32 %v4247, %v4066
  %v4304 = vadd.f32 %v4248, %v4066
  %v4305 = vadd.f32 %v4249, %v4066
  %v4306 = vadd.f32 %v4250, %v4066
  %v4307 = vadd.f32 %v4251, %v4066
  %v4308 = vadd.f32 %v4252, %v4066
  %v4309 = vadd.f32 %v4253, %v4066
  %v4310 = vadd.f32 %v4254, %v4066
  %v4311 = vadd.f32 %v4255, %v4066
  %v4312 = vadd.f32 %v4256, %v4066
  %v4313 = vadd.f32 %v4257, %v4066
  %v4314 = vadd.f32 %v4258, %v4066
  %v4315 = vadd.f32 %v4259, %v4066
  %v4316 = vadd.f32 %v4260, %v4066
  %v4317 = vadd.f32 %v4261, %v4066
  %v4318 = vadd.f32 %v4262, %v4066
  %v4319 = vadd.f32 %v4263, %v4066
  %v4320 = vadd.f32 %v4264, %v4066
  %v4321 = vadd.f32 %v4265, %v4066
  %v4322 = vadd.f32 %v4266, %v4066
  %v4323 = vadd.f32 %v4267, %v4066
  %v4324 = vadd.f32 %v4268, %v4066
  %v4325 = vadd.f32 %v4269, %v4066
  %v4326 = vadd.f32 %v4270, %v4066
  %v4327 = vadd.f32 %v4271, %v4066
  %v4328 = vadd.f32 %v4272, %v4066
  %v4329 = vadd.f32 %v4273, %v4066
  %v4330 = vadd.f32 %v4274, %v4066
  %v4331 = vadd.f32 %v4275, %v4066
  %v4332 = vadd.f32 %v4276, %v4066
  %v4333 = vadd.f32 %v4277, %v4066
  %v4334 = vadd.f32 %v4278, %v4066
  %v4335 = vadd.f32 %v4279, %v4066
  %v4336 = vadd.f32 %v4280, %v4066
  %v4337 = vadd.f32 %v4281, %v4066
  %v4338 = vadd.f32 %v4282, %v4066
  %v4339 = vadd.f32 %v4283, %v4066
  %v4340 = vadd.f32 %v4284, %v4066
  %v4341 = vadd.f32 %v4285, %v4066
  %v4342 = vadd.f32 %v4286, %v4066
  %v4343 = vadd.f32 %v4287, %v4066
  %v4344 = vadd.f32 %v4288, %v4066
  %v4345 = vadd.f32 %v4289, %v4066
  %v4346 = vadd.f32 %v4290, %v4066
  %v4347 = vadd.f32 %v4291, %v4066
  %v4348 = vadd.f32 %v4292, %v4066
  %4349 = vst [vmem:[%s4180] sm:$0xff] %v4293
  %4350 = vst [vmem:[%s4180 + $0x8] sm:$0xff] %v4294
  %4351 = vst [vmem:[%s4180 + $0x10] sm:$0xff] %v4295
  %4352 = vst [vmem:[%s4180 + $0x18] sm:$0xf] %v4296
  %4353 = vst [vmem:[%s4180 + $0x20] sm:$0xff] %v4297
  %4354 = vst [vmem:[%s4180 + $0x28] sm:$0xff] %v4298
  %4355 = vst [vmem:[%s4180 + $0x30] sm:$0xff] %v4299
  %4356 = vst [vmem:[%s4180 + $0x38] sm:$0xf] %v4300
  %4357 = vst [vmem:[%s4180 + $0x40] sm:$0xff] %v4301
  %4358 = vst [vmem:[%s4180 + $0x48] sm:$0xff] %v4302
  %4359 = vst [vmem:[%s4180 + $0x50] sm:$0xff] %v4303
  %4360 = vst [vmem:[%s4180 + $0x58] sm:$0xf] %v4304
  %4361 = vst [vmem:[%s4180 + $0x60] sm:$0xff] %v4305
  %4362 = vst [vmem:[%s4180 + $0x68] sm:$0xff] %v4306
  %4363 = vst [vmem:[%s4180 + $0x70] sm:$0xff] %v4307
  %4364 = vst [vmem:[%s4180 + $0x78] sm:$0xf] %v4308
  %4365 = vst [vmem:[%s4180 + $0x80] sm:$0xff] %v4309
  %4366 = vst [vmem:[%s4180 + $0x88] sm:$0xff] %v4310
  %4367 = vst [vmem:[%s4180 + $0x90] sm:$0xff] %v4311
  %4368 = vst [vmem:[%s4180 + $0x98] sm:$0xf] %v4312
  %4369 = vst [vmem:[%s4180 + $0xa0] sm:$0xff] %v4313
  %4370 = vst [vmem:[%s4180 + $0xa8] sm:$0xff] %v4314
  %4371 = vst [vmem:[%s4180 + $0xb0] sm:$0xff] %v4315
  %4372 = vst [vmem:[%s4180 + $0xb8] sm:$0xf] %v4316
  %4373 = vst [vmem:[%s4180 + $0xc0] sm:$0xff] %v4317
  %4374 = vst [vmem:[%s4180 + $0xc8] sm:$0xff] %v4318
  %4375 = vst [vmem:[%s4180 + $0xd0] sm:$0xff] %v4319
  %4376 = vst [vmem:[%s4180 + $0xd8] sm:$0xf] %v4320
  %4377 = vst [vmem:[%s4180 + $0xe0] sm:$0xff] %v4321
  %4378 = vst [vmem:[%s4180 + $0xe8] sm:$0xff] %v4322
  %4379 = vst [vmem:[%s4180 + $0xf0] sm:$0xff] %v4323
  %4380 = vst [vmem:[%s4180 + $0xf8] sm:$0xf] %v4324
  %4381 = vst [vmem:[%s4180 + $0x100] sm:$0xff] %v4325
  %4382 = vst [vmem:[%s4180 + $0x108] sm:$0xff] %v4326
  %4383 = vst [vmem:[%s4180 + $0x110] sm:$0xff] %v4327
  %4384 = vst [vmem:[%s4180 + $0x118] sm:$0xf] %v4328
  %4385 = vst [vmem:[%s4180 + $0x120] sm:$0xff] %v4329
  %4386 = vst [vmem:[%s4180 + $0x128] sm:$0xff] %v4330
  %4387 = vst [vmem:[%s4180 + $0x130] sm:$0xff] %v4331
  %4388 = vst [vmem:[%s4180 + $0x138] sm:$0xf] %v4332
  %4389 = vst [vmem:[%s4180 + $0x140] sm:$0xff] %v4333
  %4390 = vst [vmem:[%s4180 + $0x148] sm:$0xff] %v4334
  %4391 = vst [vmem:[%s4180 + $0x150] sm:$0xff] %v4335
  %4392 = vst [vmem:[%s4180 + $0x158] sm:$0xf] %v4336
  %4393 = vst [vmem:[%s4180 + $0x160] sm:$0xff] %v4337
  %4394 = vst [vmem:[%s4180 + $0x168] sm:$0xff] %v4338
  %4395 = vst [vmem:[%s4180 + $0x170] sm:$0xff] %v4339
  %4396 = vst [vmem:[%s4180 + $0x178] sm:$0xf] %v4340
  %4397 = vst [vmem:[%s4180 + $0x180] sm:$0xff] %v4341
  %4398 = vst [vmem:[%s4180 + $0x188] sm:$0xff] %v4342
  %4399 = vst [vmem:[%s4180 + $0x190] sm:$0xff] %v4343
  %4400 = vst [vmem:[%s4180 + $0x198] sm:$0xf] %v4344
  %4401 = vst [vmem:[%s4180 + $0x1a0] sm:$0xff] %v4345
  %4402 = vst [vmem:[%s4180 + $0x1a8] sm:$0xff] %v4346
  %4403 = vst [vmem:[%s4180 + $0x1b0] sm:$0xff] %v4347
  %4404 = vst [vmem:[%s4180 + $0x1b8] sm:$0xf] %v4348
  // Predicated region
  $region18: #{depthwise_conv_bn.1} parent=0 // pred_check
    _
  $region19: #{depthwise_conv_bn.1} parent=0 // pred_check_branch
    %4406 = sbr.rel (0) target = $region21
  $region20: #{depthwise_conv_bn.1} parent=0 // pred_region
    _
  $region21: #{depthwise_conv_bn.1} parent=0 // pred_fallthru
    _
  // Predicated region
  $region22: #{depthwise_conv_bn.1} parent=0 // pred_check
    _
  $region23: #{depthwise_conv_bn.1} parent=0 // pred_check_branch
    %4408 = sbr.rel (0) target = $region25
  $region24: #{depthwise_conv_bn.1} parent=0 // pred_region
    _
  $region25: #{depthwise_conv_bn.1} parent=0 // pred_fallthru
    _

</llo_original>
